<compile_context>
chip_gen: v7x
topology: tpu7x:2x2x1
jax: 0.10.0
libtpu: 0.0.40
codegen_flags: <defaults>
</compile_context>

<pallas_src>
import functools

import jax
import jax.numpy as jnp
import numpy as np
from jax.experimental import pallas as pl
from jax.experimental.pallas import tpu as pltpu


def _sepconv_stats_kernel(x_ref, halo_ref, dww_ref, pww_ref, h_ref, stats_ref,
                          *, k, pad_f, pad_t, same_f):
    """Pass 1: one T tile of h = pointwise(depthwise(relu+pad(x))) plus
    per-output-channel lane-partial sum / sum-of-squares of h."""
    b_dim, c_in, f_in, s = x_ref.shape
    _, c_out, f_out, _ = h_ref.shape

    # Hoisted iotas / masks (broadcasts are not CSE'd inside loops).
    lane = jax.lax.broadcasted_iota(jnp.int32, (1, 1, s), 2)
    row = jax.lax.broadcasted_iota(jnp.int32, (1, f_out, 1), 1)
    left_eq = [lane == j for j in range(pad_t)]
    right_eq = [lane == (s - 1 - j) for j in range(pad_t)]
    rmask_by_kh = []
    if same_f:
        for kh in range(k):
            dfh = kh - pad_f
            rmask_by_kh.append(
                None if dfh == 0 else
                jnp.logical_and(row >= -dfh, row <= f_in - 1 - dfh))

    # ---- Depthwise k x k conv (stride 1); biases folded away (see header).
    dw = []
    for ci in range(c_in):
        xc = jnp.maximum(x_ref[:, ci], 0.0)                     # (B, F, S)
        hcol = (jnp.maximum(halo_ref[0, ci * b_dim:(ci + 1) * b_dim], 0.0)
                if pad_t else None)                             # (B, F, 2*pad_t)
        acc = None
        for kh in range(k):
            dfh = kh - pad_f
            bl = br = None
            if same_f:
                if dfh == 0:
                    band = xc
                    if pad_t:
                        bl, br = hcol[:, :, :pad_t], hcol[:, :, pad_t:]
                else:
                    # Row shift on the sublane axis (XLU); zero rows that fall
                    # into the F zero padding.
                    rmask = rmask_by_kh[kh]
                    band = jnp.where(
                        rmask, pltpu.roll(xc, shift=(-dfh) % f_in, axis=1), 0.0)
                    if pad_t:
                        hsh = jnp.where(
                            rmask,
                            pltpu.roll(hcol, shift=(-dfh) % f_in, axis=1), 0.0)
                        bl, br = hsh[:, :, :pad_t], hsh[:, :, pad_t:]
            else:
                # 'VALID' in F: plain sublane-offset band load, all rows valid.
                band = jnp.maximum(x_ref[:, ci, kh:kh + f_out, :], 0.0)
                if pad_t:
                    hv = jnp.maximum(
                        halo_ref[0, ci * b_dim:(ci + 1) * b_dim,
                                 kh:kh + f_out, :], 0.0)
                    bl, br = hv[:, :, :pad_t], hv[:, :, pad_t:]

            for kw in range(k):
                dtw = kw - pad_t
                if dtw == 0:
                    term = band
                else:
                    # Lane shift on the XLU; fix the wrapped boundary lanes
                    # from the neighbour-tile halo columns (zero at the global
                    # edges -- the wrapper fills those halos with zeros).
                    term = pltpu.roll(band, shift=(-dtw) % s, axis=2)
                    if dtw > 0:      # last dtw lanes wrapped -> right halo
                        for j in range(dtw):
                            term = jnp.where(right_eq[dtw - 1 - j],
                                             br[:, :, j:j + 1], term)
                    else:            # first -dtw lanes wrapped -> left halo
                        for j in range(-dtw):
                            m = pad_t + dtw + j
                            term = jnp.where(left_eq[j],
                                             bl[:, :, m:m + 1], term)
                contrib = term * dww_ref[ci, kh * k + kw]        # SMEM scalar
                acc = contrib if acc is None else acc + contrib
        dw.append(acc)                                           # (B, F_out, S)

    # ---- Pointwise 1x1 conv fused with BN sum / sum-of-squares partials.
    for co in range(c_out):
        hco = dw[0] * pww_ref[co, 0]
        for ci in range(1, c_in):
            hco = hco + dw[ci] * pww_ref[co, ci]
        h_ref[:, co] = hco.astype(h_ref.dtype)
        stats_ref[0, 0, co:co + 1, :] = jnp.sum(hco, axis=(0, 1))[None]
        stats_ref[0, 1, co:co + 1, :] = jnp.sum(hco * hco, axis=(0, 1))[None]


def _bn_apply_kernel(h_ref, scale_ref, shift_ref, y_ref):
    """Pass 2: y = h * scale[c] + shift[c] (BatchNorm affine application)."""
    c_out = h_ref.shape[1]
    for co in range(c_out):
        y_ref[:, co] = (h_ref[:, co] * scale_ref[co]
                        + shift_ref[co]).astype(y_ref.dtype)


def _pick_t_tile(t):
    # Largest lane-dense tile that keeps the C_in depthwise intermediates and
    # the pointwise working slab register-resident (bounds vreg pressure /
    # spills); bigger tiles only add VMEM pressure for this kernel.
    if t <= 256:
        return t
    for cand in (256, 128, 512, 1024):
        if t % cand == 0:
            return cand
    return t   # TODO(synk): pad ragged T to a tile multiple instead.


@functools.partial(jax.jit,
                   static_argnames=("kernel_size", "stride", "padding", "eps",
                                    "t_tile"))
def conv_step_forward(x_nchw, params, *, kernel_size, stride=1, padding="SAME",
                      eps=1e-5, t_tile=None):
    """ConvStep forward.  x_nchw: (B, C_in, F, T), exactly like the nn.Module."""
    dw_w, dw_b, pw_w, pw_b, gamma, beta = params
    del dw_b, pw_b  # exactly cancelled by training-mode BatchNorm (see header)
    batch, c_in, f_dim, t_dim = x_nchw.shape
    k = kernel_size
    c_out = pw_w.shape[0]

    if stride != 1 or k % 2 != 1:
        # TODO(synk): strided-F / even-kernel depthwise path not implemented.
        raise NotImplementedError("Pallas ConvStep path supports stride=1 and odd k.")

    same_f = (padding == "SAME")
    pad_t = (k - 1) // 2
    pad_f = (stride * f_dim - 1 + k - f_dim) // 2 if same_f else 0
    f_out = (f_dim + 2 * pad_f - k) // stride + 1
    t_out = t_dim                       # stride 1 over T with (k-1)/2 padding

    s = t_tile if t_tile is not None else _pick_t_tile(t_dim)
    if t_dim % s != 0:
        raise ValueError("t_tile must divide T")
    num_t = t_dim // s
    hw = max(2 * pad_t, 1)

    x = x_nchw.astype(jnp.float32)

    # Tile-boundary halo columns: pad_t raw-x columns on each side of every T
    # tile (zeros at the global edges).  Tiny: num_t * B * C_in * F * 2*pad_t.
    if pad_t and num_t > 1:
        xr = x.reshape(batch, c_in, f_dim, num_t, s)
        zero = jnp.zeros((batch, c_in, f_dim, 1, pad_t), jnp.float32)
        lh = jnp.concatenate([zero, xr[:, :, :, :-1, s - pad_t:]], axis=3)
        rh = jnp.concatenate([xr[:, :, :, 1:, :pad_t], zero], axis=3)
        halos = jnp.transpose(jnp.concatenate([lh, rh], axis=4),
                              (3, 1, 0, 2, 4))
        halos = halos.reshape(num_t, c_in * batch, f_dim, hw)
    else:
        halos = jnp.zeros((num_t, c_in * batch, f_dim, hw), jnp.float32)

    dww = dw_w[:, 0].reshape(c_in, k * k).astype(jnp.float32)   # (C_in, k*k)
    pww = pw_w[:, :, 0, 0].astype(jnp.float32)                  # (C_out, C_in)

    smem = pl.BlockSpec(memory_space=pltpu.MemorySpace.SMEM)
    f32 = jnp.float32

    # ---------------- Pass 1: h + per-tile BN partial statistics -------------
    blk1 = 4 * (batch * c_in * f_dim * s + c_in * batch * f_dim * hw
                + batch * c_out * f_out * s + 2 * c_out * s)
    kernel1 = functools.partial(_sepconv_stats_kernel, k=k, pad_f=pad_f,
                                pad_t=pad_t, same_f=same_f)
    h, stats = pl.pallas_call(
        kernel1,
        grid=(num_t,),
        in_specs=[
            pl.BlockSpec((batch, c_in, f_dim, s), lambda t: (0, 0, 0, t)),
            pl.BlockSpec((1, c_in * batch, f_dim, hw), lambda t: (t, 0, 0, 0)),
            smem, smem,
        ],
        out_specs=[
            pl.BlockSpec((batch, c_out, f_out, s), lambda t: (0, 0, 0, t)),
            pl.BlockSpec((1, 2, c_out, s), lambda t: (t, 0, 0, 0)),
        ],
        out_shape=[
            jax.ShapeDtypeStruct((batch, c_out, f_out, t_out), f32),
            jax.ShapeDtypeStruct((num_t, 2, c_out, s), f32),
        ],
        compiler_params=pltpu.CompilerParams(
            dimension_semantics=("parallel",),
            vmem_limit_bytes=int(min(56 << 20, max(32 << 20, 4 * blk1)))),
        cost_estimate=pl.CostEstimate(
            flops=2 * batch * c_in * f_out * t_out * (k * k + c_out)
            + 4 * batch * c_out * f_out * t_out,
            transcendentals=0,
            bytes_accessed=4 * (x.size + halos.size + dww.size + pww.size
                                + batch * c_out * f_out * t_out
                                + num_t * 2 * c_out * s)),
    )(x, halos, dww, pww)

    # ------------- BN statistics -> per-channel affine (tiny, XLA) -----------
    n = batch * f_out * t_out
    ssum = jnp.sum(stats[:, 0], axis=(0, 2))
    ssq = jnp.sum(stats[:, 1], axis=(0, 2))
    mean = ssum / n
    var = jnp.maximum(ssq / n - mean * mean, 0.0)  # biased training-mode var
    scale = gamma.astype(f32) * jax.lax.rsqrt(var + eps)
    shift = beta.astype(f32) - mean * scale

    # ---------------- Pass 2: apply the normalization ------------------------
    blk2 = 4 * 2 * batch * c_out * f_out * s
    y = pl.pallas_call(
        _bn_apply_kernel,
        grid=(num_t,),
        in_specs=[
            pl.BlockSpec((batch, c_out, f_out, s), lambda t: (0, 0, 0, t)),
            smem, smem,
        ],
        out_specs=pl.BlockSpec((batch, c_out, f_out, s),
                               lambda t: (0, 0, 0, t)),
        out_shape=jax.ShapeDtypeStruct((batch, c_out, f_out, t_out), f32),
        compiler_params=pltpu.CompilerParams(
            dimension_semantics=("parallel",),
            vmem_limit_bytes=int(min(56 << 20, max(32 << 20, 4 * blk2)))),
        cost_estimate=pl.CostEstimate(
            flops=2 * batch * c_out * f_out * t_out,
            transcendentals=0,
            bytes_accessed=8 * batch * c_out * f_out * t_out),
    )(h, scale, shift)
    return y


def ref_conv_step(x, params, *, kernel_size, stride=1, padding="SAME", eps=1e-5):
    """Pure-JAX reference (XLA convs) mirroring the PyTorch forward."""
    dw_w, dw_b, pw_w, pw_b, gamma, beta = params
    k = kernel_size
    _, c_in, f_dim, _ = x.shape
    h = jnp.maximum(x, 0.0)
    pad_t = int(0.5 * (k - 1))
    pad_f = int(0.5 * (stride * f_dim - 1 + k - f_dim)) if padding == "SAME" else 0
    h = jnp.pad(h, ((0, 0), (0, 0), (pad_f, pad_f), (pad_t, pad_t)))
    h = jax.lax.conv_general_dilated(
        h, dw_w, window_strides=(stride, 1), padding="VALID",
        dimension_numbers=("NCHW", "OIHW", "NCHW"), feature_group_count=c_in)
    h = h + dw_b[None, :, None, None]
    h = jax.lax.conv_general_dilated(
        h, pw_w, window_strides=(1, 1), padding="VALID",
        dimension_numbers=("NCHW", "OIHW", "NCHW"))
    h = h + pw_b[None, :, None, None]
    mean = jnp.mean(h, axis=(0, 2, 3), keepdims=True)
    var = jnp.mean((h - mean) ** 2, axis=(0, 2, 3), keepdims=True)
    y = (h - mean) / jnp.sqrt(var + eps)
    return y * gamma[None, :, None, None] + beta[None, :, None, None]


if __name__ == "__main__":
    B, C_IN, C_OUT, F_DIM = 2, 4, 8, 16
    K, STRIDE = 3, 1

    key = jax.random.PRNGKey(0)
    ks = jax.random.split(key, 8)

    # Deterministic synthetic parameters (shapes match the nn.Module's __init__).
    dw_w = 0.3 * jax.random.normal(ks[1], (C_IN, 1, K, K), jnp.float32)
    dw_b = 0.1 * jax.random.normal(ks[2], (C_IN,), jnp.float32)
    pw_w = 0.3 * jax.random.normal(ks[3], (C_OUT, C_IN, 1, 1), jnp.float32)
    pw_b = 0.1 * jax.random.normal(ks[4], (C_OUT,), jnp.float32)
    gamma = 1.0 + 0.1 * jax.random.normal(ks[5], (C_OUT,), jnp.float32)
    beta = 0.1 * jax.random.normal(ks[6], (C_OUT,), jnp.float32)
    params = (dw_w, dw_b, pw_w, pw_b, gamma, beta)

    # Case 1: the module-sized toy shape (single T tile).
    x_small = jax.random.normal(ks[0], (B, C_IN, F_DIM, 16), jnp.float32)
    out = jax.block_until_ready(
        conv_step_forward(x_small, params, kernel_size=K, stride=STRIDE,
                          padding="SAME"))
    ref = ref_conv_step(x_small, params, kernel_size=K, stride=STRIDE,
                        padding="SAME")
    assert out.shape == ref.shape == (B, C_OUT, F_DIM, 16)
    np.testing.assert_allclose(np.asarray(out), np.asarray(ref),
                               atol=2e-2, rtol=2e-2)

    # Case 2: a longer sequence exercising the T grid (3 lane-dense tiles of
    # 128) and the cross-tile halo columns.
    x_long = jax.random.normal(ks[7], (B, C_IN, F_DIM, 384), jnp.float32)
    out2 = jax.block_until_ready(
        conv_step_forward(x_long, params, kernel_size=K, stride=STRIDE,
                          padding="SAME", t_tile=128))
    ref2 = ref_conv_step(x_long, params, kernel_size=K, stride=STRIDE,
                         padding="SAME")
    assert out2.shape == ref2.shape == (B, C_OUT, F_DIM, 384)
    np.testing.assert_allclose(np.asarray(out2), np.asarray(ref2),
                               atol=2e-2, rtol=2e-2)

    print("KERNEL_OK")
</pallas_src>

<mosaic_0001>
module attributes {stable_mosaic.version = 11 : i64} {
  func.func @_bn_apply_kernel(%arg0: i32, %arg1: memref<2x8x16x16xf32, #tpu.memory_space<vmem>>, %arg2: memref<8xf32, #tpu.memory_space<smem>>, %arg3: memref<8xf32, #tpu.memory_space<smem>>, %arg4: memref<2x8x16x16xf32, #tpu.memory_space<vmem>>) attributes {dimension_semantics = [#tpu.dimension_semantics<parallel>], iteration_bounds = array<i64: 1>, scalar_prefetch = 0 : i64, scratch_operands = 0 : i64, tpu.core_type = #tpu.core_type<tc>, window_params = [{transform_indices = @transform_0, window_bounds = array<i64: 2, 8, 16, 16>}, {transform_indices = @transform_1, window_bounds = array<i64: 8>}, {transform_indices = @transform_2, window_bounds = array<i64: 8>}, {transform_indices = @transform_3, window_bounds = array<i64: 2, 8, 16, 16>}]} {
    %c0 = arith.constant 0 : index
    %c0_0 = arith.constant 0 : index
    %c0_1 = arith.constant 0 : index
    %c0_2 = arith.constant 0 : index
    %0 = vector.load %arg1[%c0, %c0_0, %c0_1, %c0_2] : memref<2x8x16x16xf32, #tpu.memory_space<vmem>>, vector<2x1x16x16xf32>
    %1 = vector.shape_cast %0 : vector<2x1x16x16xf32> to vector<2x16x16xf32>
    %c0_3 = arith.constant 0 : index
    %2 = memref.load %arg2[%c0_3] : memref<8xf32, #tpu.memory_space<smem>>
    %3 = vector.broadcast %2 : f32 to vector<2x16x16xf32>
    %4 = arith.mulf %1, %3 : vector<2x16x16xf32>
    %c0_4 = arith.constant 0 : index
    %5 = memref.load %arg3[%c0_4] : memref<8xf32, #tpu.memory_space<smem>>
    %6 = vector.broadcast %5 : f32 to vector<2x16x16xf32>
    %7 = arith.addf %4, %6 : vector<2x16x16xf32>
    %c0_5 = arith.constant 0 : index
    %c0_6 = arith.constant 0 : index
    %c0_7 = arith.constant 0 : index
    %c0_8 = arith.constant 0 : index
    %8 = vector.load %arg4[%c0_5, %c0_6, %c0_7, %c0_8] : memref<2x8x16x16xf32, #tpu.memory_space<vmem>>, vector<2x1x16x16xf32>
    %9 = vector.shape_cast %8 : vector<2x1x16x16xf32> to vector<2x16x16xf32>
    %10 = vector.shape_cast %7 : vector<2x16x16xf32> to vector<2x1x16x16xf32>
    tpu.vector_store %arg4[%c0_5, %c0_6, %c0_7, %c0_8], %10 {strides = array<i32>} : memref<2x8x16x16xf32, #tpu.memory_space<vmem>>, vector<2x1x16x16xf32>,
    %c0_9 = arith.constant 0 : index
    %c1 = arith.constant 1 : index
    %c0_10 = arith.constant 0 : index
    %c0_11 = arith.constant 0 : index
    %11 = vector.load %arg1[%c0_9, %c1, %c0_10, %c0_11] : memref<2x8x16x16xf32, #tpu.memory_space<vmem>>, vector<2x1x16x16xf32>
    %12 = vector.shape_cast %11 : vector<2x1x16x16xf32> to vector<2x16x16xf32>
    %c1_12 = arith.constant 1 : index
    %13 = memref.load %arg2[%c1_12] : memref<8xf32, #tpu.memory_space<smem>>
    %14 = vector.broadcast %13 : f32 to vector<2x16x16xf32>
    %15 = arith.mulf %12, %14 : vector<2x16x16xf32>
    %c1_13 = arith.constant 1 : index
    %16 = memref.load %arg3[%c1_13] : memref<8xf32, #tpu.memory_space<smem>>
    %17 = vector.broadcast %16 : f32 to vector<2x16x16xf32>
    %18 = arith.addf %15, %17 : vector<2x16x16xf32>
    %c0_14 = arith.constant 0 : index
    %c1_15 = arith.constant 1 : index
    %c0_16 = arith.constant 0 : index
    %c0_17 = arith.constant 0 : index
    %19 = vector.load %arg4[%c0_14, %c1_15, %c0_16, %c0_17] : memref<2x8x16x16xf32, #tpu.memory_space<vmem>>, vector<2x1x16x16xf32>
    %20 = vector.shape_cast %19 : vector<2x1x16x16xf32> to vector<2x16x16xf32>
    %21 = vector.shape_cast %18 : vector<2x16x16xf32> to vector<2x1x16x16xf32>
    tpu.vector_store %arg4[%c0_14, %c1_15, %c0_16, %c0_17], %21 {strides = array<i32>} : memref<2x8x16x16xf32, #tpu.memory_space<vmem>>, vector<2x1x16x16xf32>,
    %c0_18 = arith.constant 0 : index
    %c2 = arith.constant 2 : index
    %c0_19 = arith.constant 0 : index
    %c0_20 = arith.constant 0 : index
    %22 = vector.load %arg1[%c0_18, %c2, %c0_19, %c0_20] : memref<2x8x16x16xf32, #tpu.memory_space<vmem>>, vector<2x1x16x16xf32>
    %23 = vector.shape_cast %22 : vector<2x1x16x16xf32> to vector<2x16x16xf32>
    %c2_21 = arith.constant 2 : index
    %24 = memref.load %arg2[%c2_21] : memref<8xf32, #tpu.memory_space<smem>>
    %25 = vector.broadcast %24 : f32 to vector<2x16x16xf32>
    %26 = arith.mulf %23, %25 : vector<2x16x16xf32>
    %c2_22 = arith.constant 2 : index
    %27 = memref.load %arg3[%c2_22] : memref<8xf32, #tpu.memory_space<smem>>
    %28 = vector.broadcast %27 : f32 to vector<2x16x16xf32>
    %29 = arith.addf %26, %28 : vector<2x16x16xf32>
    %c0_23 = arith.constant 0 : index
    %c2_24 = arith.constant 2 : index
    %c0_25 = arith.constant 0 : index
    %c0_26 = arith.constant 0 : index
    %30 = vector.load %arg4[%c0_23, %c2_24, %c0_25, %c0_26] : memref<2x8x16x16xf32, #tpu.memory_space<vmem>>, vector<2x1x16x16xf32>
    %31 = vector.shape_cast %30 : vector<2x1x16x16xf32> to vector<2x16x16xf32>
    %32 = vector.shape_cast %29 : vector<2x16x16xf32> to vector<2x1x16x16xf32>
    tpu.vector_store %arg4[%c0_23, %c2_24, %c0_25, %c0_26], %32 {strides = array<i32>} : memref<2x8x16x16xf32, #tpu.memory_space<vmem>>, vector<2x1x16x16xf32>,
    %c0_27 = arith.constant 0 : index
    %c3 = arith.constant 3 : index
    %c0_28 = arith.constant 0 : index
    %c0_29 = arith.constant 0 : index
    %33 = vector.load %arg1[%c0_27, %c3, %c0_28, %c0_29] : memref<2x8x16x16xf32, #tpu.memory_space<vmem>>, vector<2x1x16x16xf32>
    %34 = vector.shape_cast %33 : vector<2x1x16x16xf32> to vector<2x16x16xf32>
    %c3_30 = arith.constant 3 : index
    %35 = memref.load %arg2[%c3_30] : memref<8xf32, #tpu.memory_space<smem>>
    %36 = vector.broadcast %35 : f32 to vector<2x16x16xf32>
    %37 = arith.mulf %34, %36 : vector<2x16x16xf32>
    %c3_31 = arith.constant 3 : index
    %38 = memref.load %arg3[%c3_31] : memref<8xf32, #tpu.memory_space<smem>>
    %39 = vector.broadcast %38 : f32 to vector<2x16x16xf32>
    %40 = arith.addf %37, %39 : vector<2x16x16xf32>
    %c0_32 = arith.constant 0 : index
    %c3_33 = arith.constant 3 : index
    %c0_34 = arith.constant 0 : index
    %c0_35 = arith.constant 0 : index
    %41 = vector.load %arg4[%c0_32, %c3_33, %c0_34, %c0_35] : memref<2x8x16x16xf32, #tpu.memory_space<vmem>>, vector<2x1x16x16xf32>
    %42 = vector.shape_cast %41 : vector<2x1x16x16xf32> to vector<2x16x16xf32>
    %43 = vector.shape_cast %40 : vector<2x16x16xf32> to vector<2x1x16x16xf32>
    tpu.vector_store %arg4[%c0_32, %c3_33, %c0_34, %c0_35], %43 {strides = array<i32>} : memref<2x8x16x16xf32, #tpu.memory_space<vmem>>, vector<2x1x16x16xf32>,
    %c0_36 = arith.constant 0 : index
    %c4 = arith.constant 4 : index
    %c0_37 = arith.constant 0 : index
    %c0_38 = arith.constant 0 : index
    %44 = vector.load %arg1[%c0_36, %c4, %c0_37, %c0_38] : memref<2x8x16x16xf32, #tpu.memory_space<vmem>>, vector<2x1x16x16xf32>
    %45 = vector.shape_cast %44 : vector<2x1x16x16xf32> to vector<2x16x16xf32>
    %c4_39 = arith.constant 4 : index
    %46 = memref.load %arg2[%c4_39] : memref<8xf32, #tpu.memory_space<smem>>
    %47 = vector.broadcast %46 : f32 to vector<2x16x16xf32>
    %48 = arith.mulf %45, %47 : vector<2x16x16xf32>
    %c4_40 = arith.constant 4 : index
    %49 = memref.load %arg3[%c4_40] : memref<8xf32, #tpu.memory_space<smem>>
    %50 = vector.broadcast %49 : f32 to vector<2x16x16xf32>
    %51 = arith.addf %48, %50 : vector<2x16x16xf32>
    %c0_41 = arith.constant 0 : index
    %c4_42 = arith.constant 4 : index
    %c0_43 = arith.constant 0 : index
    %c0_44 = arith.constant 0 : index
    %52 = vector.load %arg4[%c0_41, %c4_42, %c0_43, %c0_44] : memref<2x8x16x16xf32, #tpu.memory_space<vmem>>, vector<2x1x16x16xf32>
    %53 = vector.shape_cast %52 : vector<2x1x16x16xf32> to vector<2x16x16xf32>
    %54 = vector.shape_cast %51 : vector<2x16x16xf32> to vector<2x1x16x16xf32>
    tpu.vector_store %arg4[%c0_41, %c4_42, %c0_43, %c0_44], %54 {strides = array<i32>} : memref<2x8x16x16xf32, #tpu.memory_space<vmem>>, vector<2x1x16x16xf32>,
    %c0_45 = arith.constant 0 : index
    %c5 = arith.constant 5 : index
    %c0_46 = arith.constant 0 : index
    %c0_47 = arith.constant 0 : index
    %55 = vector.load %arg1[%c0_45, %c5, %c0_46, %c0_47] : memref<2x8x16x16xf32, #tpu.memory_space<vmem>>, vector<2x1x16x16xf32>
    %56 = vector.shape_cast %55 : vector<2x1x16x16xf32> to vector<2x16x16xf32>
    %c5_48 = arith.constant 5 : index
    %57 = memref.load %arg2[%c5_48] : memref<8xf32, #tpu.memory_space<smem>>
    %58 = vector.broadcast %57 : f32 to vector<2x16x16xf32>
    %59 = arith.mulf %56, %58 : vector<2x16x16xf32>
    %c5_49 = arith.constant 5 : index
    %60 = memref.load %arg3[%c5_49] : memref<8xf32, #tpu.memory_space<smem>>
    %61 = vector.broadcast %60 : f32 to vector<2x16x16xf32>
    %62 = arith.addf %59, %61 : vector<2x16x16xf32>
    %c0_50 = arith.constant 0 : index
    %c5_51 = arith.constant 5 : index
    %c0_52 = arith.constant 0 : index
    %c0_53 = arith.constant 0 : index
    %63 = vector.load %arg4[%c0_50, %c5_51, %c0_52, %c0_53] : memref<2x8x16x16xf32, #tpu.memory_space<vmem>>, vector<2x1x16x16xf32>
    %64 = vector.shape_cast %63 : vector<2x1x16x16xf32> to vector<2x16x16xf32>
    %65 = vector.shape_cast %62 : vector<2x16x16xf32> to vector<2x1x16x16xf32>
    tpu.vector_store %arg4[%c0_50, %c5_51, %c0_52, %c0_53], %65 {strides = array<i32>} : memref<2x8x16x16xf32, #tpu.memory_space<vmem>>, vector<2x1x16x16xf32>,
    %c0_54 = arith.constant 0 : index
    %c6 = arith.constant 6 : index
    %c0_55 = arith.constant 0 : index
    %c0_56 = arith.constant 0 : index
    %66 = vector.load %arg1[%c0_54, %c6, %c0_55, %c0_56] : memref<2x8x16x16xf32, #tpu.memory_space<vmem>>, vector<2x1x16x16xf32>
    %67 = vector.shape_cast %66 : vector<2x1x16x16xf32> to vector<2x16x16xf32>
    %c6_57 = arith.constant 6 : index
    %68 = memref.load %arg2[%c6_57] : memref<8xf32, #tpu.memory_space<smem>>
    %69 = vector.broadcast %68 : f32 to vector<2x16x16xf32>
    %70 = arith.mulf %67, %69 : vector<2x16x16xf32>
    %c6_58 = arith.constant 6 : index
    %71 = memref.load %arg3[%c6_58] : memref<8xf32, #tpu.memory_space<smem>>
    %72 = vector.broadcast %71 : f32 to vector<2x16x16xf32>
    %73 = arith.addf %70, %72 : vector<2x16x16xf32>
    %c0_59 = arith.constant 0 : index
    %c6_60 = arith.constant 6 : index
    %c0_61 = arith.constant 0 : index
    %c0_62 = arith.constant 0 : index
    %74 = vector.load %arg4[%c0_59, %c6_60, %c0_61, %c0_62] : memref<2x8x16x16xf32, #tpu.memory_space<vmem>>, vector<2x1x16x16xf32>
    %75 = vector.shape_cast %74 : vector<2x1x16x16xf32> to vector<2x16x16xf32>
    %76 = vector.shape_cast %73 : vector<2x16x16xf32> to vector<2x1x16x16xf32>
    tpu.vector_store %arg4[%c0_59, %c6_60, %c0_61, %c0_62], %76 {strides = array<i32>} : memref<2x8x16x16xf32, #tpu.memory_space<vmem>>, vector<2x1x16x16xf32>,
    %c0_63 = arith.constant 0 : index
    %c7 = arith.constant 7 : index
    %c0_64 = arith.constant 0 : index
    %c0_65 = arith.constant 0 : index
    %77 = vector.load %arg1[%c0_63, %c7, %c0_64, %c0_65] : memref<2x8x16x16xf32, #tpu.memory_space<vmem>>, vector<2x1x16x16xf32>
    %78 = vector.shape_cast %77 : vector<2x1x16x16xf32> to vector<2x16x16xf32>
    %c7_66 = arith.constant 7 : index
    %79 = memref.load %arg2[%c7_66] : memref<8xf32, #tpu.memory_space<smem>>
    %80 = vector.broadcast %79 : f32 to vector<2x16x16xf32>
    %81 = arith.mulf %78, %80 : vector<2x16x16xf32>
    %c7_67 = arith.constant 7 : index
    %82 = memref.load %arg3[%c7_67] : memref<8xf32, #tpu.memory_space<smem>>
    %83 = vector.broadcast %82 : f32 to vector<2x16x16xf32>
    %84 = arith.addf %81, %83 : vector<2x16x16xf32>
    %c0_68 = arith.constant 0 : index
    %c7_69 = arith.constant 7 : index
    %c0_70 = arith.constant 0 : index
    %c0_71 = arith.constant 0 : index
    %85 = vector.load %arg4[%c0_68, %c7_69, %c0_70, %c0_71] : memref<2x8x16x16xf32, #tpu.memory_space<vmem>>, vector<2x1x16x16xf32>
    %86 = vector.shape_cast %85 : vector<2x1x16x16xf32> to vector<2x16x16xf32>
    %87 = vector.shape_cast %84 : vector<2x16x16xf32> to vector<2x1x16x16xf32>
    tpu.vector_store %arg4[%c0_68, %c7_69, %c0_70, %c0_71], %87 {strides = array<i32>} : memref<2x8x16x16xf32, #tpu.memory_space<vmem>>, vector<2x1x16x16xf32>,
    return
  }
  func.func @transform_0(%arg0: i32) -> (i32, i32, i32, i32) {
    %c0_i32 = arith.constant 0 : i32
    %c0_i32_0 = arith.constant 0 : i32
    %c0_i32_1 = arith.constant 0 : i32
    %c0_i32_2 = arith.constant 0 : i32
    return %c0_i32, %c0_i32_0, %c0_i32_1, %arg0 : i32, i32, i32, i32
  }
  func.func @transform_1(%arg0: i32) -> i32 {
    %c0_i32 = arith.constant 0 : i32
    %c0_i32_0 = arith.constant 0 : i32
    return %c0_i32 : i32
  }
  func.func @transform_2(%arg0: i32) -> i32 {
    %c0_i32 = arith.constant 0 : i32
    %c0_i32_0 = arith.constant 0 : i32
    return %c0_i32 : i32
  }
  func.func @transform_3(%arg0: i32) -> (i32, i32, i32, i32) {
    %c0_i32 = arith.constant 0 : i32
    %c0_i32_0 = arith.constant 0 : i32
    %c0_i32_1 = arith.constant 0 : i32
    %c0_i32_2 = arith.constant 0 : i32
    return %c0_i32, %c0_i32_0, %c0_i32_1, %arg0 : i32, i32, i32, i32
  }
}

module attributes {stable_mosaic.version = 11 : i64} {
  func.func @_sepconv_stats_kernel(%arg0: i32, %arg1: memref<2x4x16x16xf32, #tpu.memory_space<vmem>>, %arg2: memref<1x8x16x2xf32, #tpu.memory_space<vmem>>, %arg3: memref<4x9xf32, #tpu.memory_space<smem>>, %arg4: memref<8x4xf32, #tpu.memory_space<smem>>, %arg5: memref<2x8x16x16xf32, #tpu.memory_space<vmem>>, %arg6: memref<1x2x8x16xf32, #tpu.memory_space<vmem>>) attributes {dimension_semantics = [#tpu.dimension_semantics<parallel>], iteration_bounds = array<i64: 1>, scalar_prefetch = 0 : i64, scratch_operands = 0 : i64, tpu.core_type = #tpu.core_type<tc>, window_params = [{transform_indices = @transform_0, window_bounds = array<i64: 2, 4, 16, 16>}, {transform_indices = @transform_1, window_bounds = array<i64: 1, 8, 16, 2>}, {transform_indices = @transform_2, window_bounds = array<i64: 4, 9>}, {transform_indices = @transform_3, window_bounds = array<i64: 8, 4>}, {transform_indices = @transform_4, window_bounds = array<i64: 2, 8, 16, 16>}, {transform_indices = @transform_5, window_bounds = array<i64: 1, 2, 8, 16>}]} {
    %0 = tpu.iota {dimensions = array<i32: 2>} : vector<1x1x16xi32>
    %1 = tpu.iota {dimensions = array<i32: 1>} : vector<1x16x1xi32>
    %c0_i32 = arith.constant 0 : i32
    %2 = vector.broadcast %c0_i32 : i32 to vector<1x1x16xi32>
    %3 = arith.cmpi eq, %0, %2 : vector<1x1x16xi32>
    %c15_i32 = arith.constant 15 : i32
    %4 = vector.broadcast %c15_i32 : i32 to vector<1x1x16xi32>
    %5 = arith.cmpi eq, %0, %4 : vector<1x1x16xi32>
    %c1_i32 = arith.constant 1 : i32
    %6 = vector.broadcast %c1_i32 : i32 to vector<1x16x1xi32>
    %7 = arith.cmpi sge, %1, %6 : vector<1x16x1xi32>
    %c16_i32 = arith.constant 16 : i32
    %8 = vector.broadcast %c16_i32 : i32 to vector<1x16x1xi32>
    %9 = arith.cmpi sle, %1, %8 : vector<1x16x1xi32>
    %10 = arith.andi %7, %9 : vector<1x16x1xi1>
    %c-1_i32 = arith.constant -1 : i32
    %11 = vector.broadcast %c-1_i32 : i32 to vector<1x16x1xi32>
    %12 = arith.cmpi sge, %1, %11 : vector<1x16x1xi32>
    %c14_i32 = arith.constant 14 : i32
    %13 = vector.broadcast %c14_i32 : i32 to vector<1x16x1xi32>
    %14 = arith.cmpi sle, %1, %13 : vector<1x16x1xi32>
    %15 = arith.andi %12, %14 : vector<1x16x1xi1>
    %c0 = arith.constant 0 : index
    %c0_0 = arith.constant 0 : index
    %c0_1 = arith.constant 0 : index
    %c0_2 = arith.constant 0 : index
    %16 = vector.load %arg1[%c0, %c0_0, %c0_1, %c0_2] : memref<2x4x16x16xf32, #tpu.memory_space<vmem>>, vector<2x1x16x16xf32>
    %17 = vector.shape_cast %16 : vector<2x1x16x16xf32> to vector<2x16x16xf32>
    %cst = arith.constant 0.000000e+00 : f32
    %18 = vector.broadcast %cst : f32 to vector<2x16x16xf32>
    %19 = arith.maximumf %17, %18 : vector<2x16x16xf32>
    %c0_3 = arith.constant 0 : index
    %c0_4 = arith.constant 0 : index
    %c0_5 = arith.constant 0 : index
    %c0_6 = arith.constant 0 : index
    %20 = vector.load %arg2[%c0_3, %c0_4, %c0_5, %c0_6] : memref<1x8x16x2xf32, #tpu.memory_space<vmem>>, vector<1x2x16x2xf32>
    %21 = vector.shape_cast %20 : vector<1x2x16x2xf32> to vector<2x16x2xf32>
    %cst_7 = arith.constant 0.000000e+00 : f32
    %22 = vector.broadcast %cst_7 : f32 to vector<2x16x2xf32>
    %23 = arith.maximumf %21, %22 : vector<2x16x2xf32>
    %c1_i32_8 = arith.constant 1 : i32
    %24 = tpu.dynamic_rotate %19 by %c1_i32_8 dim 1 : vector<2x16x16xf32>, i32 -> vector<2x16x16xf32>
    %cst_9 = arith.constant 0.000000e+00 : f32
    %25 = vector.shape_cast %10 : vector<1x16x1xi1> to vector<1x16x1xi1>
    %26 = vector.broadcast %25 : vector<1x16x1xi1> to vector<2x16x16xi1>
    %27 = vector.broadcast %cst_9 : f32 to vector<2x16x16xf32>
    %28 = arith.select %26, %24, %27 : vector<2x16x16xi1>, vector<2x16x16xf32>
    %c1_i32_10 = arith.constant 1 : i32
    %29 = tpu.dynamic_rotate %23 by %c1_i32_10 dim 1 : vector<2x16x2xf32>, i32 -> vector<2x16x2xf32>
    %cst_11 = arith.constant 0.000000e+00 : f32
    %30 = vector.shape_cast %10 : vector<1x16x1xi1> to vector<1x16x1xi1>
    %31 = vector.broadcast %30 : vector<1x16x1xi1> to vector<2x16x2xi1>
    %32 = vector.broadcast %cst_11 : f32 to vector<2x16x2xf32>
    %33 = arith.select %31, %29, %32 : vector<2x16x2xi1>, vector<2x16x2xf32>
    %34 = vector.extract_strided_slice %33 {offsets = [0, 0, 0], sizes = [2, 16, 1], strides = [1, 1, 1]} : vector<2x16x2xf32> to vector<2x16x1xf32>
    %35 = vector.extract_strided_slice %33 {offsets = [0, 0, 1], sizes = [2, 16, 1], strides = [1, 1, 1]} : vector<2x16x2xf32> to vector<2x16x1xf32>
    %c1_i32_12 = arith.constant 1 : i32
    %36 = tpu.dynamic_rotate %28 by %c1_i32_12 dim 2 : vector<2x16x16xf32>, i32 -> vector<2x16x16xf32>
    %37 = vector.shape_cast %3 : vector<1x1x16xi1> to vector<1x1x16xi1>
    %38 = vector.broadcast %37 : vector<1x1x16xi1> to vector<2x16x16xi1>
    %39 = vector.shape_cast %34 : vector<2x16x1xf32> to vector<2x16x1xf32>
    %40 = vector.broadcast %39 : vector<2x16x1xf32> to vector<2x16x16xf32>
    %41 = arith.select %38, %40, %36 : vector<2x16x16xi1>, vector<2x16x16xf32>
    %c0_13 = arith.constant 0 : index
    %c0_14 = arith.constant 0 : index
    %42 = memref.load %arg3[%c0_13, %c0_14] : memref<4x9xf32, #tpu.memory_space<smem>>
    %43 = vector.broadcast %42 : f32 to vector<2x16x16xf32>
    %44 = arith.mulf %41, %43 : vector<2x16x16xf32>
    %c0_15 = arith.constant 0 : index
    %c1 = arith.constant 1 : index
    %45 = memref.load %arg3[%c0_15, %c1] : memref<4x9xf32, #tpu.memory_space<smem>>
    %46 = vector.broadcast %45 : f32 to vector<2x16x16xf32>
    %47 = arith.mulf %28, %46 : vector<2x16x16xf32>
    %48 = arith.addf %44, %47 : vector<2x16x16xf32>
    %c15_i32_16 = arith.constant 15 : i32
    %49 = tpu.dynamic_rotate %28 by %c15_i32_16 dim 2 : vector<2x16x16xf32>, i32 -> vector<2x16x16xf32>
    %50 = vector.shape_cast %5 : vector<1x1x16xi1> to vector<1x1x16xi1>
    %51 = vector.broadcast %50 : vector<1x1x16xi1> to vector<2x16x16xi1>
    %52 = vector.shape_cast %35 : vector<2x16x1xf32> to vector<2x16x1xf32>
    %53 = vector.broadcast %52 : vector<2x16x1xf32> to vector<2x16x16xf32>
    %54 = arith.select %51, %53, %49 : vector<2x16x16xi1>, vector<2x16x16xf32>
    %c0_17 = arith.constant 0 : index
    %c2 = arith.constant 2 : index
    %55 = memref.load %arg3[%c0_17, %c2] : memref<4x9xf32, #tpu.memory_space<smem>>
    %56 = vector.broadcast %55 : f32 to vector<2x16x16xf32>
    %57 = arith.mulf %54, %56 : vector<2x16x16xf32>
    %58 = arith.addf %48, %57 : vector<2x16x16xf32>
    %59 = vector.extract_strided_slice %23 {offsets = [0, 0, 0], sizes = [2, 16, 1], strides = [1, 1, 1]} : vector<2x16x2xf32> to vector<2x16x1xf32>
    %60 = vector.extract_strided_slice %23 {offsets = [0, 0, 1], sizes = [2, 16, 1], strides = [1, 1, 1]} : vector<2x16x2xf32> to vector<2x16x1xf32>
    %c1_i32_18 = arith.constant 1 : i32
    %61 = tpu.dynamic_rotate %19 by %c1_i32_18 dim 2 : vector<2x16x16xf32>, i32 -> vector<2x16x16xf32>
    %62 = vector.shape_cast %3 : vector<1x1x16xi1> to vector<1x1x16xi1>
    %63 = vector.broadcast %62 : vector<1x1x16xi1> to vector<2x16x16xi1>
    %64 = vector.shape_cast %59 : vector<2x16x1xf32> to vector<2x16x1xf32>
    %65 = vector.broadcast %64 : vector<2x16x1xf32> to vector<2x16x16xf32>
    %66 = arith.select %63, %65, %61 : vector<2x16x16xi1>, vector<2x16x16xf32>
    %c0_19 = arith.constant 0 : index
    %c3 = arith.constant 3 : index
    %67 = memref.load %arg3[%c0_19, %c3] : memref<4x9xf32, #tpu.memory_space<smem>>
    %68 = vector.broadcast %67 : f32 to vector<2x16x16xf32>
    %69 = arith.mulf %66, %68 : vector<2x16x16xf32>
    %70 = arith.addf %58, %69 : vector<2x16x16xf32>
    %c0_20 = arith.constant 0 : index
    %c4 = arith.constant 4 : index
    %71 = memref.load %arg3[%c0_20, %c4] : memref<4x9xf32, #tpu.memory_space<smem>>
    %72 = vector.broadcast %71 : f32 to vector<2x16x16xf32>
    %73 = arith.mulf %19, %72 : vector<2x16x16xf32>
    %74 = arith.addf %70, %73 : vector<2x16x16xf32>
    %c15_i32_21 = arith.constant 15 : i32
    %75 = tpu.dynamic_rotate %19 by %c15_i32_21 dim 2 : vector<2x16x16xf32>, i32 -> vector<2x16x16xf32>
    %76 = vector.shape_cast %5 : vector<1x1x16xi1> to vector<1x1x16xi1>
    %77 = vector.broadcast %76 : vector<1x1x16xi1> to vector<2x16x16xi1>
    %78 = vector.shape_cast %60 : vector<2x16x1xf32> to vector<2x16x1xf32>
    %79 = vector.broadcast %78 : vector<2x16x1xf32> to vector<2x16x16xf32>
    %80 = arith.select %77, %79, %75 : vector<2x16x16xi1>, vector<2x16x16xf32>
    %c0_22 = arith.constant 0 : index
    %c5 = arith.constant 5 : index
    %81 = memref.load %arg3[%c0_22, %c5] : memref<4x9xf32, #tpu.memory_space<smem>>
    %82 = vector.broadcast %81 : f32 to vector<2x16x16xf32>
    %83 = arith.mulf %80, %82 : vector<2x16x16xf32>
    %84 = arith.addf %74, %83 : vector<2x16x16xf32>
    %c15_i32_23 = arith.constant 15 : i32
    %85 = tpu.dynamic_rotate %19 by %c15_i32_23 dim 1 : vector<2x16x16xf32>, i32 -> vector<2x16x16xf32>
    %cst_24 = arith.constant 0.000000e+00 : f32
    %86 = vector.shape_cast %15 : vector<1x16x1xi1> to vector<1x16x1xi1>
    %87 = vector.broadcast %86 : vector<1x16x1xi1> to vector<2x16x16xi1>
    %88 = vector.broadcast %cst_24 : f32 to vector<2x16x16xf32>
    %89 = arith.select %87, %85, %88 : vector<2x16x16xi1>, vector<2x16x16xf32>
    %c15_i32_25 = arith.constant 15 : i32
    %90 = tpu.dynamic_rotate %23 by %c15_i32_25 dim 1 : vector<2x16x2xf32>, i32 -> vector<2x16x2xf32>
    %cst_26 = arith.constant 0.000000e+00 : f32
    %91 = vector.shape_cast %15 : vector<1x16x1xi1> to vector<1x16x1xi1>
    %92 = vector.broadcast %91 : vector<1x16x1xi1> to vector<2x16x2xi1>
    %93 = vector.broadcast %cst_26 : f32 to vector<2x16x2xf32>
    %94 = arith.select %92, %90, %93 : vector<2x16x2xi1>, vector<2x16x2xf32>
    %95 = vector.extract_strided_slice %94 {offsets = [0, 0, 0], sizes = [2, 16, 1], strides = [1, 1, 1]} : vector<2x16x2xf32> to vector<2x16x1xf32>
    %96 = vector.extract_strided_slice %94 {offsets = [0, 0, 1], sizes = [2, 16, 1], strides = [1, 1, 1]} : vector<2x16x2xf32> to vector<2x16x1xf32>
    %c1_i32_27 = arith.constant 1 : i32
    %97 = tpu.dynamic_rotate %89 by %c1_i32_27 dim 2 : vector<2x16x16xf32>, i32 -> vector<2x16x16xf32>
    %98 = vector.shape_cast %3 : vector<1x1x16xi1> to vector<1x1x16xi1>
    %99 = vector.broadcast %98 : vector<1x1x16xi1> to vector<2x16x16xi1>
    %100 = vector.shape_cast %95 : vector<2x16x1xf32> to vector<2x16x1xf32>
    %101 = vector.broadcast %100 : vector<2x16x1xf32> to vector<2x16x16xf32>
    %102 = arith.select %99, %101, %97 : vector<2x16x16xi1>, vector<2x16x16xf32>
    %c0_28 = arith.constant 0 : index
    %c6 = arith.constant 6 : index
    %103 = memref.load %arg3[%c0_28, %c6] : memref<4x9xf32, #tpu.memory_space<smem>>
    %104 = vector.broadcast %103 : f32 to vector<2x16x16xf32>
    %105 = arith.mulf %102, %104 : vector<2x16x16xf32>
    %106 = arith.addf %84, %105 : vector<2x16x16xf32>
    %c0_29 = arith.constant 0 : index
    %c7 = arith.constant 7 : index
    %107 = memref.load %arg3[%c0_29, %c7] : memref<4x9xf32, #tpu.memory_space<smem>>
    %108 = vector.broadcast %107 : f32 to vector<2x16x16xf32>
    %109 = arith.mulf %89, %108 : vector<2x16x16xf32>
    %110 = arith.addf %106, %109 : vector<2x16x16xf32>
    %c15_i32_30 = arith.constant 15 : i32
    %111 = tpu.dynamic_rotate %89 by %c15_i32_30 dim 2 : vector<2x16x16xf32>, i32 -> vector<2x16x16xf32>
    %112 = vector.shape_cast %5 : vector<1x1x16xi1> to vector<1x1x16xi1>
    %113 = vector.broadcast %112 : vector<1x1x16xi1> to vector<2x16x16xi1>
    %114 = vector.shape_cast %96 : vector<2x16x1xf32> to vector<2x16x1xf32>
    %115 = vector.broadcast %114 : vector<2x16x1xf32> to vector<2x16x16xf32>
    %116 = arith.select %113, %115, %111 : vector<2x16x16xi1>, vector<2x16x16xf32>
    %c0_31 = arith.constant 0 : index
    %c8 = arith.constant 8 : index
    %117 = memref.load %arg3[%c0_31, %c8] : memref<4x9xf32, #tpu.memory_space<smem>>
    %118 = vector.broadcast %117 : f32 to vector<2x16x16xf32>
    %119 = arith.mulf %116, %118 : vector<2x16x16xf32>
    %120 = arith.addf %110, %119 : vector<2x16x16xf32>
    %c0_32 = arith.constant 0 : index
    %c1_33 = arith.constant 1 : index
    %c0_34 = arith.constant 0 : index
    %c0_35 = arith.constant 0 : index
    %121 = vector.load %arg1[%c0_32, %c1_33, %c0_34, %c0_35] : memref<2x4x16x16xf32, #tpu.memory_space<vmem>>, vector<2x1x16x16xf32>
    %122 = vector.shape_cast %121 : vector<2x1x16x16xf32> to vector<2x16x16xf32>
    %cst_36 = arith.constant 0.000000e+00 : f32
    %123 = vector.broadcast %cst_36 : f32 to vector<2x16x16xf32>
    %124 = arith.maximumf %122, %123 : vector<2x16x16xf32>
    %c0_37 = arith.constant 0 : index
    %c2_38 = arith.constant 2 : index
    %c0_39 = arith.constant 0 : index
    %c0_40 = arith.constant 0 : index
    %125 = vector.load %arg2[%c0_37, %c2_38, %c0_39, %c0_40] : memref<1x8x16x2xf32, #tpu.memory_space<vmem>>, vector<1x2x16x2xf32>
    %126 = vector.shape_cast %125 : vector<1x2x16x2xf32> to vector<2x16x2xf32>
    %cst_41 = arith.constant 0.000000e+00 : f32
    %127 = vector.broadcast %cst_41 : f32 to vector<2x16x2xf32>
    %128 = arith.maximumf %126, %127 : vector<2x16x2xf32>
    %c1_i32_42 = arith.constant 1 : i32
    %129 = tpu.dynamic_rotate %124 by %c1_i32_42 dim 1 : vector<2x16x16xf32>, i32 -> vector<2x16x16xf32>
    %cst_43 = arith.constant 0.000000e+00 : f32
    %130 = vector.shape_cast %10 : vector<1x16x1xi1> to vector<1x16x1xi1>
    %131 = vector.broadcast %130 : vector<1x16x1xi1> to vector<2x16x16xi1>
    %132 = vector.broadcast %cst_43 : f32 to vector<2x16x16xf32>
    %133 = arith.select %131, %129, %132 : vector<2x16x16xi1>, vector<2x16x16xf32>
    %c1_i32_44 = arith.constant 1 : i32
    %134 = tpu.dynamic_rotate %128 by %c1_i32_44 dim 1 : vector<2x16x2xf32>, i32 -> vector<2x16x2xf32>
    %cst_45 = arith.constant 0.000000e+00 : f32
    %135 = vector.shape_cast %10 : vector<1x16x1xi1> to vector<1x16x1xi1>
    %136 = vector.broadcast %135 : vector<1x16x1xi1> to vector<2x16x2xi1>
    %137 = vector.broadcast %cst_45 : f32 to vector<2x16x2xf32>
    %138 = arith.select %136, %134, %137 : vector<2x16x2xi1>, vector<2x16x2xf32>
    %139 = vector.extract_strided_slice %138 {offsets = [0, 0, 0], sizes = [2, 16, 1], strides = [1, 1, 1]} : vector<2x16x2xf32> to vector<2x16x1xf32>
    %140 = vector.extract_strided_slice %138 {offsets = [0, 0, 1], sizes = [2, 16, 1], strides = [1, 1, 1]} : vector<2x16x2xf32> to vector<2x16x1xf32>
    %c1_i32_46 = arith.constant 1 : i32
    %141 = tpu.dynamic_rotate %133 by %c1_i32_46 dim 2 : vector<2x16x16xf32>, i32 -> vector<2x16x16xf32>
    %142 = vector.shape_cast %3 : vector<1x1x16xi1> to vector<1x1x16xi1>
    %143 = vector.broadcast %142 : vector<1x1x16xi1> to vector<2x16x16xi1>
    %144 = vector.shape_cast %139 : vector<2x16x1xf32> to vector<2x16x1xf32>
    %145 = vector.broadcast %144 : vector<2x16x1xf32> to vector<2x16x16xf32>
    %146 = arith.select %143, %145, %141 : vector<2x16x16xi1>, vector<2x16x16xf32>
    %c1_47 = arith.constant 1 : index
    %c0_48 = arith.constant 0 : index
    %147 = memref.load %arg3[%c1_47, %c0_48] : memref<4x9xf32, #tpu.memory_space<smem>>
    %148 = vector.broadcast %147 : f32 to vector<2x16x16xf32>
    %149 = arith.mulf %146, %148 : vector<2x16x16xf32>
    %c1_49 = arith.constant 1 : index
    %c1_50 = arith.constant 1 : index
    %150 = memref.load %arg3[%c1_49, %c1_50] : memref<4x9xf32, #tpu.memory_space<smem>>
    %151 = vector.broadcast %150 : f32 to vector<2x16x16xf32>
    %152 = arith.mulf %133, %151 : vector<2x16x16xf32>
    %153 = arith.addf %149, %152 : vector<2x16x16xf32>
    %c15_i32_51 = arith.constant 15 : i32
    %154 = tpu.dynamic_rotate %133 by %c15_i32_51 dim 2 : vector<2x16x16xf32>, i32 -> vector<2x16x16xf32>
    %155 = vector.shape_cast %5 : vector<1x1x16xi1> to vector<1x1x16xi1>
    %156 = vector.broadcast %155 : vector<1x1x16xi1> to vector<2x16x16xi1>
    %157 = vector.shape_cast %140 : vector<2x16x1xf32> to vector<2x16x1xf32>
    %158 = vector.broadcast %157 : vector<2x16x1xf32> to vector<2x16x16xf32>
    %159 = arith.select %156, %158, %154 : vector<2x16x16xi1>, vector<2x16x16xf32>
    %c1_52 = arith.constant 1 : index
    %c2_53 = arith.constant 2 : index
    %160 = memref.load %arg3[%c1_52, %c2_53] : memref<4x9xf32, #tpu.memory_space<smem>>
    %161 = vector.broadcast %160 : f32 to vector<2x16x16xf32>
    %162 = arith.mulf %159, %161 : vector<2x16x16xf32>
    %163 = arith.addf %153, %162 : vector<2x16x16xf32>
    %164 = vector.extract_strided_slice %128 {offsets = [0, 0, 0], sizes = [2, 16, 1], strides = [1, 1, 1]} : vector<2x16x2xf32> to vector<2x16x1xf32>
    %165 = vector.extract_strided_slice %128 {offsets = [0, 0, 1], sizes = [2, 16, 1], strides = [1, 1, 1]} : vector<2x16x2xf32> to vector<2x16x1xf32>
    %c1_i32_54 = arith.constant 1 : i32
    %166 = tpu.dynamic_rotate %124 by %c1_i32_54 dim 2 : vector<2x16x16xf32>, i32 -> vector<2x16x16xf32>
    %167 = vector.shape_cast %3 : vector<1x1x16xi1> to vector<1x1x16xi1>
    %168 = vector.broadcast %167 : vector<1x1x16xi1> to vector<2x16x16xi1>
    %169 = vector.shape_cast %164 : vector<2x16x1xf32> to vector<2x16x1xf32>
    %170 = vector.broadcast %169 : vector<2x16x1xf32> to vector<2x16x16xf32>
    %171 = arith.select %168, %170, %166 : vector<2x16x16xi1>, vector<2x16x16xf32>
    %c1_55 = arith.constant 1 : index
    %c3_56 = arith.constant 3 : index
    %172 = memref.load %arg3[%c1_55, %c3_56] : memref<4x9xf32, #tpu.memory_space<smem>>
    %173 = vector.broadcast %172 : f32 to vector<2x16x16xf32>
    %174 = arith.mulf %171, %173 : vector<2x16x16xf32>
    %175 = arith.addf %163, %174 : vector<2x16x16xf32>
    %c1_57 = arith.constant 1 : index
    %c4_58 = arith.constant 4 : index
    %176 = memref.load %arg3[%c1_57, %c4_58] : memref<4x9xf32, #tpu.memory_space<smem>>
    %177 = vector.broadcast %176 : f32 to vector<2x16x16xf32>
    %178 = arith.mulf %124, %177 : vector<2x16x16xf32>
    %179 = arith.addf %175, %178 : vector<2x16x16xf32>
    %c15_i32_59 = arith.constant 15 : i32
    %180 = tpu.dynamic_rotate %124 by %c15_i32_59 dim 2 : vector<2x16x16xf32>, i32 -> vector<2x16x16xf32>
    %181 = vector.shape_cast %5 : vector<1x1x16xi1> to vector<1x1x16xi1>
    %182 = vector.broadcast %181 : vector<1x1x16xi1> to vector<2x16x16xi1>
    %183 = vector.shape_cast %165 : vector<2x16x1xf32> to vector<2x16x1xf32>
    %184 = vector.broadcast %183 : vector<2x16x1xf32> to vector<2x16x16xf32>
    %185 = arith.select %182, %184, %180 : vector<2x16x16xi1>, vector<2x16x16xf32>
    %c1_60 = arith.constant 1 : index
    %c5_61 = arith.constant 5 : index
    %186 = memref.load %arg3[%c1_60, %c5_61] : memref<4x9xf32, #tpu.memory_space<smem>>
    %187 = vector.broadcast %186 : f32 to vector<2x16x16xf32>
    %188 = arith.mulf %185, %187 : vector<2x16x16xf32>
    %189 = arith.addf %179, %188 : vector<2x16x16xf32>
    %c15_i32_62 = arith.constant 15 : i32
    %190 = tpu.dynamic_rotate %124 by %c15_i32_62 dim 1 : vector<2x16x16xf32>, i32 -> vector<2x16x16xf32>
    %cst_63 = arith.constant 0.000000e+00 : f32
    %191 = vector.shape_cast %15 : vector<1x16x1xi1> to vector<1x16x1xi1>
    %192 = vector.broadcast %191 : vector<1x16x1xi1> to vector<2x16x16xi1>
    %193 = vector.broadcast %cst_63 : f32 to vector<2x16x16xf32>
    %194 = arith.select %192, %190, %193 : vector<2x16x16xi1>, vector<2x16x16xf32>
    %c15_i32_64 = arith.constant 15 : i32
    %195 = tpu.dynamic_rotate %128 by %c15_i32_64 dim 1 : vector<2x16x2xf32>, i32 -> vector<2x16x2xf32>
    %cst_65 = arith.constant 0.000000e+00 : f32
    %196 = vector.shape_cast %15 : vector<1x16x1xi1> to vector<1x16x1xi1>
    %197 = vector.broadcast %196 : vector<1x16x1xi1> to vector<2x16x2xi1>
    %198 = vector.broadcast %cst_65 : f32 to vector<2x16x2xf32>
    %199 = arith.select %197, %195, %198 : vector<2x16x2xi1>, vector<2x16x2xf32>
    %200 = vector.extract_strided_slice %199 {offsets = [0, 0, 0], sizes = [2, 16, 1], strides = [1, 1, 1]} : vector<2x16x2xf32> to vector<2x16x1xf32>
    %201 = vector.extract_strided_slice %199 {offsets = [0, 0, 1], sizes = [2, 16, 1], strides = [1, 1, 1]} : vector<2x16x2xf32> to vector<2x16x1xf32>
    %c1_i32_66 = arith.constant 1 : i32
    %202 = tpu.dynamic_rotate %194 by %c1_i32_66 dim 2 : vector<2x16x16xf32>, i32 -> vector<2x16x16xf32>
    %203 = vector.shape_cast %3 : vector<1x1x16xi1> to vector<1x1x16xi1>
    %204 = vector.broadcast %203 : vector<1x1x16xi1> to vector<2x16x16xi1>
    %205 = vector.shape_cast %200 : vector<2x16x1xf32> to vector<2x16x1xf32>
    %206 = vector.broadcast %205 : vector<2x16x1xf32> to vector<2x16x16xf32>
    %207 = arith.select %204, %206, %202 : vector<2x16x16xi1>, vector<2x16x16xf32>
    %c1_67 = arith.constant 1 : index
    %c6_68 = arith.constant 6 : index
    %208 = memref.load %arg3[%c1_67, %c6_68] : memref<4x9xf32, #tpu.memory_space<smem>>
    %209 = vector.broadcast %208 : f32 to vector<2x16x16xf32>
    %210 = arith.mulf %207, %209 : vector<2x16x16xf32>
    %211 = arith.addf %189, %210 : vector<2x16x16xf32>
    %c1_69 = arith.constant 1 : index
    %c7_70 = arith.constant 7 : index
    %212 = memref.load %arg3[%c1_69, %c7_70] : memref<4x9xf32, #tpu.memory_space<smem>>
    %213 = vector.broadcast %212 : f32 to vector<2x16x16xf32>
    %214 = arith.mulf %194, %213 : vector<2x16x16xf32>
    %215 = arith.addf %211, %214 : vector<2x16x16xf32>
    %c15_i32_71 = arith.constant 15 : i32
    %216 = tpu.dynamic_rotate %194 by %c15_i32_71 dim 2 : vector<2x16x16xf32>, i32 -> vector<2x16x16xf32>
    %217 = vector.shape_cast %5 : vector<1x1x16xi1> to vector<1x1x16xi1>
    %218 = vector.broadcast %217 : vector<1x1x16xi1> to vector<2x16x16xi1>
    %219 = vector.shape_cast %201 : vector<2x16x1xf32> to vector<2x16x1xf32>
    %220 = vector.broadcast %219 : vector<2x16x1xf32> to vector<2x16x16xf32>
    %221 = arith.select %218, %220, %216 : vector<2x16x16xi1>, vector<2x16x16xf32>
    %c1_72 = arith.constant 1 : index
    %c8_73 = arith.constant 8 : index
    %222 = memref.load %arg3[%c1_72, %c8_73] : memref<4x9xf32, #tpu.memory_space<smem>>
    %223 = vector.broadcast %222 : f32 to vector<2x16x16xf32>
    %224 = arith.mulf %221, %223 : vector<2x16x16xf32>
    %225 = arith.addf %215, %224 : vector<2x16x16xf32>
    %c0_74 = arith.constant 0 : index
    %c2_75 = arith.constant 2 : index
    %c0_76 = arith.constant 0 : index
    %c0_77 = arith.constant 0 : index
    %226 = vector.load %arg1[%c0_74, %c2_75, %c0_76, %c0_77] : memref<2x4x16x16xf32, #tpu.memory_space<vmem>>, vector<2x1x16x16xf32>
    %227 = vector.shape_cast %226 : vector<2x1x16x16xf32> to vector<2x16x16xf32>
    %cst_78 = arith.constant 0.000000e+00 : f32
    %228 = vector.broadcast %cst_78 : f32 to vector<2x16x16xf32>
    %229 = arith.maximumf %227, %228 : vector<2x16x16xf32>
    %c0_79 = arith.constant 0 : index
    %c4_80 = arith.constant 4 : index
    %c0_81 = arith.constant 0 : index
    %c0_82 = arith.constant 0 : index
    %230 = vector.load %arg2[%c0_79, %c4_80, %c0_81, %c0_82] : memref<1x8x16x2xf32, #tpu.memory_space<vmem>>, vector<1x2x16x2xf32>
    %231 = vector.shape_cast %230 : vector<1x2x16x2xf32> to vector<2x16x2xf32>
    %cst_83 = arith.constant 0.000000e+00 : f32
    %232 = vector.broadcast %cst_83 : f32 to vector<2x16x2xf32>
    %233 = arith.maximumf %231, %232 : vector<2x16x2xf32>
    %c1_i32_84 = arith.constant 1 : i32
    %234 = tpu.dynamic_rotate %229 by %c1_i32_84 dim 1 : vector<2x16x16xf32>, i32 -> vector<2x16x16xf32>
    %cst_85 = arith.constant 0.000000e+00 : f32
    %235 = vector.shape_cast %10 : vector<1x16x1xi1> to vector<1x16x1xi1>
    %236 = vector.broadcast %235 : vector<1x16x1xi1> to vector<2x16x16xi1>
    %237 = vector.broadcast %cst_85 : f32 to vector<2x16x16xf32>
    %238 = arith.select %236, %234, %237 : vector<2x16x16xi1>, vector<2x16x16xf32>
    %c1_i32_86 = arith.constant 1 : i32
    %239 = tpu.dynamic_rotate %233 by %c1_i32_86 dim 1 : vector<2x16x2xf32>, i32 -> vector<2x16x2xf32>
    %cst_87 = arith.constant 0.000000e+00 : f32
    %240 = vector.shape_cast %10 : vector<1x16x1xi1> to vector<1x16x1xi1>
    %241 = vector.broadcast %240 : vector<1x16x1xi1> to vector<2x16x2xi1>
    %242 = vector.broadcast %cst_87 : f32 to vector<2x16x2xf32>
    %243 = arith.select %241, %239, %242 : vector<2x16x2xi1>, vector<2x16x2xf32>
    %244 = vector.extract_strided_slice %243 {offsets = [0, 0, 0], sizes = [2, 16, 1], strides = [1, 1, 1]} : vector<2x16x2xf32> to vector<2x16x1xf32>
    %245 = vector.extract_strided_slice %243 {offsets = [0, 0, 1], sizes = [2, 16, 1], strides = [1, 1, 1]} : vector<2x16x2xf32> to vector<2x16x1xf32>
    %c1_i32_88 = arith.constant 1 : i32
    %246 = tpu.dynamic_rotate %238 by %c1_i32_88 dim 2 : vector<2x16x16xf32>, i32 -> vector<2x16x16xf32>
    %247 = vector.shape_cast %3 : vector<1x1x16xi1> to vector<1x1x16xi1>
    %248 = vector.broadcast %247 : vector<1x1x16xi1> to vector<2x16x16xi1>
    %249 = vector.shape_cast %244 : vector<2x16x1xf32> to vector<2x16x1xf32>
    %250 = vector.broadcast %249 : vector<2x16x1xf32> to vector<2x16x16xf32>
    %251 = arith.select %248, %250, %246 : vector<2x16x16xi1>, vector<2x16x16xf32>
    %c2_89 = arith.constant 2 : index
    %c0_90 = arith.constant 0 : index
    %252 = memref.load %arg3[%c2_89, %c0_90] : memref<4x9xf32, #tpu.memory_space<smem>>
    %253 = vector.broadcast %252 : f32 to vector<2x16x16xf32>
    %254 = arith.mulf %251, %253 : vector<2x16x16xf32>
    %c2_91 = arith.constant 2 : index
    %c1_92 = arith.constant 1 : index
    %255 = memref.load %arg3[%c2_91, %c1_92] : memref<4x9xf32, #tpu.memory_space<smem>>
    %256 = vector.broadcast %255 : f32 to vector<2x16x16xf32>
    %257 = arith.mulf %238, %256 : vector<2x16x16xf32>
    %258 = arith.addf %254, %257 : vector<2x16x16xf32>
    %c15_i32_93 = arith.constant 15 : i32
    %259 = tpu.dynamic_rotate %238 by %c15_i32_93 dim 2 : vector<2x16x16xf32>, i32 -> vector<2x16x16xf32>
    %260 = vector.shape_cast %5 : vector<1x1x16xi1> to vector<1x1x16xi1>
    %261 = vector.broadcast %260 : vector<1x1x16xi1> to vector<2x16x16xi1>
    %262 = vector.shape_cast %245 : vector<2x16x1xf32> to vector<2x16x1xf32>
    %263 = vector.broadcast %262 : vector<2x16x1xf32> to vector<2x16x16xf32>
    %264 = arith.select %261, %263, %259 : vector<2x16x16xi1>, vector<2x16x16xf32>
    %c2_94 = arith.constant 2 : index
    %c2_95 = arith.constant 2 : index
    %265 = memref.load %arg3[%c2_94, %c2_95] : memref<4x9xf32, #tpu.memory_space<smem>>
    %266 = vector.broadcast %265 : f32 to vector<2x16x16xf32>
    %267 = arith.mulf %264, %266 : vector<2x16x16xf32>
    %268 = arith.addf %258, %267 : vector<2x16x16xf32>
    %269 = vector.extract_strided_slice %233 {offsets = [0, 0, 0], sizes = [2, 16, 1], strides = [1, 1, 1]} : vector<2x16x2xf32> to vector<2x16x1xf32>
    %270 = vector.extract_strided_slice %233 {offsets = [0, 0, 1], sizes = [2, 16, 1], strides = [1, 1, 1]} : vector<2x16x2xf32> to vector<2x16x1xf32>
    %c1_i32_96 = arith.constant 1 : i32
    %271 = tpu.dynamic_rotate %229 by %c1_i32_96 dim 2 : vector<2x16x16xf32>, i32 -> vector<2x16x16xf32>
    %272 = vector.shape_cast %3 : vector<1x1x16xi1> to vector<1x1x16xi1>
    %273 = vector.broadcast %272 : vector<1x1x16xi1> to vector<2x16x16xi1>
    %274 = vector.shape_cast %269 : vector<2x16x1xf32> to vector<2x16x1xf32>
    %275 = vector.broadcast %274 : vector<2x16x1xf32> to vector<2x16x16xf32>
    %276 = arith.select %273, %275, %271 : vector<2x16x16xi1>, vector<2x16x16xf32>
    %c2_97 = arith.constant 2 : index
    %c3_98 = arith.constant 3 : index
    %277 = memref.load %arg3[%c2_97, %c3_98] : memref<4x9xf32, #tpu.memory_space<smem>>
    %278 = vector.broadcast %277 : f32 to vector<2x16x16xf32>
    %279 = arith.mulf %276, %278 : vector<2x16x16xf32>
    %280 = arith.addf %268, %279 : vector<2x16x16xf32>
    %c2_99 = arith.constant 2 : index
    %c4_100 = arith.constant 4 : index
    %281 = memref.load %arg3[%c2_99, %c4_100] : memref<4x9xf32, #tpu.memory_space<smem>>
    %282 = vector.broadcast %281 : f32 to vector<2x16x16xf32>
    %283 = arith.mulf %229, %282 : vector<2x16x16xf32>
    %284 = arith.addf %280, %283 : vector<2x16x16xf32>
    %c15_i32_101 = arith.constant 15 : i32
    %285 = tpu.dynamic_rotate %229 by %c15_i32_101 dim 2 : vector<2x16x16xf32>, i32 -> vector<2x16x16xf32>
    %286 = vector.shape_cast %5 : vector<1x1x16xi1> to vector<1x1x16xi1>
    %287 = vector.broadcast %286 : vector<1x1x16xi1> to vector<2x16x16xi1>
    %288 = vector.shape_cast %270 : vector<2x16x1xf32> to vector<2x16x1xf32>
    %289 = vector.broadcast %288 : vector<2x16x1xf32> to vector<2x16x16xf32>
    %290 = arith.select %287, %289, %285 : vector<2x16x16xi1>, vector<2x16x16xf32>
    %c2_102 = arith.constant 2 : index
    %c5_103 = arith.constant 5 : index
    %291 = memref.load %arg3[%c2_102, %c5_103] : memref<4x9xf32, #tpu.memory_space<smem>>
    %292 = vector.broadcast %291 : f32 to vector<2x16x16xf32>
    %293 = arith.mulf %290, %292 : vector<2x16x16xf32>
    %294 = arith.addf %284, %293 : vector<2x16x16xf32>
    %c15_i32_104 = arith.constant 15 : i32
    %295 = tpu.dynamic_rotate %229 by %c15_i32_104 dim 1 : vector<2x16x16xf32>, i32 -> vector<2x16x16xf32>
    %cst_105 = arith.constant 0.000000e+00 : f32
    %296 = vector.shape_cast %15 : vector<1x16x1xi1> to vector<1x16x1xi1>
    %297 = vector.broadcast %296 : vector<1x16x1xi1> to vector<2x16x16xi1>
    %298 = vector.broadcast %cst_105 : f32 to vector<2x16x16xf32>
    %299 = arith.select %297, %295, %298 : vector<2x16x16xi1>, vector<2x16x16xf32>
    %c15_i32_106 = arith.constant 15 : i32
    %300 = tpu.dynamic_rotate %233 by %c15_i32_106 dim 1 : vector<2x16x2xf32>, i32 -> vector<2x16x2xf32>
    %cst_107 = arith.constant 0.000000e+00 : f32
    %301 = vector.shape_cast %15 : vector<1x16x1xi1> to vector<1x16x1xi1>
    %302 = vector.broadcast %301 : vector<1x16x1xi1> to vector<2x16x2xi1>
    %303 = vector.broadcast %cst_107 : f32 to vector<2x16x2xf32>
    %304 = arith.select %302, %300, %303 : vector<2x16x2xi1>, vector<2x16x2xf32>
    %305 = vector.extract_strided_slice %304 {offsets = [0, 0, 0], sizes = [2, 16, 1], strides = [1, 1, 1]} : vector<2x16x2xf32> to vector<2x16x1xf32>
    %306 = vector.extract_strided_slice %304 {offsets = [0, 0, 1], sizes = [2, 16, 1], strides = [1, 1, 1]} : vector<2x16x2xf32> to vector<2x16x1xf32>
    %c1_i32_108 = arith.constant 1 : i32
    %307 = tpu.dynamic_rotate %299 by %c1_i32_108 dim 2 : vector<2x16x16xf32>, i32 -> vector<2x16x16xf32>
    %308 = vector.shape_cast %3 : vector<1x1x16xi1> to vector<1x1x16xi1>
    %309 = vector.broadcast %308 : vector<1x1x16xi1> to vector<2x16x16xi1>
    %310 = vector.shape_cast %305 : vector<2x16x1xf32> to vector<2x16x1xf32>
    %311 = vector.broadcast %310 : vector<2x16x1xf32> to vector<2x16x16xf32>
    %312 = arith.select %309, %311, %307 : vector<2x16x16xi1>, vector<2x16x16xf32>
    %c2_109 = arith.constant 2 : index
    %c6_110 = arith.constant 6 : index
    %313 = memref.load %arg3[%c2_109, %c6_110] : memref<4x9xf32, #tpu.memory_space<smem>>
    %314 = vector.broadcast %313 : f32 to vector<2x16x16xf32>
    %315 = arith.mulf %312, %314 : vector<2x16x16xf32>
    %316 = arith.addf %294, %315 : vector<2x16x16xf32>
    %c2_111 = arith.constant 2 : index
    %c7_112 = arith.constant 7 : index
    %317 = memref.load %arg3[%c2_111, %c7_112] : memref<4x9xf32, #tpu.memory_space<smem>>
    %318 = vector.broadcast %317 : f32 to vector<2x16x16xf32>
    %319 = arith.mulf %299, %318 : vector<2x16x16xf32>
    %320 = arith.addf %316, %319 : vector<2x16x16xf32>
    %c15_i32_113 = arith.constant 15 : i32
    %321 = tpu.dynamic_rotate %299 by %c15_i32_113 dim 2 : vector<2x16x16xf32>, i32 -> vector<2x16x16xf32>
    %322 = vector.shape_cast %5 : vector<1x1x16xi1> to vector<1x1x16xi1>
    %323 = vector.broadcast %322 : vector<1x1x16xi1> to vector<2x16x16xi1>
    %324 = vector.shape_cast %306 : vector<2x16x1xf32> to vector<2x16x1xf32>
    %325 = vector.broadcast %324 : vector<2x16x1xf32> to vector<2x16x16xf32>
    %326 = arith.select %323, %325, %321 : vector<2x16x16xi1>, vector<2x16x16xf32>
    %c2_114 = arith.constant 2 : index
    %c8_115 = arith.constant 8 : index
    %327 = memref.load %arg3[%c2_114, %c8_115] : memref<4x9xf32, #tpu.memory_space<smem>>
    %328 = vector.broadcast %327 : f32 to vector<2x16x16xf32>
    %329 = arith.mulf %326, %328 : vector<2x16x16xf32>
    %330 = arith.addf %320, %329 : vector<2x16x16xf32>
    %c0_116 = arith.constant 0 : index
    %c3_117 = arith.constant 3 : index
    %c0_118 = arith.constant 0 : index
    %c0_119 = arith.constant 0 : index
    %331 = vector.load %arg1[%c0_116, %c3_117, %c0_118, %c0_119] : memref<2x4x16x16xf32, #tpu.memory_space<vmem>>, vector<2x1x16x16xf32>
    %332 = vector.shape_cast %331 : vector<2x1x16x16xf32> to vector<2x16x16xf32>
    %cst_120 = arith.constant 0.000000e+00 : f32
    %333 = vector.broadcast %cst_120 : f32 to vector<2x16x16xf32>
    %334 = arith.maximumf %332, %333 : vector<2x16x16xf32>
    %c0_121 = arith.constant 0 : index
    %c6_122 = arith.constant 6 : index
    %c0_123 = arith.constant 0 : index
    %c0_124 = arith.constant 0 : index
    %335 = vector.load %arg2[%c0_121, %c6_122, %c0_123, %c0_124] : memref<1x8x16x2xf32, #tpu.memory_space<vmem>>, vector<1x2x16x2xf32>
    %336 = vector.shape_cast %335 : vector<1x2x16x2xf32> to vector<2x16x2xf32>
    %cst_125 = arith.constant 0.000000e+00 : f32
    %337 = vector.broadcast %cst_125 : f32 to vector<2x16x2xf32>
    %338 = arith.maximumf %336, %337 : vector<2x16x2xf32>
    %c1_i32_126 = arith.constant 1 : i32
    %339 = tpu.dynamic_rotate %334 by %c1_i32_126 dim 1 : vector<2x16x16xf32>, i32 -> vector<2x16x16xf32>
    %cst_127 = arith.constant 0.000000e+00 : f32
    %340 = vector.shape_cast %10 : vector<1x16x1xi1> to vector<1x16x1xi1>
    %341 = vector.broadcast %340 : vector<1x16x1xi1> to vector<2x16x16xi1>
    %342 = vector.broadcast %cst_127 : f32 to vector<2x16x16xf32>
    %343 = arith.select %341, %339, %342 : vector<2x16x16xi1>, vector<2x16x16xf32>
    %c1_i32_128 = arith.constant 1 : i32
    %344 = tpu.dynamic_rotate %338 by %c1_i32_128 dim 1 : vector<2x16x2xf32>, i32 -> vector<2x16x2xf32>
    %cst_129 = arith.constant 0.000000e+00 : f32
    %345 = vector.shape_cast %10 : vector<1x16x1xi1> to vector<1x16x1xi1>
    %346 = vector.broadcast %345 : vector<1x16x1xi1> to vector<2x16x2xi1>
    %347 = vector.broadcast %cst_129 : f32 to vector<2x16x2xf32>
    %348 = arith.select %346, %344, %347 : vector<2x16x2xi1>, vector<2x16x2xf32>
    %349 = vector.extract_strided_slice %348 {offsets = [0, 0, 0], sizes = [2, 16, 1], strides = [1, 1, 1]} : vector<2x16x2xf32> to vector<2x16x1xf32>
    %350 = vector.extract_strided_slice %348 {offsets = [0, 0, 1], sizes = [2, 16, 1], strides = [1, 1, 1]} : vector<2x16x2xf32> to vector<2x16x1xf32>
    %c1_i32_130 = arith.constant 1 : i32
    %351 = tpu.dynamic_rotate %343 by %c1_i32_130 dim 2 : vector<2x16x16xf32>, i32 -> vector<2x16x16xf32>
    %352 = vector.shape_cast %3 : vector<1x1x16xi1> to vector<1x1x16xi1>
    %353 = vector.broadcast %352 : vector<1x1x16xi1> to vector<2x16x16xi1>
    %354 = vector.shape_cast %349 : vector<2x16x1xf32> to vector<2x16x1xf32>
    %355 = vector.broadcast %354 : vector<2x16x1xf32> to vector<2x16x16xf32>
    %356 = arith.select %353, %355, %351 : vector<2x16x16xi1>, vector<2x16x16xf32>
    %c3_131 = arith.constant 3 : index
    %c0_132 = arith.constant 0 : index
    %357 = memref.load %arg3[%c3_131, %c0_132] : memref<4x9xf32, #tpu.memory_space<smem>>
    %358 = vector.broadcast %357 : f32 to vector<2x16x16xf32>
    %359 = arith.mulf %356, %358 : vector<2x16x16xf32>
    %c3_133 = arith.constant 3 : index
    %c1_134 = arith.constant 1 : index
    %360 = memref.load %arg3[%c3_133, %c1_134] : memref<4x9xf32, #tpu.memory_space<smem>>
    %361 = vector.broadcast %360 : f32 to vector<2x16x16xf32>
    %362 = arith.mulf %343, %361 : vector<2x16x16xf32>
    %363 = arith.addf %359, %362 : vector<2x16x16xf32>
    %c15_i32_135 = arith.constant 15 : i32
    %364 = tpu.dynamic_rotate %343 by %c15_i32_135 dim 2 : vector<2x16x16xf32>, i32 -> vector<2x16x16xf32>
    %365 = vector.shape_cast %5 : vector<1x1x16xi1> to vector<1x1x16xi1>
    %366 = vector.broadcast %365 : vector<1x1x16xi1> to vector<2x16x16xi1>
    %367 = vector.shape_cast %350 : vector<2x16x1xf32> to vector<2x16x1xf32>
    %368 = vector.broadcast %367 : vector<2x16x1xf32> to vector<2x16x16xf32>
    %369 = arith.select %366, %368, %364 : vector<2x16x16xi1>, vector<2x16x16xf32>
    %c3_136 = arith.constant 3 : index
    %c2_137 = arith.constant 2 : index
    %370 = memref.load %arg3[%c3_136, %c2_137] : memref<4x9xf32, #tpu.memory_space<smem>>
    %371 = vector.broadcast %370 : f32 to vector<2x16x16xf32>
    %372 = arith.mulf %369, %371 : vector<2x16x16xf32>
    %373 = arith.addf %363, %372 : vector<2x16x16xf32>
    %374 = vector.extract_strided_slice %338 {offsets = [0, 0, 0], sizes = [2, 16, 1], strides = [1, 1, 1]} : vector<2x16x2xf32> to vector<2x16x1xf32>
    %375 = vector.extract_strided_slice %338 {offsets = [0, 0, 1], sizes = [2, 16, 1], strides = [1, 1, 1]} : vector<2x16x2xf32> to vector<2x16x1xf32>
    %c1_i32_138 = arith.constant 1 : i32
    %376 = tpu.dynamic_rotate %334 by %c1_i32_138 dim 2 : vector<2x16x16xf32>, i32 -> vector<2x16x16xf32>
    %377 = vector.shape_cast %3 : vector<1x1x16xi1> to vector<1x1x16xi1>
    %378 = vector.broadcast %377 : vector<1x1x16xi1> to vector<2x16x16xi1>
    %379 = vector.shape_cast %374 : vector<2x16x1xf32> to vector<2x16x1xf32>
    %380 = vector.broadcast %379 : vector<2x16x1xf32> to vector<2x16x16xf32>
    %381 = arith.select %378, %380, %376 : vector<2x16x16xi1>, vector<2x16x16xf32>
    %c3_139 = arith.constant 3 : index
    %c3_140 = arith.constant 3 : index
    %382 = memref.load %arg3[%c3_139, %c3_140] : memref<4x9xf32, #tpu.memory_space<smem>>
    %383 = vector.broadcast %382 : f32 to vector<2x16x16xf32>
    %384 = arith.mulf %381, %383 : vector<2x16x16xf32>
    %385 = arith.addf %373, %384 : vector<2x16x16xf32>
    %c3_141 = arith.constant 3 : index
    %c4_142 = arith.constant 4 : index
    %386 = memref.load %arg3[%c3_141, %c4_142] : memref<4x9xf32, #tpu.memory_space<smem>>
    %387 = vector.broadcast %386 : f32 to vector<2x16x16xf32>
    %388 = arith.mulf %334, %387 : vector<2x16x16xf32>
    %389 = arith.addf %385, %388 : vector<2x16x16xf32>
    %c15_i32_143 = arith.constant 15 : i32
    %390 = tpu.dynamic_rotate %334 by %c15_i32_143 dim 2 : vector<2x16x16xf32>, i32 -> vector<2x16x16xf32>
    %391 = vector.shape_cast %5 : vector<1x1x16xi1> to vector<1x1x16xi1>
    %392 = vector.broadcast %391 : vector<1x1x16xi1> to vector<2x16x16xi1>
    %393 = vector.shape_cast %375 : vector<2x16x1xf32> to vector<2x16x1xf32>
    %394 = vector.broadcast %393 : vector<2x16x1xf32> to vector<2x16x16xf32>
    %395 = arith.select %392, %394, %390 : vector<2x16x16xi1>, vector<2x16x16xf32>
    %c3_144 = arith.constant 3 : index
    %c5_145 = arith.constant 5 : index
    %396 = memref.load %arg3[%c3_144, %c5_145] : memref<4x9xf32, #tpu.memory_space<smem>>
    %397 = vector.broadcast %396 : f32 to vector<2x16x16xf32>
    %398 = arith.mulf %395, %397 : vector<2x16x16xf32>
    %399 = arith.addf %389, %398 : vector<2x16x16xf32>
    %c15_i32_146 = arith.constant 15 : i32
    %400 = tpu.dynamic_rotate %334 by %c15_i32_146 dim 1 : vector<2x16x16xf32>, i32 -> vector<2x16x16xf32>
    %cst_147 = arith.constant 0.000000e+00 : f32
    %401 = vector.shape_cast %15 : vector<1x16x1xi1> to vector<1x16x1xi1>
    %402 = vector.broadcast %401 : vector<1x16x1xi1> to vector<2x16x16xi1>
    %403 = vector.broadcast %cst_147 : f32 to vector<2x16x16xf32>
    %404 = arith.select %402, %400, %403 : vector<2x16x16xi1>, vector<2x16x16xf32>
    %c15_i32_148 = arith.constant 15 : i32
    %405 = tpu.dynamic_rotate %338 by %c15_i32_148 dim 1 : vector<2x16x2xf32>, i32 -> vector<2x16x2xf32>
    %cst_149 = arith.constant 0.000000e+00 : f32
    %406 = vector.shape_cast %15 : vector<1x16x1xi1> to vector<1x16x1xi1>
    %407 = vector.broadcast %406 : vector<1x16x1xi1> to vector<2x16x2xi1>
    %408 = vector.broadcast %cst_149 : f32 to vector<2x16x2xf32>
    %409 = arith.select %407, %405, %408 : vector<2x16x2xi1>, vector<2x16x2xf32>
    %410 = vector.extract_strided_slice %409 {offsets = [0, 0, 0], sizes = [2, 16, 1], strides = [1, 1, 1]} : vector<2x16x2xf32> to vector<2x16x1xf32>
    %411 = vector.extract_strided_slice %409 {offsets = [0, 0, 1], sizes = [2, 16, 1], strides = [1, 1, 1]} : vector<2x16x2xf32> to vector<2x16x1xf32>
    %c1_i32_150 = arith.constant 1 : i32
    %412 = tpu.dynamic_rotate %404 by %c1_i32_150 dim 2 : vector<2x16x16xf32>, i32 -> vector<2x16x16xf32>
    %413 = vector.shape_cast %3 : vector<1x1x16xi1> to vector<1x1x16xi1>
    %414 = vector.broadcast %413 : vector<1x1x16xi1> to vector<2x16x16xi1>
    %415 = vector.shape_cast %410 : vector<2x16x1xf32> to vector<2x16x1xf32>
    %416 = vector.broadcast %415 : vector<2x16x1xf32> to vector<2x16x16xf32>
    %417 = arith.select %414, %416, %412 : vector<2x16x16xi1>, vector<2x16x16xf32>
    %c3_151 = arith.constant 3 : index
    %c6_152 = arith.constant 6 : index
    %418 = memref.load %arg3[%c3_151, %c6_152] : memref<4x9xf32, #tpu.memory_space<smem>>
    %419 = vector.broadcast %418 : f32 to vector<2x16x16xf32>
    %420 = arith.mulf %417, %419 : vector<2x16x16xf32>
    %421 = arith.addf %399, %420 : vector<2x16x16xf32>
    %c3_153 = arith.constant 3 : index
    %c7_154 = arith.constant 7 : index
    %422 = memref.load %arg3[%c3_153, %c7_154] : memref<4x9xf32, #tpu.memory_space<smem>>
    %423 = vector.broadcast %422 : f32 to vector<2x16x16xf32>
    %424 = arith.mulf %404, %423 : vector<2x16x16xf32>
    %425 = arith.addf %421, %424 : vector<2x16x16xf32>
    %c15_i32_155 = arith.constant 15 : i32
    %426 = tpu.dynamic_rotate %404 by %c15_i32_155 dim 2 : vector<2x16x16xf32>, i32 -> vector<2x16x16xf32>
    %427 = vector.shape_cast %5 : vector<1x1x16xi1> to vector<1x1x16xi1>
    %428 = vector.broadcast %427 : vector<1x1x16xi1> to vector<2x16x16xi1>
    %429 = vector.shape_cast %411 : vector<2x16x1xf32> to vector<2x16x1xf32>
    %430 = vector.broadcast %429 : vector<2x16x1xf32> to vector<2x16x16xf32>
    %431 = arith.select %428, %430, %426 : vector<2x16x16xi1>, vector<2x16x16xf32>
    %c3_156 = arith.constant 3 : index
    %c8_157 = arith.constant 8 : index
    %432 = memref.load %arg3[%c3_156, %c8_157] : memref<4x9xf32, #tpu.memory_space<smem>>
    %433 = vector.broadcast %432 : f32 to vector<2x16x16xf32>
    %434 = arith.mulf %431, %433 : vector<2x16x16xf32>
    %435 = arith.addf %425, %434 : vector<2x16x16xf32>
    %c0_158 = arith.constant 0 : index
    %c0_159 = arith.constant 0 : index
    %436 = memref.load %arg4[%c0_158, %c0_159] : memref<8x4xf32, #tpu.memory_space<smem>>
    %437 = vector.broadcast %436 : f32 to vector<2x16x16xf32>
    %438 = arith.mulf %120, %437 : vector<2x16x16xf32>
    %c0_160 = arith.constant 0 : index
    %c1_161 = arith.constant 1 : index
    %439 = memref.load %arg4[%c0_160, %c1_161] : memref<8x4xf32, #tpu.memory_space<smem>>
    %440 = vector.broadcast %439 : f32 to vector<2x16x16xf32>
    %441 = arith.mulf %225, %440 : vector<2x16x16xf32>
    %442 = arith.addf %438, %441 : vector<2x16x16xf32>
    %c0_162 = arith.constant 0 : index
    %c2_163 = arith.constant 2 : index
    %443 = memref.load %arg4[%c0_162, %c2_163] : memref<8x4xf32, #tpu.memory_space<smem>>
    %444 = vector.broadcast %443 : f32 to vector<2x16x16xf32>
    %445 = arith.mulf %330, %444 : vector<2x16x16xf32>
    %446 = arith.addf %442, %445 : vector<2x16x16xf32>
    %c0_164 = arith.constant 0 : index
    %c3_165 = arith.constant 3 : index
    %447 = memref.load %arg4[%c0_164, %c3_165] : memref<8x4xf32, #tpu.memory_space<smem>>
    %448 = vector.broadcast %447 : f32 to vector<2x16x16xf32>
    %449 = arith.mulf %435, %448 : vector<2x16x16xf32>
    %450 = arith.addf %446, %449 : vector<2x16x16xf32>
    %c0_166 = arith.constant 0 : index
    %c0_167 = arith.constant 0 : index
    %c0_168 = arith.constant 0 : index
    %c0_169 = arith.constant 0 : index
    %451 = vector.load %arg5[%c0_166, %c0_167, %c0_168, %c0_169] : memref<2x8x16x16xf32, #tpu.memory_space<vmem>>, vector<2x1x16x16xf32>
    %452 = vector.shape_cast %451 : vector<2x1x16x16xf32> to vector<2x16x16xf32>
    %453 = vector.shape_cast %450 : vector<2x16x16xf32> to vector<2x1x16x16xf32>
    tpu.vector_store %arg5[%c0_166, %c0_167, %c0_168, %c0_169], %453 {strides = array<i32>} : memref<2x8x16x16xf32, #tpu.memory_space<vmem>>, vector<2x1x16x16xf32>,
    %cst_170 = arith.constant dense<0.000000e+00> : vector<16xf32>
    %454 = vector.multi_reduction <add>, %450, %cst_170 [0, 1] : vector<2x16x16xf32> to vector<16xf32>
    %455 = vector.shape_cast %454 : vector<16xf32> to vector<1x16xf32>
    %c0_171 = arith.constant 0 : index
    %c0_172 = arith.constant 0 : index
    %c0_173 = arith.constant 0 : index
    %c0_174 = arith.constant 0 : index
    %456 = vector.load %arg6[%c0_171, %c0_172, %c0_173, %c0_174] : memref<1x2x8x16xf32, #tpu.memory_space<vmem>>, vector<1x1x1x16xf32>
    %457 = vector.shape_cast %456 : vector<1x1x1x16xf32> to vector<1x16xf32>
    %458 = vector.shape_cast %455 : vector<1x16xf32> to vector<1x1x1x16xf32>
    tpu.vector_store %arg6[%c0_171, %c0_172, %c0_173, %c0_174], %458 {strides = array<i32>} : memref<1x2x8x16xf32, #tpu.memory_space<vmem>>, vector<1x1x1x16xf32>,
    %459 = arith.mulf %450, %450 : vector<2x16x16xf32>
    %cst_175 = arith.constant dense<0.000000e+00> : vector<16xf32>
    %460 = vector.multi_reduction <add>, %459, %cst_175 [0, 1] : vector<2x16x16xf32> to vector<16xf32>
    %461 = vector.shape_cast %460 : vector<16xf32> to vector<1x16xf32>
    %c0_176 = arith.constant 0 : index
    %c1_177 = arith.constant 1 : index
    %c0_178 = arith.constant 0 : index
    %c0_179 = arith.constant 0 : index
    %462 = vector.load %arg6[%c0_176, %c1_177, %c0_178, %c0_179] : memref<1x2x8x16xf32, #tpu.memory_space<vmem>>, vector<1x1x1x16xf32>
    %463 = vector.shape_cast %462 : vector<1x1x1x16xf32> to vector<1x16xf32>
    %464 = vector.shape_cast %461 : vector<1x16xf32> to vector<1x1x1x16xf32>
    tpu.vector_store %arg6[%c0_176, %c1_177, %c0_178, %c0_179], %464 {strides = array<i32>} : memref<1x2x8x16xf32, #tpu.memory_space<vmem>>, vector<1x1x1x16xf32>,
    %c1_180 = arith.constant 1 : index
    %c0_181 = arith.constant 0 : index
    %465 = memref.load %arg4[%c1_180, %c0_181] : memref<8x4xf32, #tpu.memory_space<smem>>
    %466 = vector.broadcast %465 : f32 to vector<2x16x16xf32>
    %467 = arith.mulf %120, %466 : vector<2x16x16xf32>
    %c1_182 = arith.constant 1 : index
    %c1_183 = arith.constant 1 : index
    %468 = memref.load %arg4[%c1_182, %c1_183] : memref<8x4xf32, #tpu.memory_space<smem>>
    %469 = vector.broadcast %468 : f32 to vector<2x16x16xf32>
    %470 = arith.mulf %225, %469 : vector<2x16x16xf32>
    %471 = arith.addf %467, %470 : vector<2x16x16xf32>
    %c1_184 = arith.constant 1 : index
    %c2_185 = arith.constant 2 : index
    %472 = memref.load %arg4[%c1_184, %c2_185] : memref<8x4xf32, #tpu.memory_space<smem>>
    %473 = vector.broadcast %472 : f32 to vector<2x16x16xf32>
    %474 = arith.mulf %330, %473 : vector<2x16x16xf32>
    %475 = arith.addf %471, %474 : vector<2x16x16xf32>
    %c1_186 = arith.constant 1 : index
    %c3_187 = arith.constant 3 : index
    %476 = memref.load %arg4[%c1_186, %c3_187] : memref<8x4xf32, #tpu.memory_space<smem>>
    %477 = vector.broadcast %476 : f32 to vector<2x16x16xf32>
    %478 = arith.mulf %435, %477 : vector<2x16x16xf32>
    %479 = arith.addf %475, %478 : vector<2x16x16xf32>
    %c0_188 = arith.constant 0 : index
    %c1_189 = arith.constant 1 : index
    %c0_190 = arith.constant 0 : index
    %c0_191 = arith.constant 0 : index
    %480 = vector.load %arg5[%c0_188, %c1_189, %c0_190, %c0_191] : memref<2x8x16x16xf32, #tpu.memory_space<vmem>>, vector<2x1x16x16xf32>
    %481 = vector.shape_cast %480 : vector<2x1x16x16xf32> to vector<2x16x16xf32>
    %482 = vector.shape_cast %479 : vector<2x16x16xf32> to vector<2x1x16x16xf32>
    tpu.vector_store %arg5[%c0_188, %c1_189, %c0_190, %c0_191], %482 {strides = array<i32>} : memref<2x8x16x16xf32, #tpu.memory_space<vmem>>, vector<2x1x16x16xf32>,
    %cst_192 = arith.constant dense<0.000000e+00> : vector<16xf32>
    %483 = vector.multi_reduction <add>, %479, %cst_192 [0, 1] : vector<2x16x16xf32> to vector<16xf32>
    %484 = vector.shape_cast %483 : vector<16xf32> to vector<1x16xf32>
    %c0_193 = arith.constant 0 : index
    %c0_194 = arith.constant 0 : index
    %c1_195 = arith.constant 1 : index
    %c0_196 = arith.constant 0 : index
    %485 = vector.load %arg6[%c0_193, %c0_194, %c1_195, %c0_196] : memref<1x2x8x16xf32, #tpu.memory_space<vmem>>, vector<1x1x1x16xf32>
    %486 = vector.shape_cast %485 : vector<1x1x1x16xf32> to vector<1x16xf32>
    %487 = vector.shape_cast %484 : vector<1x16xf32> to vector<1x1x1x16xf32>
    tpu.vector_store %arg6[%c0_193, %c0_194, %c1_195, %c0_196], %487 {strides = array<i32>} : memref<1x2x8x16xf32, #tpu.memory_space<vmem>>, vector<1x1x1x16xf32>,
    %488 = arith.mulf %479, %479 : vector<2x16x16xf32>
    %cst_197 = arith.constant dense<0.000000e+00> : vector<16xf32>
    %489 = vector.multi_reduction <add>, %488, %cst_197 [0, 1] : vector<2x16x16xf32> to vector<16xf32>
    %490 = vector.shape_cast %489 : vector<16xf32> to vector<1x16xf32>
    %c0_198 = arith.constant 0 : index
    %c1_199 = arith.constant 1 : index
    %c1_200 = arith.constant 1 : index
    %c0_201 = arith.constant 0 : index
    %491 = vector.load %arg6[%c0_198, %c1_199, %c1_200, %c0_201] : memref<1x2x8x16xf32, #tpu.memory_space<vmem>>, vector<1x1x1x16xf32>
    %492 = vector.shape_cast %491 : vector<1x1x1x16xf32> to vector<1x16xf32>
    %493 = vector.shape_cast %490 : vector<1x16xf32> to vector<1x1x1x16xf32>
    tpu.vector_store %arg6[%c0_198, %c1_199, %c1_200, %c0_201], %493 {strides = array<i32>} : memref<1x2x8x16xf32, #tpu.memory_space<vmem>>, vector<1x1x1x16xf32>,
    %c2_202 = arith.constant 2 : index
    %c0_203 = arith.constant 0 : index
    %494 = memref.load %arg4[%c2_202, %c0_203] : memref<8x4xf32, #tpu.memory_space<smem>>
    %495 = vector.broadcast %494 : f32 to vector<2x16x16xf32>
    %496 = arith.mulf %120, %495 : vector<2x16x16xf32>
    %c2_204 = arith.constant 2 : index
    %c1_205 = arith.constant 1 : index
    %497 = memref.load %arg4[%c2_204, %c1_205] : memref<8x4xf32, #tpu.memory_space<smem>>
    %498 = vector.broadcast %497 : f32 to vector<2x16x16xf32>
    %499 = arith.mulf %225, %498 : vector<2x16x16xf32>
    %500 = arith.addf %496, %499 : vector<2x16x16xf32>
    %c2_206 = arith.constant 2 : index
    %c2_207 = arith.constant 2 : index
    %501 = memref.load %arg4[%c2_206, %c2_207] : memref<8x4xf32, #tpu.memory_space<smem>>
    %502 = vector.broadcast %501 : f32 to vector<2x16x16xf32>
    %503 = arith.mulf %330, %502 : vector<2x16x16xf32>
    %504 = arith.addf %500, %503 : vector<2x16x16xf32>
    %c2_208 = arith.constant 2 : index
    %c3_209 = arith.constant 3 : index
    %505 = memref.load %arg4[%c2_208, %c3_209] : memref<8x4xf32, #tpu.memory_space<smem>>
    %506 = vector.broadcast %505 : f32 to vector<2x16x16xf32>
    %507 = arith.mulf %435, %506 : vector<2x16x16xf32>
    %508 = arith.addf %504, %507 : vector<2x16x16xf32>
    %c0_210 = arith.constant 0 : index
    %c2_211 = arith.constant 2 : index
    %c0_212 = arith.constant 0 : index
    %c0_213 = arith.constant 0 : index
    %509 = vector.load %arg5[%c0_210, %c2_211, %c0_212, %c0_213] : memref<2x8x16x16xf32, #tpu.memory_space<vmem>>, vector<2x1x16x16xf32>
    %510 = vector.shape_cast %509 : vector<2x1x16x16xf32> to vector<2x16x16xf32>
    %511 = vector.shape_cast %508 : vector<2x16x16xf32> to vector<2x1x16x16xf32>
    tpu.vector_store %arg5[%c0_210, %c2_211, %c0_212, %c0_213], %511 {strides = array<i32>} : memref<2x8x16x16xf32, #tpu.memory_space<vmem>>, vector<2x1x16x16xf32>,
    %cst_214 = arith.constant dense<0.000000e+00> : vector<16xf32>
    %512 = vector.multi_reduction <add>, %508, %cst_214 [0, 1] : vector<2x16x16xf32> to vector<16xf32>
    %513 = vector.shape_cast %512 : vector<16xf32> to vector<1x16xf32>
    %c0_215 = arith.constant 0 : index
    %c0_216 = arith.constant 0 : index
    %c2_217 = arith.constant 2 : index
    %c0_218 = arith.constant 0 : index
    %514 = vector.load %arg6[%c0_215, %c0_216, %c2_217, %c0_218] : memref<1x2x8x16xf32, #tpu.memory_space<vmem>>, vector<1x1x1x16xf32>
    %515 = vector.shape_cast %514 : vector<1x1x1x16xf32> to vector<1x16xf32>
    %516 = vector.shape_cast %513 : vector<1x16xf32> to vector<1x1x1x16xf32>
    tpu.vector_store %arg6[%c0_215, %c0_216, %c2_217, %c0_218], %516 {strides = array<i32>} : memref<1x2x8x16xf32, #tpu.memory_space<vmem>>, vector<1x1x1x16xf32>,
    %517 = arith.mulf %508, %508 : vector<2x16x16xf32>
    %cst_219 = arith.constant dense<0.000000e+00> : vector<16xf32>
    %518 = vector.multi_reduction <add>, %517, %cst_219 [0, 1] : vector<2x16x16xf32> to vector<16xf32>
    %519 = vector.shape_cast %518 : vector<16xf32> to vector<1x16xf32>
    %c0_220 = arith.constant 0 : index
    %c1_221 = arith.constant 1 : index
    %c2_222 = arith.constant 2 : index
    %c0_223 = arith.constant 0 : index
    %520 = vector.load %arg6[%c0_220, %c1_221, %c2_222, %c0_223] : memref<1x2x8x16xf32, #tpu.memory_space<vmem>>, vector<1x1x1x16xf32>
    %521 = vector.shape_cast %520 : vector<1x1x1x16xf32> to vector<1x16xf32>
    %522 = vector.shape_cast %519 : vector<1x16xf32> to vector<1x1x1x16xf32>
    tpu.vector_store %arg6[%c0_220, %c1_221, %c2_222, %c0_223], %522 {strides = array<i32>} : memref<1x2x8x16xf32, #tpu.memory_space<vmem>>, vector<1x1x1x16xf32>,
    %c3_224 = arith.constant 3 : index
    %c0_225 = arith.constant 0 : index
    %523 = memref.load %arg4[%c3_224, %c0_225] : memref<8x4xf32, #tpu.memory_space<smem>>
    %524 = vector.broadcast %523 : f32 to vector<2x16x16xf32>
    %525 = arith.mulf %120, %524 : vector<2x16x16xf32>
    %c3_226 = arith.constant 3 : index
    %c1_227 = arith.constant 1 : index
    %526 = memref.load %arg4[%c3_226, %c1_227] : memref<8x4xf32, #tpu.memory_space<smem>>
    %527 = vector.broadcast %526 : f32 to vector<2x16x16xf32>
    %528 = arith.mulf %225, %527 : vector<2x16x16xf32>
    %529 = arith.addf %525, %528 : vector<2x16x16xf32>
    %c3_228 = arith.constant 3 : index
    %c2_229 = arith.constant 2 : index
    %530 = memref.load %arg4[%c3_228, %c2_229] : memref<8x4xf32, #tpu.memory_space<smem>>
    %531 = vector.broadcast %530 : f32 to vector<2x16x16xf32>
    %532 = arith.mulf %330, %531 : vector<2x16x16xf32>
    %533 = arith.addf %529, %532 : vector<2x16x16xf32>
    %c3_230 = arith.constant 3 : index
    %c3_231 = arith.constant 3 : index
    %534 = memref.load %arg4[%c3_230, %c3_231] : memref<8x4xf32, #tpu.memory_space<smem>>
    %535 = vector.broadcast %534 : f32 to vector<2x16x16xf32>
    %536 = arith.mulf %435, %535 : vector<2x16x16xf32>
    %537 = arith.addf %533, %536 : vector<2x16x16xf32>
    %c0_232 = arith.constant 0 : index
    %c3_233 = arith.constant 3 : index
    %c0_234 = arith.constant 0 : index
    %c0_235 = arith.constant 0 : index
    %538 = vector.load %arg5[%c0_232, %c3_233, %c0_234, %c0_235] : memref<2x8x16x16xf32, #tpu.memory_space<vmem>>, vector<2x1x16x16xf32>
    %539 = vector.shape_cast %538 : vector<2x1x16x16xf32> to vector<2x16x16xf32>
    %540 = vector.shape_cast %537 : vector<2x16x16xf32> to vector<2x1x16x16xf32>
    tpu.vector_store %arg5[%c0_232, %c3_233, %c0_234, %c0_235], %540 {strides = array<i32>} : memref<2x8x16x16xf32, #tpu.memory_space<vmem>>, vector<2x1x16x16xf32>,
    %cst_236 = arith.constant dense<0.000000e+00> : vector<16xf32>
    %541 = vector.multi_reduction <add>, %537, %cst_236 [0, 1] : vector<2x16x16xf32> to vector<16xf32>
    %542 = vector.shape_cast %541 : vector<16xf32> to vector<1x16xf32>
    %c0_237 = arith.constant 0 : index
    %c0_238 = arith.constant 0 : index
    %c3_239 = arith.constant 3 : index
    %c0_240 = arith.constant 0 : index
    %543 = vector.load %arg6[%c0_237, %c0_238, %c3_239, %c0_240] : memref<1x2x8x16xf32, #tpu.memory_space<vmem>>, vector<1x1x1x16xf32>
    %544 = vector.shape_cast %543 : vector<1x1x1x16xf32> to vector<1x16xf32>
    %545 = vector.shape_cast %542 : vector<1x16xf32> to vector<1x1x1x16xf32>
    tpu.vector_store %arg6[%c0_237, %c0_238, %c3_239, %c0_240], %545 {strides = array<i32>} : memref<1x2x8x16xf32, #tpu.memory_space<vmem>>, vector<1x1x1x16xf32>,
    %546 = arith.mulf %537, %537 : vector<2x16x16xf32>
    %cst_241 = arith.constant dense<0.000000e+00> : vector<16xf32>
    %547 = vector.multi_reduction <add>, %546, %cst_241 [0, 1] : vector<2x16x16xf32> to vector<16xf32>
    %548 = vector.shape_cast %547 : vector<16xf32> to vector<1x16xf32>
    %c0_242 = arith.constant 0 : index
    %c1_243 = arith.constant 1 : index
    %c3_244 = arith.constant 3 : index
    %c0_245 = arith.constant 0 : index
    %549 = vector.load %arg6[%c0_242, %c1_243, %c3_244, %c0_245] : memref<1x2x8x16xf32, #tpu.memory_space<vmem>>, vector<1x1x1x16xf32>
    %550 = vector.shape_cast %549 : vector<1x1x1x16xf32> to vector<1x16xf32>
    %551 = vector.shape_cast %548 : vector<1x16xf32> to vector<1x1x1x16xf32>
    tpu.vector_store %arg6[%c0_242, %c1_243, %c3_244, %c0_245], %551 {strides = array<i32>} : memref<1x2x8x16xf32, #tpu.memory_space<vmem>>, vector<1x1x1x16xf32>,
    %c4_246 = arith.constant 4 : index
    %c0_247 = arith.constant 0 : index
    %552 = memref.load %arg4[%c4_246, %c0_247] : memref<8x4xf32, #tpu.memory_space<smem>>
    %553 = vector.broadcast %552 : f32 to vector<2x16x16xf32>
    %554 = arith.mulf %120, %553 : vector<2x16x16xf32>
    %c4_248 = arith.constant 4 : index
    %c1_249 = arith.constant 1 : index
    %555 = memref.load %arg4[%c4_248, %c1_249] : memref<8x4xf32, #tpu.memory_space<smem>>
    %556 = vector.broadcast %555 : f32 to vector<2x16x16xf32>
    %557 = arith.mulf %225, %556 : vector<2x16x16xf32>
    %558 = arith.addf %554, %557 : vector<2x16x16xf32>
    %c4_250 = arith.constant 4 : index
    %c2_251 = arith.constant 2 : index
    %559 = memref.load %arg4[%c4_250, %c2_251] : memref<8x4xf32, #tpu.memory_space<smem>>
    %560 = vector.broadcast %559 : f32 to vector<2x16x16xf32>
    %561 = arith.mulf %330, %560 : vector<2x16x16xf32>
    %562 = arith.addf %558, %561 : vector<2x16x16xf32>
    %c4_252 = arith.constant 4 : index
    %c3_253 = arith.constant 3 : index
    %563 = memref.load %arg4[%c4_252, %c3_253] : memref<8x4xf32, #tpu.memory_space<smem>>
    %564 = vector.broadcast %563 : f32 to vector<2x16x16xf32>
    %565 = arith.mulf %435, %564 : vector<2x16x16xf32>
    %566 = arith.addf %562, %565 : vector<2x16x16xf32>
    %c0_254 = arith.constant 0 : index
    %c4_255 = arith.constant 4 : index
    %c0_256 = arith.constant 0 : index
    %c0_257 = arith.constant 0 : index
    %567 = vector.load %arg5[%c0_254, %c4_255, %c0_256, %c0_257] : memref<2x8x16x16xf32, #tpu.memory_space<vmem>>, vector<2x1x16x16xf32>
    %568 = vector.shape_cast %567 : vector<2x1x16x16xf32> to vector<2x16x16xf32>
    %569 = vector.shape_cast %566 : vector<2x16x16xf32> to vector<2x1x16x16xf32>
    tpu.vector_store %arg5[%c0_254, %c4_255, %c0_256, %c0_257], %569 {strides = array<i32>} : memref<2x8x16x16xf32, #tpu.memory_space<vmem>>, vector<2x1x16x16xf32>,
    %cst_258 = arith.constant dense<0.000000e+00> : vector<16xf32>
    %570 = vector.multi_reduction <add>, %566, %cst_258 [0, 1] : vector<2x16x16xf32> to vector<16xf32>
    %571 = vector.shape_cast %570 : vector<16xf32> to vector<1x16xf32>
    %c0_259 = arith.constant 0 : index
    %c0_260 = arith.constant 0 : index
    %c4_261 = arith.constant 4 : index
    %c0_262 = arith.constant 0 : index
    %572 = vector.load %arg6[%c0_259, %c0_260, %c4_261, %c0_262] : memref<1x2x8x16xf32, #tpu.memory_space<vmem>>, vector<1x1x1x16xf32>
    %573 = vector.shape_cast %572 : vector<1x1x1x16xf32> to vector<1x16xf32>
    %574 = vector.shape_cast %571 : vector<1x16xf32> to vector<1x1x1x16xf32>
    tpu.vector_store %arg6[%c0_259, %c0_260, %c4_261, %c0_262], %574 {strides = array<i32>} : memref<1x2x8x16xf32, #tpu.memory_space<vmem>>, vector<1x1x1x16xf32>,
    %575 = arith.mulf %566, %566 : vector<2x16x16xf32>
    %cst_263 = arith.constant dense<0.000000e+00> : vector<16xf32>
    %576 = vector.multi_reduction <add>, %575, %cst_263 [0, 1] : vector<2x16x16xf32> to vector<16xf32>
    %577 = vector.shape_cast %576 : vector<16xf32> to vector<1x16xf32>
    %c0_264 = arith.constant 0 : index
    %c1_265 = arith.constant 1 : index
    %c4_266 = arith.constant 4 : index
    %c0_267 = arith.constant 0 : index
    %578 = vector.load %arg6[%c0_264, %c1_265, %c4_266, %c0_267] : memref<1x2x8x16xf32, #tpu.memory_space<vmem>>, vector<1x1x1x16xf32>
    %579 = vector.shape_cast %578 : vector<1x1x1x16xf32> to vector<1x16xf32>
    %580 = vector.shape_cast %577 : vector<1x16xf32> to vector<1x1x1x16xf32>
    tpu.vector_store %arg6[%c0_264, %c1_265, %c4_266, %c0_267], %580 {strides = array<i32>} : memref<1x2x8x16xf32, #tpu.memory_space<vmem>>, vector<1x1x1x16xf32>,
    %c5_268 = arith.constant 5 : index
    %c0_269 = arith.constant 0 : index
    %581 = memref.load %arg4[%c5_268, %c0_269] : memref<8x4xf32, #tpu.memory_space<smem>>
    %582 = vector.broadcast %581 : f32 to vector<2x16x16xf32>
    %583 = arith.mulf %120, %582 : vector<2x16x16xf32>
    %c5_270 = arith.constant 5 : index
    %c1_271 = arith.constant 1 : index
    %584 = memref.load %arg4[%c5_270, %c1_271] : memref<8x4xf32, #tpu.memory_space<smem>>
    %585 = vector.broadcast %584 : f32 to vector<2x16x16xf32>
    %586 = arith.mulf %225, %585 : vector<2x16x16xf32>
    %587 = arith.addf %583, %586 : vector<2x16x16xf32>
    %c5_272 = arith.constant 5 : index
    %c2_273 = arith.constant 2 : index
    %588 = memref.load %arg4[%c5_272, %c2_273] : memref<8x4xf32, #tpu.memory_space<smem>>
    %589 = vector.broadcast %588 : f32 to vector<2x16x16xf32>
    %590 = arith.mulf %330, %589 : vector<2x16x16xf32>
    %591 = arith.addf %587, %590 : vector<2x16x16xf32>
    %c5_274 = arith.constant 5 : index
    %c3_275 = arith.constant 3 : index
    %592 = memref.load %arg4[%c5_274, %c3_275] : memref<8x4xf32, #tpu.memory_space<smem>>
    %593 = vector.broadcast %592 : f32 to vector<2x16x16xf32>
    %594 = arith.mulf %435, %593 : vector<2x16x16xf32>
    %595 = arith.addf %591, %594 : vector<2x16x16xf32>
    %c0_276 = arith.constant 0 : index
    %c5_277 = arith.constant 5 : index
    %c0_278 = arith.constant 0 : index
    %c0_279 = arith.constant 0 : index
    %596 = vector.load %arg5[%c0_276, %c5_277, %c0_278, %c0_279] : memref<2x8x16x16xf32, #tpu.memory_space<vmem>>, vector<2x1x16x16xf32>
    %597 = vector.shape_cast %596 : vector<2x1x16x16xf32> to vector<2x16x16xf32>
    %598 = vector.shape_cast %595 : vector<2x16x16xf32> to vector<2x1x16x16xf32>
    tpu.vector_store %arg5[%c0_276, %c5_277, %c0_278, %c0_279], %598 {strides = array<i32>} : memref<2x8x16x16xf32, #tpu.memory_space<vmem>>, vector<2x1x16x16xf32>,
    %cst_280 = arith.constant dense<0.000000e+00> : vector<16xf32>
    %599 = vector.multi_reduction <add>, %595, %cst_280 [0, 1] : vector<2x16x16xf32> to vector<16xf32>
    %600 = vector.shape_cast %599 : vector<16xf32> to vector<1x16xf32>
    %c0_281 = arith.constant 0 : index
    %c0_282 = arith.constant 0 : index
    %c5_283 = arith.constant 5 : index
    %c0_284 = arith.constant 0 : index
    %601 = vector.load %arg6[%c0_281, %c0_282, %c5_283, %c0_284] : memref<1x2x8x16xf32, #tpu.memory_space<vmem>>, vector<1x1x1x16xf32>
    %602 = vector.shape_cast %601 : vector<1x1x1x16xf32> to vector<1x16xf32>
    %603 = vector.shape_cast %600 : vector<1x16xf32> to vector<1x1x1x16xf32>
    tpu.vector_store %arg6[%c0_281, %c0_282, %c5_283, %c0_284], %603 {strides = array<i32>} : memref<1x2x8x16xf32, #tpu.memory_space<vmem>>, vector<1x1x1x16xf32>,
    %604 = arith.mulf %595, %595 : vector<2x16x16xf32>
    %cst_285 = arith.constant dense<0.000000e+00> : vector<16xf32>
    %605 = vector.multi_reduction <add>, %604, %cst_285 [0, 1] : vector<2x16x16xf32> to vector<16xf32>
    %606 = vector.shape_cast %605 : vector<16xf32> to vector<1x16xf32>
    %c0_286 = arith.constant 0 : index
    %c1_287 = arith.constant 1 : index
    %c5_288 = arith.constant 5 : index
    %c0_289 = arith.constant 0 : index
    %607 = vector.load %arg6[%c0_286, %c1_287, %c5_288, %c0_289] : memref<1x2x8x16xf32, #tpu.memory_space<vmem>>, vector<1x1x1x16xf32>
    %608 = vector.shape_cast %607 : vector<1x1x1x16xf32> to vector<1x16xf32>
    %609 = vector.shape_cast %606 : vector<1x16xf32> to vector<1x1x1x16xf32>
    tpu.vector_store %arg6[%c0_286, %c1_287, %c5_288, %c0_289], %609 {strides = array<i32>} : memref<1x2x8x16xf32, #tpu.memory_space<vmem>>, vector<1x1x1x16xf32>,
    %c6_290 = arith.constant 6 : index
    %c0_291 = arith.constant 0 : index
    %610 = memref.load %arg4[%c6_290, %c0_291] : memref<8x4xf32, #tpu.memory_space<smem>>
    %611 = vector.broadcast %610 : f32 to vector<2x16x16xf32>
    %612 = arith.mulf %120, %611 : vector<2x16x16xf32>
    %c6_292 = arith.constant 6 : index
    %c1_293 = arith.constant 1 : index
    %613 = memref.load %arg4[%c6_292, %c1_293] : memref<8x4xf32, #tpu.memory_space<smem>>
    %614 = vector.broadcast %613 : f32 to vector<2x16x16xf32>
    %615 = arith.mulf %225, %614 : vector<2x16x16xf32>
    %616 = arith.addf %612, %615 : vector<2x16x16xf32>
    %c6_294 = arith.constant 6 : index
    %c2_295 = arith.constant 2 : index
    %617 = memref.load %arg4[%c6_294, %c2_295] : memref<8x4xf32, #tpu.memory_space<smem>>
    %618 = vector.broadcast %617 : f32 to vector<2x16x16xf32>
    %619 = arith.mulf %330, %618 : vector<2x16x16xf32>
    %620 = arith.addf %616, %619 : vector<2x16x16xf32>
    %c6_296 = arith.constant 6 : index
    %c3_297 = arith.constant 3 : index
    %621 = memref.load %arg4[%c6_296, %c3_297] : memref<8x4xf32, #tpu.memory_space<smem>>
    %622 = vector.broadcast %621 : f32 to vector<2x16x16xf32>
    %623 = arith.mulf %435, %622 : vector<2x16x16xf32>
    %624 = arith.addf %620, %623 : vector<2x16x16xf32>
    %c0_298 = arith.constant 0 : index
    %c6_299 = arith.constant 6 : index
    %c0_300 = arith.constant 0 : index
    %c0_301 = arith.constant 0 : index
    %625 = vector.load %arg5[%c0_298, %c6_299, %c0_300, %c0_301] : memref<2x8x16x16xf32, #tpu.memory_space<vmem>>, vector<2x1x16x16xf32>
    %626 = vector.shape_cast %625 : vector<2x1x16x16xf32> to vector<2x16x16xf32>
    %627 = vector.shape_cast %624 : vector<2x16x16xf32> to vector<2x1x16x16xf32>
    tpu.vector_store %arg5[%c0_298, %c6_299, %c0_300, %c0_301], %627 {strides = array<i32>} : memref<2x8x16x16xf32, #tpu.memory_space<vmem>>, vector<2x1x16x16xf32>,
    %cst_302 = arith.constant dense<0.000000e+00> : vector<16xf32>
    %628 = vector.multi_reduction <add>, %624, %cst_302 [0, 1] : vector<2x16x16xf32> to vector<16xf32>
    %629 = vector.shape_cast %628 : vector<16xf32> to vector<1x16xf32>
    %c0_303 = arith.constant 0 : index
    %c0_304 = arith.constant 0 : index
    %c6_305 = arith.constant 6 : index
    %c0_306 = arith.constant 0 : index
    %630 = vector.load %arg6[%c0_303, %c0_304, %c6_305, %c0_306] : memref<1x2x8x16xf32, #tpu.memory_space<vmem>>, vector<1x1x1x16xf32>
    %631 = vector.shape_cast %630 : vector<1x1x1x16xf32> to vector<1x16xf32>
    %632 = vector.shape_cast %629 : vector<1x16xf32> to vector<1x1x1x16xf32>
    tpu.vector_store %arg6[%c0_303, %c0_304, %c6_305, %c0_306], %632 {strides = array<i32>} : memref<1x2x8x16xf32, #tpu.memory_space<vmem>>, vector<1x1x1x16xf32>,
    %633 = arith.mulf %624, %624 : vector<2x16x16xf32>
    %cst_307 = arith.constant dense<0.000000e+00> : vector<16xf32>
    %634 = vector.multi_reduction <add>, %633, %cst_307 [0, 1] : vector<2x16x16xf32> to vector<16xf32>
    %635 = vector.shape_cast %634 : vector<16xf32> to vector<1x16xf32>
    %c0_308 = arith.constant 0 : index
    %c1_309 = arith.constant 1 : index
    %c6_310 = arith.constant 6 : index
    %c0_311 = arith.constant 0 : index
    %636 = vector.load %arg6[%c0_308, %c1_309, %c6_310, %c0_311] : memref<1x2x8x16xf32, #tpu.memory_space<vmem>>, vector<1x1x1x16xf32>
    %637 = vector.shape_cast %636 : vector<1x1x1x16xf32> to vector<1x16xf32>
    %638 = vector.shape_cast %635 : vector<1x16xf32> to vector<1x1x1x16xf32>
    tpu.vector_store %arg6[%c0_308, %c1_309, %c6_310, %c0_311], %638 {strides = array<i32>} : memref<1x2x8x16xf32, #tpu.memory_space<vmem>>, vector<1x1x1x16xf32>,
    %c7_312 = arith.constant 7 : index
    %c0_313 = arith.constant 0 : index
    %639 = memref.load %arg4[%c7_312, %c0_313] : memref<8x4xf32, #tpu.memory_space<smem>>
    %640 = vector.broadcast %639 : f32 to vector<2x16x16xf32>
    %641 = arith.mulf %120, %640 : vector<2x16x16xf32>
    %c7_314 = arith.constant 7 : index
    %c1_315 = arith.constant 1 : index
    %642 = memref.load %arg4[%c7_314, %c1_315] : memref<8x4xf32, #tpu.memory_space<smem>>
    %643 = vector.broadcast %642 : f32 to vector<2x16x16xf32>
    %644 = arith.mulf %225, %643 : vector<2x16x16xf32>
    %645 = arith.addf %641, %644 : vector<2x16x16xf32>
    %c7_316 = arith.constant 7 : index
    %c2_317 = arith.constant 2 : index
    %646 = memref.load %arg4[%c7_316, %c2_317] : memref<8x4xf32, #tpu.memory_space<smem>>
    %647 = vector.broadcast %646 : f32 to vector<2x16x16xf32>
    %648 = arith.mulf %330, %647 : vector<2x16x16xf32>
    %649 = arith.addf %645, %648 : vector<2x16x16xf32>
    %c7_318 = arith.constant 7 : index
    %c3_319 = arith.constant 3 : index
    %650 = memref.load %arg4[%c7_318, %c3_319] : memref<8x4xf32, #tpu.memory_space<smem>>
    %651 = vector.broadcast %650 : f32 to vector<2x16x16xf32>
    %652 = arith.mulf %435, %651 : vector<2x16x16xf32>
    %653 = arith.addf %649, %652 : vector<2x16x16xf32>
    %c0_320 = arith.constant 0 : index
    %c7_321 = arith.constant 7 : index
    %c0_322 = arith.constant 0 : index
    %c0_323 = arith.constant 0 : index
    %654 = vector.load %arg5[%c0_320, %c7_321, %c0_322, %c0_323] : memref<2x8x16x16xf32, #tpu.memory_space<vmem>>, vector<2x1x16x16xf32>
    %655 = vector.shape_cast %654 : vector<2x1x16x16xf32> to vector<2x16x16xf32>
    %656 = vector.shape_cast %653 : vector<2x16x16xf32> to vector<2x1x16x16xf32>
    tpu.vector_store %arg5[%c0_320, %c7_321, %c0_322, %c0_323], %656 {strides = array<i32>} : memref<2x8x16x16xf32, #tpu.memory_space<vmem>>, vector<2x1x16x16xf32>,
    %cst_324 = arith.constant dense<0.000000e+00> : vector<16xf32>
    %657 = vector.multi_reduction <add>, %653, %cst_324 [0, 1] : vector<2x16x16xf32> to vector<16xf32>
    %658 = vector.shape_cast %657 : vector<16xf32> to vector<1x16xf32>
    %c0_325 = arith.constant 0 : index
    %c0_326 = arith.constant 0 : index
    %c7_327 = arith.constant 7 : index
    %c0_328 = arith.constant 0 : index
    %659 = vector.load %arg6[%c0_325, %c0_326, %c7_327, %c0_328] : memref<1x2x8x16xf32, #tpu.memory_space<vmem>>, vector<1x1x1x16xf32>
    %660 = vector.shape_cast %659 : vector<1x1x1x16xf32> to vector<1x16xf32>
    %661 = vector.shape_cast %658 : vector<1x16xf32> to vector<1x1x1x16xf32>
    tpu.vector_store %arg6[%c0_325, %c0_326, %c7_327, %c0_328], %661 {strides = array<i32>} : memref<1x2x8x16xf32, #tpu.memory_space<vmem>>, vector<1x1x1x16xf32>,
    %662 = arith.mulf %653, %653 : vector<2x16x16xf32>
    %cst_329 = arith.constant dense<0.000000e+00> : vector<16xf32>
    %663 = vector.multi_reduction <add>, %662, %cst_329 [0, 1] : vector<2x16x16xf32> to vector<16xf32>
    %664 = vector.shape_cast %663 : vector<16xf32> to vector<1x16xf32>
    %c0_330 = arith.constant 0 : index
    %c1_331 = arith.constant 1 : index
    %c7_332 = arith.constant 7 : index
    %c0_333 = arith.constant 0 : index
    %665 = vector.load %arg6[%c0_330, %c1_331, %c7_332, %c0_333] : memref<1x2x8x16xf32, #tpu.memory_space<vmem>>, vector<1x1x1x16xf32>
    %666 = vector.shape_cast %665 : vector<1x1x1x16xf32> to vector<1x16xf32>
    %667 = vector.shape_cast %664 : vector<1x16xf32> to vector<1x1x1x16xf32>
    tpu.vector_store %arg6[%c0_330, %c1_331, %c7_332, %c0_333], %667 {strides = array<i32>} : memref<1x2x8x16xf32, #tpu.memory_space<vmem>>, vector<1x1x1x16xf32>,
    return
  }
  func.func @transform_0(%arg0: i32) -> (i32, i32, i32, i32) {
    %c0_i32 = arith.constant 0 : i32
    %c0_i32_0 = arith.constant 0 : i32
    %c0_i32_1 = arith.constant 0 : i32
    %c0_i32_2 = arith.constant 0 : i32
    return %c0_i32, %c0_i32_0, %c0_i32_1, %arg0 : i32, i32, i32, i32
  }
  func.func @transform_1(%arg0: i32) -> (i32, i32, i32, i32) {
    %c0_i32 = arith.constant 0 : i32
    %c0_i32_0 = arith.constant 0 : i32
    %c0_i32_1 = arith.constant 0 : i32
    %c0_i32_2 = arith.constant 0 : i32
    return %arg0, %c0_i32, %c0_i32_0, %c0_i32_1 : i32, i32, i32, i32
  }
  func.func @transform_2(%arg0: i32) -> (i32, i32) {
    %c0_i32 = arith.constant 0 : i32
    %c0_i32_0 = arith.constant 0 : i32
    %c0_i32_1 = arith.constant 0 : i32
    return %c0_i32, %c0_i32_0 : i32, i32
  }
  func.func @transform_3(%arg0: i32) -> (i32, i32) {
    %c0_i32 = arith.constant 0 : i32
    %c0_i32_0 = arith.constant 0 : i32
    %c0_i32_1 = arith.constant 0 : i32
    return %c0_i32, %c0_i32_0 : i32, i32
  }
  func.func @transform_4(%arg0: i32) -> (i32, i32, i32, i32) {
    %c0_i32 = arith.constant 0 : i32
    %c0_i32_0 = arith.constant 0 : i32
    %c0_i32_1 = arith.constant 0 : i32
    %c0_i32_2 = arith.constant 0 : i32
    return %c0_i32, %c0_i32_0, %c0_i32_1, %arg0 : i32, i32, i32, i32
  }
  func.func @transform_5(%arg0: i32) -> (i32, i32, i32, i32) {
    %c0_i32 = arith.constant 0 : i32
    %c0_i32_0 = arith.constant 0 : i32
    %c0_i32_1 = arith.constant 0 : i32
    %c0_i32_2 = arith.constant 0 : i32
    return %arg0, %c0_i32, %c0_i32_0, %c0_i32_1 : i32, i32, i32, i32
  }
}

</mosaic_0001>

<llo_original>
// kernel: conv_step_forward.3
$region0: #{conv_step_forward.3}
  #allocation0 [shape = 'u32[]', space=smem, size = 0x4, offset = 0x4, fixed_abs, tag = 'smem constant byte address 0x4 - core index']
  #allocation1 [shape = 'u32[144,128]{1,0:T(1,128)}', space=vmem, size = 0x12000, scoped, tag = 'internal scratch']
  %s0 = inlined_call_operand.vmem [shape: f32[2,8,16,16], index: 0, kind: input, shape index: {}]
  %s1 = inlined_call_operand.vmem [shape: f32[8], index: 1, kind: input, shape index: {}]
  %s2 = inlined_call_operand.vmem [shape: f32[8], index: 2, kind: input, shape index: {}]
  %s3 = inlined_call_operand.hbm [shape: f32[2,8,16,16], index: 3, kind: output, shape index: {}]
  %s4 = sld [smem:[#allocation0]]
  $region30: #{conv_step_forward.3} parent=0
    _
  %s6 = ssub.s32 1, %s4
  %s7 = scalar_select 0, %s6, %s4
  $region1: #{conv_step_forward.3} parent=0
    #allocation2 [shape = 'u8[512]{0}', space=smem, size = 0x200, scoped, tag = 'input window, operand 1, single buffered']
    #allocation3 [shape = 's32[1]{0}', space=sflag, size = 0x4, scoped, tag = 'scoped memory for conv_step_forward.3']
    #allocation4 [shape = 's32[1]{0}', space=sflag, size = 0x4, scoped, tag = 'scoped memory for conv_step_forward.3']
    #allocation5 [shape = 'u8[512]{0}', space=smem, size = 0x200, scoped, tag = 'input window, operand 2, single buffered']
    #allocation6 [shape = 's32[1]{0}', space=sflag, size = 0x4, scoped, tag = 'scoped memory for conv_step_forward.3']
    #allocation7 [shape = 'u8[131072]{0}', space=vmem, size = 0x20000, scoped, tag = 'output window, operand 0, single buffered']
    %8 = vsyncpa [#allocation4], 0
    %9 = vsyncpa [#allocation6], 0
    %10 = vsyncpa [#allocation3], 0
    // Predicated region
    $region2: #{conv_step_forward.3} parent=1 // pred_check
      _
    $region3: #{conv_step_forward.3} parent=1 // pred_check_branch
      %12 = sbr.rel (0) target = $region5
    $region4: #{conv_step_forward.3} parent=1 // pred_region
      _
    $region5: #{conv_step_forward.3} parent=1 // pred_fallthru
      _
    // Predicated region
    $region6: #{conv_step_forward.3} parent=1 // pred_check
      _
    $region7: #{conv_step_forward.3} parent=1 // pred_check_branch
      %14 = sbr.rel (0) target = $region9
    $region8: #{conv_step_forward.3} parent=1 // pred_region
      %s16 = ssub.s32 16, 16
      %17 = vsyncadd [#allocation4], %s16
      %s19 = sshll.u32 %s1, 4
      %s20 = int_to_ptr.vmem [resolvable:$true] %s19
      %22 = dma.vmem_to_smem %s20, 16, [#allocation2], [#allocation4]
    $region9: #{conv_step_forward.3} parent=1 // pred_fallthru
      _
    // Predicated region
    $region10: #{conv_step_forward.3} parent=1 // pred_check
      _
    $region11: #{conv_step_forward.3} parent=1 // pred_check_branch
      %24 = sbr.rel (0) target = $region13
    $region12: #{conv_step_forward.3} parent=1 // pred_region
      %s26 = ssub.s32 16, 16
      %27 = vsyncadd [#allocation6], %s26
      %s29 = sshll.u32 %s2, 4
      %s30 = int_to_ptr.vmem [resolvable:$true] %s29
      %32 = dma.vmem_to_smem %s30, 16, [#allocation5], [#allocation6]
    $region13: #{conv_step_forward.3} parent=1 // pred_fallthru
      _
    // Predicated region
    $region14: #{conv_step_forward.3} parent=1 // pred_check
      _
    $region15: #{conv_step_forward.3} parent=1 // pred_check_branch
      %34 = sbr.rel (0) target = $region17
    $region16: #{conv_step_forward.3} parent=1 // pred_region
      %35 = dma.done [#allocation4], 16
    $region17: #{conv_step_forward.3} parent=1 // pred_fallthru
      _
    // Predicated region
    $region18: #{conv_step_forward.3} parent=1 // pred_check
      _
    $region19: #{conv_step_forward.3} parent=1 // pred_check_branch
      %37 = sbr.rel (0) target = $region21
    $region20: #{conv_step_forward.3} parent=1 // pred_region
      %38 = dma.done [#allocation6], 16
    $region21: #{conv_step_forward.3} parent=1 // pred_fallthru
      _
    %39 = sfence
    %v40 = vld [vmem:[%s0] sm:$0xff]
    %v41 = vld [vmem:[%s0 + $0x8] sm:$0xff]
    %v42 = vld [vmem:[%s0 + $0x80] sm:$0xff]
    %v43 = vld [vmem:[%s0 + $0x88] sm:$0xff]
    %s44 = sld [smem:[#allocation2]]
    %v45 = vstv %s44
    %v46 = vmul.f32 %v40, %v45
    %v47 = vmul.f32 %v41, %v45
    %v48 = vmul.f32 %v42, %v45
    %v49 = vmul.f32 %v43, %v45
    %s50 = sld [smem:[#allocation5]]
    %v51 = vstv %s50
    %v52 = vadd.f32 %v46, %v51
    %v53 = vadd.f32 %v47, %v51
    %v54 = vadd.f32 %v48, %v51
    %v55 = vadd.f32 %v49, %v51
    %vm56 = vcmask 130048
    %57 = vst.msk [vmem:[#allocation7] sm:$0xff] %vm56, %v52
    %58 = vst.msk [vmem:[#allocation7 + $0x8] sm:$0xff] %vm56, %v53
    %59 = vst.msk [vmem:[#allocation7 + $0x80] sm:$0xff] %vm56, %v54
    %60 = vst.msk [vmem:[#allocation7 + $0x88] sm:$0xff] %vm56, %v55
    %s61 = scalar_lea.vmem %s0, 16
    %v62 = vld [vmem:[%s61] sm:$0xff]
    %v63 = vld [vmem:[%s61 + $0x8] sm:$0xff]
    %v64 = vld [vmem:[%s61 + $0x80] sm:$0xff]
    %v65 = vld [vmem:[%s61 + $0x88] sm:$0xff]
    %s66 = sld [smem:[#allocation2 + $0x1]]
    %v67 = vstv %s66
    %v68 = vmul.f32 %v62, %v67
    %v69 = vmul.f32 %v63, %v67
    %v70 = vmul.f32 %v64, %v67
    %v71 = vmul.f32 %v65, %v67
    %s72 = sld [smem:[#allocation5 + $0x1]]
    %v73 = vstv %s72
    %v74 = vadd.f32 %v68, %v73
    %v75 = vadd.f32 %v69, %v73
    %v76 = vadd.f32 %v70, %v73
    %v77 = vadd.f32 %v71, %v73
    %s78 = scalar_lea.vmem [#allocation7], 16
    %79 = vst.msk [vmem:[%s78] sm:$0xff] %vm56, %v74
    %80 = vst.msk [vmem:[%s78 + $0x8] sm:$0xff] %vm56, %v75
    %81 = vst.msk [vmem:[%s78 + $0x80] sm:$0xff] %vm56, %v76
    %82 = vst.msk [vmem:[%s78 + $0x88] sm:$0xff] %vm56, %v77
    %s83 = scalar_lea.vmem %s0, 32
    %v84 = vld [vmem:[%s83] sm:$0xff]
    %v85 = vld [vmem:[%s83 + $0x8] sm:$0xff]
    %v86 = vld [vmem:[%s83 + $0x80] sm:$0xff]
    %v87 = vld [vmem:[%s83 + $0x88] sm:$0xff]
    %s88 = sld [smem:[#allocation2 + $0x2]]
    %v89 = vstv %s88
    %v90 = vmul.f32 %v84, %v89
    %v91 = vmul.f32 %v85, %v89
    %v92 = vmul.f32 %v86, %v89
    %v93 = vmul.f32 %v87, %v89
    %s94 = sld [smem:[#allocation5 + $0x2]]
    %v95 = vstv %s94
    %v96 = vadd.f32 %v90, %v95
    %v97 = vadd.f32 %v91, %v95
    %v98 = vadd.f32 %v92, %v95
    %v99 = vadd.f32 %v93, %v95
    %s100 = scalar_lea.vmem [#allocation7], 32
    %101 = vst.msk [vmem:[%s100] sm:$0xff] %vm56, %v96
    %102 = vst.msk [vmem:[%s100 + $0x8] sm:$0xff] %vm56, %v97
    %103 = vst.msk [vmem:[%s100 + $0x80] sm:$0xff] %vm56, %v98
    %104 = vst.msk [vmem:[%s100 + $0x88] sm:$0xff] %vm56, %v99
    %s105 = scalar_lea.vmem %s0, 48
    %v106 = vld [vmem:[%s105] sm:$0xff]
    %v107 = vld [vmem:[%s105 + $0x8] sm:$0xff]
    %v108 = vld [vmem:[%s105 + $0x80] sm:$0xff]
    %v109 = vld [vmem:[%s105 + $0x88] sm:$0xff]
    %s110 = sld [smem:[#allocation2 + $0x3]]
    %v111 = vstv %s110
    %v112 = vmul.f32 %v106, %v111
    %v113 = vmul.f32 %v107, %v111
    %v114 = vmul.f32 %v108, %v111
    %v115 = vmul.f32 %v109, %v111
    %s116 = sld [smem:[#allocation5 + $0x3]]
    %v117 = vstv %s116
    %v118 = vadd.f32 %v112, %v117
    %v119 = vadd.f32 %v113, %v117
    %v120 = vadd.f32 %v114, %v117
    %v121 = vadd.f32 %v115, %v117
    %s122 = scalar_lea.vmem [#allocation7], 48
    %123 = vst.msk [vmem:[%s122] sm:$0xff] %vm56, %v118
    %124 = vst.msk [vmem:[%s122 + $0x8] sm:$0xff] %vm56, %v119
    %125 = vst.msk [vmem:[%s122 + $0x80] sm:$0xff] %vm56, %v120
    %126 = vst.msk [vmem:[%s122 + $0x88] sm:$0xff] %vm56, %v121
    %s127 = scalar_lea.vmem %s0, 64
    %v128 = vld [vmem:[%s127] sm:$0xff]
    %v129 = vld [vmem:[%s127 + $0x8] sm:$0xff]
    %v130 = vld [vmem:[%s127 + $0x80] sm:$0xff]
    %v131 = vld [vmem:[%s127 + $0x88] sm:$0xff]
    %s132 = sld [smem:[#allocation2 + $0x4]]
    %v133 = vstv %s132
    %v134 = vmul.f32 %v128, %v133
    %v135 = vmul.f32 %v129, %v133
    %v136 = vmul.f32 %v130, %v133
    %v137 = vmul.f32 %v131, %v133
    %s138 = sld [smem:[#allocation5 + $0x4]]
    %v139 = vstv %s138
    %v140 = vadd.f32 %v134, %v139
    %v141 = vadd.f32 %v135, %v139
    %v142 = vadd.f32 %v136, %v139
    %v143 = vadd.f32 %v137, %v139
    %s144 = scalar_lea.vmem [#allocation7], 64
    %145 = vst.msk [vmem:[%s144] sm:$0xff] %vm56, %v140
    %146 = vst.msk [vmem:[%s144 + $0x8] sm:$0xff] %vm56, %v141
    %147 = vst.msk [vmem:[%s144 + $0x80] sm:$0xff] %vm56, %v142
    %148 = vst.msk [vmem:[%s144 + $0x88] sm:$0xff] %vm56, %v143
    %s149 = scalar_lea.vmem %s0, 80
    %v150 = vld [vmem:[%s149] sm:$0xff]
    %v151 = vld [vmem:[%s149 + $0x8] sm:$0xff]
    %v152 = vld [vmem:[%s149 + $0x80] sm:$0xff]
    %v153 = vld [vmem:[%s149 + $0x88] sm:$0xff]
    %s154 = sld [smem:[#allocation2 + $0x5]]
    %v155 = vstv %s154
    %v156 = vmul.f32 %v150, %v155
    %v157 = vmul.f32 %v151, %v155
    %v158 = vmul.f32 %v152, %v155
    %v159 = vmul.f32 %v153, %v155
    %s160 = sld [smem:[#allocation5 + $0x5]]
    %v161 = vstv %s160
    %v162 = vadd.f32 %v156, %v161
    %v163 = vadd.f32 %v157, %v161
    %v164 = vadd.f32 %v158, %v161
    %v165 = vadd.f32 %v159, %v161
    %s166 = scalar_lea.vmem [#allocation7], 80
    %167 = vst.msk [vmem:[%s166] sm:$0xff] %vm56, %v162
    %168 = vst.msk [vmem:[%s166 + $0x8] sm:$0xff] %vm56, %v163
    %169 = vst.msk [vmem:[%s166 + $0x80] sm:$0xff] %vm56, %v164
    %170 = vst.msk [vmem:[%s166 + $0x88] sm:$0xff] %vm56, %v165
    %s171 = scalar_lea.vmem %s0, 96
    %v172 = vld [vmem:[%s171] sm:$0xff]
    %v173 = vld [vmem:[%s171 + $0x8] sm:$0xff]
    %v174 = vld [vmem:[%s171 + $0x80] sm:$0xff]
    %v175 = vld [vmem:[%s171 + $0x88] sm:$0xff]
    %s176 = sld [smem:[#allocation2 + $0x6]]
    %v177 = vstv %s176
    %v178 = vmul.f32 %v172, %v177
    %v179 = vmul.f32 %v173, %v177
    %v180 = vmul.f32 %v174, %v177
    %v181 = vmul.f32 %v175, %v177
    %s182 = sld [smem:[#allocation5 + $0x6]]
    %v183 = vstv %s182
    %v184 = vadd.f32 %v178, %v183
    %v185 = vadd.f32 %v179, %v183
    %v186 = vadd.f32 %v180, %v183
    %v187 = vadd.f32 %v181, %v183
    %s188 = scalar_lea.vmem [#allocation7], 96
    %189 = vst.msk [vmem:[%s188] sm:$0xff] %vm56, %v184
    %190 = vst.msk [vmem:[%s188 + $0x8] sm:$0xff] %vm56, %v185
    %191 = vst.msk [vmem:[%s188 + $0x80] sm:$0xff] %vm56, %v186
    %192 = vst.msk [vmem:[%s188 + $0x88] sm:$0xff] %vm56, %v187
    %s193 = scalar_lea.vmem %s0, 112
    %v194 = vld [vmem:[%s193] sm:$0xff]
    %v195 = vld [vmem:[%s193 + $0x8] sm:$0xff]
    %v196 = vld [vmem:[%s193 + $0x80] sm:$0xff]
    %v197 = vld [vmem:[%s193 + $0x88] sm:$0xff]
    %s198 = sld [smem:[#allocation2 + $0x7]]
    %v199 = vstv %s198
    %v200 = vmul.f32 %v194, %v199
    %v201 = vmul.f32 %v195, %v199
    %v202 = vmul.f32 %v196, %v199
    %v203 = vmul.f32 %v197, %v199
    %s204 = sld [smem:[#allocation5 + $0x7]]
    %v205 = vstv %s204
    %v206 = vadd.f32 %v200, %v205
    %v207 = vadd.f32 %v201, %v205
    %v208 = vadd.f32 %v202, %v205
    %v209 = vadd.f32 %v203, %v205
    %s210 = scalar_lea.vmem [#allocation7], 112
    %211 = vst.msk [vmem:[%s210] sm:$0xff] %vm56, %v206
    %212 = vst.msk [vmem:[%s210 + $0x8] sm:$0xff] %vm56, %v207
    %213 = vst.msk [vmem:[%s210 + $0x80] sm:$0xff] %vm56, %v208
    %214 = vst.msk [vmem:[%s210 + $0x88] sm:$0xff] %vm56, %v209
    // Predicated region
    $region22: #{conv_step_forward.3} parent=1 // pred_check
      _
    $region23: #{conv_step_forward.3} parent=1 // pred_check_branch
      %216 = sbr.rel (0) target = $region25
    $region24: #{conv_step_forward.3} parent=1 // pred_region
      %s218 = ssub.s32 4096, 4096
      %219 = vsyncadd [#allocation3], %s218
      %s220 = sshll.u32 [#allocation7], 4
      %s221 = int_to_ptr.vmem [resolvable:$true] %s220
      %226 = dma.vmem_to_hbm [thread:$0]  %s221, 4096, %s3, [#allocation3], 128, 128, 8
    $region25: #{conv_step_forward.3} parent=1 // pred_fallthru
      _
    // Predicated region
    $region26: #{conv_step_forward.3} parent=1 // pred_check
      _
    $region27: #{conv_step_forward.3} parent=1 // pred_check_branch
      %228 = sbr.rel (0) target = $region29
    $region28: #{conv_step_forward.3} parent=1 // pred_region
      %229 = dma.done [#allocation3], 4096
    $region29: #{conv_step_forward.3} parent=1 // pred_fallthru
      _
    %230 = vsyncpa [#allocation3], 1
    %231 = vsyncpa [#allocation4], 1
    %232 = vsyncpa [#allocation6], 1

// kernel: conv_step_forward.2
$region0: #{conv_step_forward.2}
  #allocation0 [shape = 'u32[]', space=smem, size = 0x4, offset = 0x4, fixed_abs, tag = 'smem constant byte address 0x4 - core index']
  #allocation1 [shape = 'u32[144,128]{1,0:T(1,128)}', space=vmem, size = 0x12000, scoped, tag = 'internal scratch']
  %s0 = inlined_call_operand.vmem [shape: f32[2,4,16,16], index: 0, kind: input, shape index: {}]
  %s1 = inlined_call_operand.vmem [shape: f32[1,8,16,2], index: 1, kind: input, shape index: {}]
  %s2 = inlined_call_operand.vmem [shape: f32[4,9], index: 2, kind: input, shape index: {}]
  %s3 = inlined_call_operand.vmem [shape: f32[8,4], index: 3, kind: input, shape index: {}]
  %s4 = inlined_call_operand.vmem [shape: f32[2,8,16,16], index: 4, kind: output, shape index: {0}]
  %s5 = inlined_call_operand.vmem [shape: f32[1,2,8,16], index: 5, kind: output, shape index: {1}]
  %6 = xla_tuple %s4, %s5
  %s7 = sld [smem:[#allocation0]]
  $region42: #{conv_step_forward.2} parent=0
    _
  %s9 = ssub.s32 1, %s7
  %s10 = scalar_select 0, %s9, %s7
  $region1: #{conv_step_forward.2} parent=0
    #allocation2 [shape = 'u8[2048]{0}', space=smem, size = 0x800, scoped, tag = 'input window, operand 2, single buffered']
    #allocation3 [shape = 's32[1]{0}', space=sflag, size = 0x4, scoped, tag = 'scoped memory for conv_step_forward.2']
    #allocation4 [shape = 'u8[4096]{0}', space=smem, size = 0x1000, scoped, tag = 'input window, operand 3, single buffered']
    #allocation5 [shape = 's32[1]{0}', space=sflag, size = 0x4, scoped, tag = 'scoped memory for conv_step_forward.2']
    %11 = vsyncpa [#allocation3], 0
    %12 = vsyncpa [#allocation5], 0
    // Predicated region
    $region2: #{conv_step_forward.2} parent=1 // pred_check
      _
    $region3: #{conv_step_forward.2} parent=1 // pred_check_branch
      %14 = sbr.rel (0) target = $region5
    $region4: #{conv_step_forward.2} parent=1 // pred_region
      _
    $region5: #{conv_step_forward.2} parent=1 // pred_fallthru
      _
    // Predicated region
    $region6: #{conv_step_forward.2} parent=1 // pred_check
      _
    $region7: #{conv_step_forward.2} parent=1 // pred_check_branch
      %16 = sbr.rel (0) target = $region9
    $region8: #{conv_step_forward.2} parent=1 // pred_region
      _
    $region9: #{conv_step_forward.2} parent=1 // pred_fallthru
      _
    // Predicated region
    $region10: #{conv_step_forward.2} parent=1 // pred_check
      _
    $region11: #{conv_step_forward.2} parent=1 // pred_check_branch
      %18 = sbr.rel (0) target = $region13
    $region12: #{conv_step_forward.2} parent=1 // pred_region
      %s20 = ssub.s32 64, 64
      %21 = vsyncadd [#allocation3], %s20
      %s23 = sshll.u32 %s2, 4
      %s24 = int_to_ptr.vmem [resolvable:$true] %s23
      %26 = dma.vmem_to_smem %s24, 64, [#allocation2], [#allocation3]
    $region13: #{conv_step_forward.2} parent=1 // pred_fallthru
      _
    // Predicated region
    $region14: #{conv_step_forward.2} parent=1 // pred_check
      _
    $region15: #{conv_step_forward.2} parent=1 // pred_check_branch
      %28 = sbr.rel (0) target = $region17
    $region16: #{conv_step_forward.2} parent=1 // pred_region
      %s30 = ssub.s32 128, 128
      %31 = vsyncadd [#allocation5], %s30
      %s33 = sshll.u32 %s3, 4
      %s34 = int_to_ptr.vmem [resolvable:$true] %s33
      %36 = dma.vmem_to_smem %s34, 128, [#allocation4], [#allocation5]
    $region17: #{conv_step_forward.2} parent=1 // pred_fallthru
      _
    // Predicated region
    $region18: #{conv_step_forward.2} parent=1 // pred_check
      _
    $region19: #{conv_step_forward.2} parent=1 // pred_check_branch
      %38 = sbr.rel (0) target = $region21
    $region20: #{conv_step_forward.2} parent=1 // pred_region
      %39 = dma.done [#allocation3], 64
    $region21: #{conv_step_forward.2} parent=1 // pred_fallthru
      _
    // Predicated region
    $region22: #{conv_step_forward.2} parent=1 // pred_check
      _
    $region23: #{conv_step_forward.2} parent=1 // pred_check_branch
      %41 = sbr.rel (0) target = $region25
    $region24: #{conv_step_forward.2} parent=1 // pred_region
      %42 = dma.done [#allocation5], 128
    $region25: #{conv_step_forward.2} parent=1 // pred_fallthru
      _
    %43 = sfence
    %v44 = vlaneseq
    %v45 = vand.u32 %v44, 127
    %v46 = vlaneseq
    %v47 = vshrl.u32 %v46, 7
    %v48 = vadd.s32 %v47, 8
    %vm49 = vcmp.eq.s32.totalorder %v45, 0
    %vm50 = vcmp.eq.s32.totalorder %v45, 15
    %vm51 = vcmp.ge.s32.totalorder %v47, 1
    %vm52 = vcmp.ge.s32.totalorder %v48, 1
    %vm53 = vcmp.le.s32.totalorder %v47, 16
    %vm54 = vcmp.le.s32.totalorder %v48, 16
    %vm55 = vmand %vm51, %vm53
    %vm56 = vmand %vm52, %vm54
    %vm57 = vcmp.ge.s32.totalorder %v47, 4294967295
    %vm58 = vcmp.ge.s32.totalorder %v48, 4294967295
    %vm59 = vcmp.le.s32.totalorder %v47, 14
    %vm60 = vcmp.le.s32.totalorder %v48, 14
    %vm61 = vmand %vm57, %vm59
    %vm62 = vmand %vm58, %vm60
    %v63 = vld [vmem:[%s0] sm:$0xff]
    %v64 = vld [vmem:[%s0 + $0x8] sm:$0xff]
    %v65 = vld [vmem:[%s0 + $0x40] sm:$0xff]
    %v66 = vld [vmem:[%s0 + $0x48] sm:$0xff]
    %v67 = vmax.f32 %v63, 0.0
    %v68 = vmax.f32 %v64, 0.0
    %v69 = vmax.f32 %v65, 0.0
    %v70 = vmax.f32 %v66, 0.0
    %v71 = vld [vmem:[%s1] sm:$0xff]
    %v72 = vld [vmem:[%s1 + $0x8] sm:$0xff]
    %v73 = vld [vmem:[%s1 + $0x10] sm:$0xff]
    %v74 = vld [vmem:[%s1 + $0x18] sm:$0xff]
    %v75 = vmax.f32 %v71, 0.0
    %v76 = vmax.f32 %v72, 0.0
    %v77 = vmax.f32 %v73, 0.0
    %v78 = vmax.f32 %v74, 0.0
    %v79 = vrot.slane %v67, 7
    %v80 = vrot.slane %v69, 7
    %v81 = vrot.slane %v68, 7
    %v82 = vrot.slane %v70, 7
    %vm83 = vcmp.lt.s32.totalorder %v47, 1
    %v84 = vsel %vm83, %v79, %v81
    %v85 = vsel %vm83, %v80, %v82
    %v86 = vsel %vm83, %v81, %v79
    %v87 = vsel %vm83, %v82, %v80
    %v88 = vsel %vm55, 1, 0
    %v89 = vsel %vm56, 1, 0
    %vm90 = vcmp.eq.s32.totalorder %v88, 1
    %vm91 = vcmp.eq.s32.totalorder %v89, 1
    %v92 = vsel %vm90, %v86, 0.0
    %v93 = vsel %vm91, %v84, 0.0
    %v94 = vsel %vm90, %v87, 0.0
    %v95 = vsel %vm91, %v85, 0.0
    %v96 = vrot.slane %v75, 7
    %v97 = vrot.slane %v77, 7
    %v98 = vrot.slane %v76, 7
    %v99 = vrot.slane %v78, 7
    %v100 = vsel %vm83, %v96, %v98
    %v101 = vsel %vm83, %v97, %v99
    %v102 = vsel %vm83, %v98, %v96
    %v103 = vsel %vm83, %v99, %v97
    %v104 = vsel %vm90, %v102, 0.0
    %v105 = vsel %vm91, %v100, 0.0
    %v106 = vsel %vm90, %v103, 0.0
    %v107 = vsel %vm91, %v101, 0.0
    %vm108 = vcmask 1047680
    %109 = vrot.lane.b32.xlu0 %v92, 16
    %v110 = vpop.permute.xlu0 %109
    %v111 = vsel %vm108, %v110, %v92
    %112 = vrot.lane.b32.xlu0 %v93, 16
    %v113 = vpop.permute.xlu0 %112
    %v114 = vsel %vm108, %v113, %v93
    %115 = vrot.lane.b32.xlu0 %v94, 16
    %v116 = vpop.permute.xlu0 %115
    %v117 = vsel %vm108, %v116, %v94
    %118 = vrot.lane.b32.xlu0 %v95, 16
    %v119 = vpop.permute.xlu0 %118
    %v120 = vsel %vm108, %v119, %v95
    %121 = vrot.lane.b32.xlu0 %v111, 16
    %v122 = vpop.permute.xlu0 %121
    %123 = vrot.lane.b32.xlu0 %v114, 16
    %v124 = vpop.permute.xlu0 %123
    %125 = vrot.lane.b32.xlu0 %v117, 16
    %v126 = vpop.permute.xlu0 %125
    %127 = vrot.lane.b32.xlu0 %v120, 16
    %v128 = vpop.permute.xlu0 %127
    %v129 = vsel %vm108, %v122, %v92
    %v130 = vsel %vm108, %v124, %v93
    %v131 = vsel %vm108, %v126, %v94
    %v132 = vsel %vm108, %v128, %v95
    %v133 = vsel %vm49, 1, 0
    %vm134 = vcmp.eq.s32.totalorder %v133, 1
    %136 = vset.pattern.permute.xlu0 0
    %137 = vperm.xlu0 %136, %v104
    %v138 = vpop.permute.xlu0 %137
    %141 = vset.pattern.permute.xlu0 0
    %142 = vperm.xlu0 %141, %v105
    %v143 = vpop.permute.xlu0 %142
    %146 = vset.pattern.permute.xlu0 0
    %147 = vperm.xlu0 %146, %v106
    %v148 = vpop.permute.xlu0 %147
    %151 = vset.pattern.permute.xlu0 0
    %152 = vperm.xlu0 %151, %v107
    %v153 = vpop.permute.xlu0 %152
    %159 = vrot.lane.b32.xlu0 %v129, 113
    %v160 = vpop.permute.xlu0 %159
    %161 = vrot.lane.b32.xlu0 %v130, 113
    %v162 = vpop.permute.xlu0 %161
    %163 = vrot.lane.b32.xlu0 %v131, 113
    %v164 = vpop.permute.xlu0 %163
    %165 = vrot.lane.b32.xlu0 %v132, 113
    %v166 = vpop.permute.xlu0 %165
    %v171 = vsel %vm134, %v138, %v160
    %v172 = vsel %vm134, %v143, %v162
    %v173 = vsel %vm134, %v148, %v164
    %v174 = vsel %vm134, %v153, %v166
    %s175 = sld [smem:[#allocation2]]
    %v176 = vstv %s175
    %v177 = vmul.f32 %v171, %v176
    %v178 = vmul.f32 %v172, %v176
    %v179 = vmul.f32 %v173, %v176
    %v180 = vmul.f32 %v174, %v176
    %s181 = sld [smem:[#allocation2 + $0x1]]
    %v182 = vstv %s181
    %v183 = vmul.f32 %v92, %v182
    %v184 = vmul.f32 %v93, %v182
    %v185 = vmul.f32 %v94, %v182
    %v186 = vmul.f32 %v95, %v182
    %v187 = vadd.f32 %v177, %v183
    %v188 = vadd.f32 %v178, %v184
    %v189 = vadd.f32 %v179, %v185
    %v190 = vadd.f32 %v180, %v186
    %v191 = vsel %vm50, 1, 0
    %vm192 = vcmp.eq.s32.totalorder %v191, 1
    %193 = vset.pattern.permute.xlu0 1
    %194 = vperm.xlu0 %193, %v104
    %v195 = vpop.permute.xlu0 %194
    %197 = vset.pattern.permute.xlu0 1
    %198 = vperm.xlu0 %197, %v105
    %v199 = vpop.permute.xlu0 %198
    %201 = vset.pattern.permute.xlu0 1
    %202 = vperm.xlu0 %201, %v106
    %v203 = vpop.permute.xlu0 %202
    %205 = vset.pattern.permute.xlu0 1
    %206 = vperm.xlu0 %205, %v107
    %v207 = vpop.permute.xlu0 %206
    %209 = vrot.lane.b32.xlu0 %v129, 127
    %v210 = vpop.permute.xlu0 %209
    %211 = vrot.lane.b32.xlu0 %v130, 127
    %v212 = vpop.permute.xlu0 %211
    %213 = vrot.lane.b32.xlu0 %v131, 127
    %v214 = vpop.permute.xlu0 %213
    %215 = vrot.lane.b32.xlu0 %v132, 127
    %v216 = vpop.permute.xlu0 %215
    %v221 = vsel %vm192, %v195, %v210
    %v222 = vsel %vm192, %v199, %v212
    %v223 = vsel %vm192, %v203, %v214
    %v224 = vsel %vm192, %v207, %v216
    %s225 = sld [smem:[#allocation2 + $0x2]]
    %v226 = vstv %s225
    %v227 = vmul.f32 %v221, %v226
    %v228 = vmul.f32 %v222, %v226
    %v229 = vmul.f32 %v223, %v226
    %v230 = vmul.f32 %v224, %v226
    %v231 = vadd.f32 %v187, %v227
    %v232 = vadd.f32 %v188, %v228
    %v233 = vadd.f32 %v189, %v229
    %v234 = vadd.f32 %v190, %v230
    %235 = vrot.lane.b32.xlu0 %v67, 16
    %v236 = vpop.permute.xlu0 %235
    %v237 = vsel %vm108, %v236, %v67
    %238 = vrot.lane.b32.xlu0 %v68, 16
    %v239 = vpop.permute.xlu0 %238
    %v240 = vsel %vm108, %v239, %v68
    %241 = vrot.lane.b32.xlu0 %v69, 16
    %v242 = vpop.permute.xlu0 %241
    %v243 = vsel %vm108, %v242, %v69
    %244 = vrot.lane.b32.xlu0 %v70, 16
    %v245 = vpop.permute.xlu0 %244
    %v246 = vsel %vm108, %v245, %v70
    %247 = vrot.lane.b32.xlu0 %v237, 16
    %v248 = vpop.permute.xlu0 %247
    %249 = vrot.lane.b32.xlu0 %v240, 16
    %v250 = vpop.permute.xlu0 %249
    %251 = vrot.lane.b32.xlu0 %v243, 16
    %v252 = vpop.permute.xlu0 %251
    %253 = vrot.lane.b32.xlu0 %v246, 16
    %v254 = vpop.permute.xlu0 %253
    %v255 = vsel %vm108, %v248, %v67
    %v256 = vsel %vm108, %v250, %v68
    %v257 = vsel %vm108, %v252, %v69
    %v258 = vsel %vm108, %v254, %v70
    %260 = vset.pattern.permute.xlu0 0
    %261 = vperm.xlu0 %260, %v75
    %v262 = vpop.permute.xlu0 %261
    %265 = vset.pattern.permute.xlu0 0
    %266 = vperm.xlu0 %265, %v76
    %v267 = vpop.permute.xlu0 %266
    %270 = vset.pattern.permute.xlu0 0
    %271 = vperm.xlu0 %270, %v77
    %v272 = vpop.permute.xlu0 %271
    %275 = vset.pattern.permute.xlu0 0
    %276 = vperm.xlu0 %275, %v78
    %v277 = vpop.permute.xlu0 %276
    %283 = vrot.lane.b32.xlu0 %v255, 113
    %v284 = vpop.permute.xlu0 %283
    %285 = vrot.lane.b32.xlu0 %v256, 113
    %v286 = vpop.permute.xlu0 %285
    %287 = vrot.lane.b32.xlu0 %v257, 113
    %v288 = vpop.permute.xlu0 %287
    %289 = vrot.lane.b32.xlu0 %v258, 113
    %v290 = vpop.permute.xlu0 %289
    %v295 = vsel %vm134, %v262, %v284
    %v296 = vsel %vm134, %v267, %v286
    %v297 = vsel %vm134, %v272, %v288
    %v298 = vsel %vm134, %v277, %v290
    %s299 = sld [smem:[#allocation2 + $0x3]]
    %v300 = vstv %s299
    %v301 = vmul.f32 %v295, %v300
    %v302 = vmul.f32 %v296, %v300
    %v303 = vmul.f32 %v297, %v300
    %v304 = vmul.f32 %v298, %v300
    %v305 = vadd.f32 %v231, %v301
    %v306 = vadd.f32 %v232, %v302
    %v307 = vadd.f32 %v233, %v303
    %v308 = vadd.f32 %v234, %v304
    %s309 = sld [smem:[#allocation2 + $0x4]]
    %v310 = vstv %s309
    %v311 = vmul.f32 %v67, %v310
    %v312 = vmul.f32 %v68, %v310
    %v313 = vmul.f32 %v69, %v310
    %v314 = vmul.f32 %v70, %v310
    %v315 = vadd.f32 %v305, %v311
    %v316 = vadd.f32 %v306, %v312
    %v317 = vadd.f32 %v307, %v313
    %v318 = vadd.f32 %v308, %v314
    %319 = vset.pattern.permute.xlu0 1
    %320 = vperm.xlu0 %319, %v75
    %v321 = vpop.permute.xlu0 %320
    %323 = vset.pattern.permute.xlu0 1
    %324 = vperm.xlu0 %323, %v76
    %v325 = vpop.permute.xlu0 %324
    %327 = vset.pattern.permute.xlu0 1
    %328 = vperm.xlu0 %327, %v77
    %v329 = vpop.permute.xlu0 %328
    %331 = vset.pattern.permute.xlu0 1
    %332 = vperm.xlu0 %331, %v78
    %v333 = vpop.permute.xlu0 %332
    %335 = vrot.lane.b32.xlu0 %v255, 127
    %v336 = vpop.permute.xlu0 %335
    %337 = vrot.lane.b32.xlu0 %v256, 127
    %v338 = vpop.permute.xlu0 %337
    %339 = vrot.lane.b32.xlu0 %v257, 127
    %v340 = vpop.permute.xlu0 %339
    %341 = vrot.lane.b32.xlu0 %v258, 127
    %v342 = vpop.permute.xlu0 %341
    %v347 = vsel %vm192, %v321, %v336
    %v348 = vsel %vm192, %v325, %v338
    %v349 = vsel %vm192, %v329, %v340
    %v350 = vsel %vm192, %v333, %v342
    %s351 = sld [smem:[#allocation2 + $0x5]]
    %v352 = vstv %s351
    %v353 = vmul.f32 %v347, %v352
    %v354 = vmul.f32 %v348, %v352
    %v355 = vmul.f32 %v349, %v352
    %v356 = vmul.f32 %v350, %v352
    %v357 = vadd.f32 %v315, %v353
    %v358 = vadd.f32 %v316, %v354
    %v359 = vadd.f32 %v317, %v355
    %v360 = vadd.f32 %v318, %v356
    %v361 = vrot.slane %v67, 1
    %v362 = vrot.slane %v69, 1
    %v363 = vrot.slane %v68, 1
    %v364 = vrot.slane %v70, 1
    %vm365 = vcmp.lt.s32.totalorder %v47, 7
    %v366 = vsel %vm365, %v361, %v363
    %v367 = vsel %vm365, %v362, %v364
    %v368 = vsel %vm365, %v363, %v361
    %v369 = vsel %vm365, %v364, %v362
    %v370 = vsel %vm61, 1, 0
    %v371 = vsel %vm62, 1, 0
    %vm372 = vcmp.eq.s32.totalorder %v370, 1
    %vm373 = vcmp.eq.s32.totalorder %v371, 1
    %v374 = vsel %vm372, %v366, 0.0
    %v375 = vsel %vm373, %v368, 0.0
    %v376 = vsel %vm372, %v367, 0.0
    %v377 = vsel %vm373, %v369, 0.0
    %v378 = vrot.slane %v75, 1
    %v379 = vrot.slane %v77, 1
    %v380 = vrot.slane %v76, 1
    %v381 = vrot.slane %v78, 1
    %v382 = vsel %vm365, %v378, %v380
    %v383 = vsel %vm365, %v379, %v381
    %v384 = vsel %vm365, %v380, %v378
    %v385 = vsel %vm365, %v381, %v379
    %v386 = vsel %vm372, %v382, 0.0
    %v387 = vsel %vm373, %v384, 0.0
    %v388 = vsel %vm372, %v383, 0.0
    %v389 = vsel %vm373, %v385, 0.0
    %390 = vrot.lane.b32.xlu0 %v374, 16
    %v391 = vpop.permute.xlu0 %390
    %v392 = vsel %vm108, %v391, %v374
    %393 = vrot.lane.b32.xlu0 %v375, 16
    %v394 = vpop.permute.xlu0 %393
    %v395 = vsel %vm108, %v394, %v375
    %396 = vrot.lane.b32.xlu0 %v376, 16
    %v397 = vpop.permute.xlu0 %396
    %v398 = vsel %vm108, %v397, %v376
    %399 = vrot.lane.b32.xlu0 %v377, 16
    %v400 = vpop.permute.xlu0 %399
    %v401 = vsel %vm108, %v400, %v377
    %402 = vrot.lane.b32.xlu0 %v392, 16
    %v403 = vpop.permute.xlu0 %402
    %404 = vrot.lane.b32.xlu0 %v395, 16
    %v405 = vpop.permute.xlu0 %404
    %406 = vrot.lane.b32.xlu0 %v398, 16
    %v407 = vpop.permute.xlu0 %406
    %408 = vrot.lane.b32.xlu0 %v401, 16
    %v409 = vpop.permute.xlu0 %408
    %v410 = vsel %vm108, %v403, %v374
    %v411 = vsel %vm108, %v405, %v375
    %v412 = vsel %vm108, %v407, %v376
    %v413 = vsel %vm108, %v409, %v377
    %415 = vset.pattern.permute.xlu0 0
    %416 = vperm.xlu0 %415, %v386
    %v417 = vpop.permute.xlu0 %416
    %420 = vset.pattern.permute.xlu0 0
    %421 = vperm.xlu0 %420, %v387
    %v422 = vpop.permute.xlu0 %421
    %425 = vset.pattern.permute.xlu0 0
    %426 = vperm.xlu0 %425, %v388
    %v427 = vpop.permute.xlu0 %426
    %430 = vset.pattern.permute.xlu0 0
    %431 = vperm.xlu0 %430, %v389
    %v432 = vpop.permute.xlu0 %431
    %438 = vrot.lane.b32.xlu0 %v410, 113
    %v439 = vpop.permute.xlu0 %438
    %440 = vrot.lane.b32.xlu0 %v411, 113
    %v441 = vpop.permute.xlu0 %440
    %442 = vrot.lane.b32.xlu0 %v412, 113
    %v443 = vpop.permute.xlu0 %442
    %444 = vrot.lane.b32.xlu0 %v413, 113
    %v445 = vpop.permute.xlu0 %444
    %v450 = vsel %vm134, %v417, %v439
    %v451 = vsel %vm134, %v422, %v441
    %v452 = vsel %vm134, %v427, %v443
    %v453 = vsel %vm134, %v432, %v445
    %s454 = sld [smem:[#allocation2 + $0x6]]
    %v455 = vstv %s454
    %v456 = vmul.f32 %v450, %v455
    %v457 = vmul.f32 %v451, %v455
    %v458 = vmul.f32 %v452, %v455
    %v459 = vmul.f32 %v453, %v455
    %v460 = vadd.f32 %v357, %v456
    %v461 = vadd.f32 %v358, %v457
    %v462 = vadd.f32 %v359, %v458
    %v463 = vadd.f32 %v360, %v459
    %s464 = sld [smem:[#allocation2 + $0x7]]
    %v465 = vstv %s464
    %v466 = vmul.f32 %v374, %v465
    %v467 = vmul.f32 %v375, %v465
    %v468 = vmul.f32 %v376, %v465
    %v469 = vmul.f32 %v377, %v465
    %v470 = vadd.f32 %v460, %v466
    %v471 = vadd.f32 %v461, %v467
    %v472 = vadd.f32 %v462, %v468
    %v473 = vadd.f32 %v463, %v469
    %474 = vset.pattern.permute.xlu0 1
    %475 = vperm.xlu0 %474, %v386
    %v476 = vpop.permute.xlu0 %475
    %478 = vset.pattern.permute.xlu0 1
    %479 = vperm.xlu0 %478, %v387
    %v480 = vpop.permute.xlu0 %479
    %482 = vset.pattern.permute.xlu0 1
    %483 = vperm.xlu0 %482, %v388
    %v484 = vpop.permute.xlu0 %483
    %486 = vset.pattern.permute.xlu0 1
    %487 = vperm.xlu0 %486, %v389
    %v488 = vpop.permute.xlu0 %487
    %490 = vrot.lane.b32.xlu0 %v410, 127
    %v491 = vpop.permute.xlu0 %490
    %492 = vrot.lane.b32.xlu0 %v411, 127
    %v493 = vpop.permute.xlu0 %492
    %494 = vrot.lane.b32.xlu0 %v412, 127
    %v495 = vpop.permute.xlu0 %494
    %496 = vrot.lane.b32.xlu0 %v413, 127
    %v497 = vpop.permute.xlu0 %496
    %v502 = vsel %vm192, %v476, %v491
    %v503 = vsel %vm192, %v480, %v493
    %v504 = vsel %vm192, %v484, %v495
    %v505 = vsel %vm192, %v488, %v497
    %s506 = sld [smem:[#allocation2 + $0x8]]
    %v507 = vstv %s506
    %v508 = vmul.f32 %v502, %v507
    %v509 = vmul.f32 %v503, %v507
    %v510 = vmul.f32 %v504, %v507
    %v511 = vmul.f32 %v505, %v507
    %v512 = vadd.f32 %v470, %v508
    %v513 = vadd.f32 %v471, %v509
    %v514 = vadd.f32 %v472, %v510
    %v515 = vadd.f32 %v473, %v511
    %s516 = scalar_lea.vmem %s0, 16
    %v517 = vld [vmem:[%s516] sm:$0xff]
    %v518 = vld [vmem:[%s516 + $0x8] sm:$0xff]
    %v519 = vld [vmem:[%s516 + $0x40] sm:$0xff]
    %v520 = vld [vmem:[%s516 + $0x48] sm:$0xff]
    %v521 = vmax.f32 %v517, 0.0
    %v522 = vmax.f32 %v518, 0.0
    %v523 = vmax.f32 %v519, 0.0
    %v524 = vmax.f32 %v520, 0.0
    %s525 = scalar_lea.vmem %s1, 32
    %v526 = vld [vmem:[%s525] sm:$0xff]
    %v527 = vld [vmem:[%s525 + $0x8] sm:$0xff]
    %v528 = vld [vmem:[%s525 + $0x10] sm:$0xff]
    %v529 = vld [vmem:[%s525 + $0x18] sm:$0xff]
    %v530 = vmax.f32 %v526, 0.0
    %v531 = vmax.f32 %v527, 0.0
    %v532 = vmax.f32 %v528, 0.0
    %v533 = vmax.f32 %v529, 0.0
    %v534 = vrot.slane %v521, 7
    %v535 = vrot.slane %v523, 7
    %v536 = vrot.slane %v522, 7
    %v537 = vrot.slane %v524, 7
    %v538 = vsel %vm83, %v534, %v536
    %v539 = vsel %vm83, %v535, %v537
    %v540 = vsel %vm83, %v536, %v534
    %v541 = vsel %vm83, %v537, %v535
    %v542 = vsel %vm90, %v540, 0.0
    %v543 = vsel %vm91, %v538, 0.0
    %v544 = vsel %vm90, %v541, 0.0
    %v545 = vsel %vm91, %v539, 0.0
    %v546 = vrot.slane %v530, 7
    %v547 = vrot.slane %v532, 7
    %v548 = vrot.slane %v531, 7
    %v549 = vrot.slane %v533, 7
    %v550 = vsel %vm83, %v546, %v548
    %v551 = vsel %vm83, %v547, %v549
    %v552 = vsel %vm83, %v548, %v546
    %v553 = vsel %vm83, %v549, %v547
    %v554 = vsel %vm90, %v552, 0.0
    %v555 = vsel %vm91, %v550, 0.0
    %v556 = vsel %vm90, %v553, 0.0
    %v557 = vsel %vm91, %v551, 0.0
    %558 = vrot.lane.b32.xlu0 %v542, 16
    %v559 = vpop.permute.xlu0 %558
    %v560 = vsel %vm108, %v559, %v542
    %561 = vrot.lane.b32.xlu0 %v543, 16
    %v562 = vpop.permute.xlu0 %561
    %v563 = vsel %vm108, %v562, %v543
    %564 = vrot.lane.b32.xlu0 %v544, 16
    %v565 = vpop.permute.xlu0 %564
    %v566 = vsel %vm108, %v565, %v544
    %567 = vrot.lane.b32.xlu0 %v545, 16
    %v568 = vpop.permute.xlu0 %567
    %v569 = vsel %vm108, %v568, %v545
    %570 = vrot.lane.b32.xlu0 %v560, 16
    %v571 = vpop.permute.xlu0 %570
    %572 = vrot.lane.b32.xlu0 %v563, 16
    %v573 = vpop.permute.xlu0 %572
    %574 = vrot.lane.b32.xlu0 %v566, 16
    %v575 = vpop.permute.xlu0 %574
    %576 = vrot.lane.b32.xlu0 %v569, 16
    %v577 = vpop.permute.xlu0 %576
    %v578 = vsel %vm108, %v571, %v542
    %v579 = vsel %vm108, %v573, %v543
    %v580 = vsel %vm108, %v575, %v544
    %v581 = vsel %vm108, %v577, %v545
    %583 = vset.pattern.permute.xlu0 0
    %584 = vperm.xlu0 %583, %v554
    %v585 = vpop.permute.xlu0 %584
    %588 = vset.pattern.permute.xlu0 0
    %589 = vperm.xlu0 %588, %v555
    %v590 = vpop.permute.xlu0 %589
    %593 = vset.pattern.permute.xlu0 0
    %594 = vperm.xlu0 %593, %v556
    %v595 = vpop.permute.xlu0 %594
    %598 = vset.pattern.permute.xlu0 0
    %599 = vperm.xlu0 %598, %v557
    %v600 = vpop.permute.xlu0 %599
    %606 = vrot.lane.b32.xlu0 %v578, 113
    %v607 = vpop.permute.xlu0 %606
    %608 = vrot.lane.b32.xlu0 %v579, 113
    %v609 = vpop.permute.xlu0 %608
    %610 = vrot.lane.b32.xlu0 %v580, 113
    %v611 = vpop.permute.xlu0 %610
    %612 = vrot.lane.b32.xlu0 %v581, 113
    %v613 = vpop.permute.xlu0 %612
    %v618 = vsel %vm134, %v585, %v607
    %v619 = vsel %vm134, %v590, %v609
    %v620 = vsel %vm134, %v595, %v611
    %v621 = vsel %vm134, %v600, %v613
    %s622 = sld [smem:[#allocation2 + $0x80]]
    %v623 = vstv %s622
    %v624 = vmul.f32 %v618, %v623
    %v625 = vmul.f32 %v619, %v623
    %v626 = vmul.f32 %v620, %v623
    %v627 = vmul.f32 %v621, %v623
    %s628 = sld [smem:[#allocation2 + $0x81]]
    %v629 = vstv %s628
    %v630 = vmul.f32 %v542, %v629
    %v631 = vmul.f32 %v543, %v629
    %v632 = vmul.f32 %v544, %v629
    %v633 = vmul.f32 %v545, %v629
    %v634 = vadd.f32 %v624, %v630
    %v635 = vadd.f32 %v625, %v631
    %v636 = vadd.f32 %v626, %v632
    %v637 = vadd.f32 %v627, %v633
    %638 = vset.pattern.permute.xlu0 1
    %639 = vperm.xlu0 %638, %v554
    %v640 = vpop.permute.xlu0 %639
    %642 = vset.pattern.permute.xlu0 1
    %643 = vperm.xlu0 %642, %v555
    %v644 = vpop.permute.xlu0 %643
    %646 = vset.pattern.permute.xlu0 1
    %647 = vperm.xlu0 %646, %v556
    %v648 = vpop.permute.xlu0 %647
    %650 = vset.pattern.permute.xlu0 1
    %651 = vperm.xlu0 %650, %v557
    %v652 = vpop.permute.xlu0 %651
    %654 = vrot.lane.b32.xlu0 %v578, 127
    %v655 = vpop.permute.xlu0 %654
    %656 = vrot.lane.b32.xlu0 %v579, 127
    %v657 = vpop.permute.xlu0 %656
    %658 = vrot.lane.b32.xlu0 %v580, 127
    %v659 = vpop.permute.xlu0 %658
    %660 = vrot.lane.b32.xlu0 %v581, 127
    %v661 = vpop.permute.xlu0 %660
    %v666 = vsel %vm192, %v640, %v655
    %v667 = vsel %vm192, %v644, %v657
    %v668 = vsel %vm192, %v648, %v659
    %v669 = vsel %vm192, %v652, %v661
    %s670 = sld [smem:[#allocation2 + $0x82]]
    %v671 = vstv %s670
    %v672 = vmul.f32 %v666, %v671
    %v673 = vmul.f32 %v667, %v671
    %v674 = vmul.f32 %v668, %v671
    %v675 = vmul.f32 %v669, %v671
    %v676 = vadd.f32 %v634, %v672
    %v677 = vadd.f32 %v635, %v673
    %v678 = vadd.f32 %v636, %v674
    %v679 = vadd.f32 %v637, %v675
    %680 = vrot.lane.b32.xlu0 %v521, 16
    %v681 = vpop.permute.xlu0 %680
    %v682 = vsel %vm108, %v681, %v521
    %683 = vrot.lane.b32.xlu0 %v522, 16
    %v684 = vpop.permute.xlu0 %683
    %v685 = vsel %vm108, %v684, %v522
    %686 = vrot.lane.b32.xlu0 %v523, 16
    %v687 = vpop.permute.xlu0 %686
    %v688 = vsel %vm108, %v687, %v523
    %689 = vrot.lane.b32.xlu0 %v524, 16
    %v690 = vpop.permute.xlu0 %689
    %v691 = vsel %vm108, %v690, %v524
    %692 = vrot.lane.b32.xlu0 %v682, 16
    %v693 = vpop.permute.xlu0 %692
    %694 = vrot.lane.b32.xlu0 %v685, 16
    %v695 = vpop.permute.xlu0 %694
    %696 = vrot.lane.b32.xlu0 %v688, 16
    %v697 = vpop.permute.xlu0 %696
    %698 = vrot.lane.b32.xlu0 %v691, 16
    %v699 = vpop.permute.xlu0 %698
    %v700 = vsel %vm108, %v693, %v521
    %v701 = vsel %vm108, %v695, %v522
    %v702 = vsel %vm108, %v697, %v523
    %v703 = vsel %vm108, %v699, %v524
    %705 = vset.pattern.permute.xlu0 0
    %706 = vperm.xlu0 %705, %v530
    %v707 = vpop.permute.xlu0 %706
    %710 = vset.pattern.permute.xlu0 0
    %711 = vperm.xlu0 %710, %v531
    %v712 = vpop.permute.xlu0 %711
    %715 = vset.pattern.permute.xlu0 0
    %716 = vperm.xlu0 %715, %v532
    %v717 = vpop.permute.xlu0 %716
    %720 = vset.pattern.permute.xlu0 0
    %721 = vperm.xlu0 %720, %v533
    %v722 = vpop.permute.xlu0 %721
    %728 = vrot.lane.b32.xlu0 %v700, 113
    %v729 = vpop.permute.xlu0 %728
    %730 = vrot.lane.b32.xlu0 %v701, 113
    %v731 = vpop.permute.xlu0 %730
    %732 = vrot.lane.b32.xlu0 %v702, 113
    %v733 = vpop.permute.xlu0 %732
    %734 = vrot.lane.b32.xlu0 %v703, 113
    %v735 = vpop.permute.xlu0 %734
    %v740 = vsel %vm134, %v707, %v729
    %v741 = vsel %vm134, %v712, %v731
    %v742 = vsel %vm134, %v717, %v733
    %v743 = vsel %vm134, %v722, %v735
    %s744 = sld [smem:[#allocation2 + $0x83]]
    %v745 = vstv %s744
    %v746 = vmul.f32 %v740, %v745
    %v747 = vmul.f32 %v741, %v745
    %v748 = vmul.f32 %v742, %v745
    %v749 = vmul.f32 %v743, %v745
    %v750 = vadd.f32 %v676, %v746
    %v751 = vadd.f32 %v677, %v747
    %v752 = vadd.f32 %v678, %v748
    %v753 = vadd.f32 %v679, %v749
    %s754 = sld [smem:[#allocation2 + $0x84]]
    %v755 = vstv %s754
    %v756 = vmul.f32 %v521, %v755
    %v757 = vmul.f32 %v522, %v755
    %v758 = vmul.f32 %v523, %v755
    %v759 = vmul.f32 %v524, %v755
    %v760 = vadd.f32 %v750, %v756
    %v761 = vadd.f32 %v751, %v757
    %v762 = vadd.f32 %v752, %v758
    %v763 = vadd.f32 %v753, %v759
    %764 = vset.pattern.permute.xlu0 1
    %765 = vperm.xlu0 %764, %v530
    %v766 = vpop.permute.xlu0 %765
    %768 = vset.pattern.permute.xlu0 1
    %769 = vperm.xlu0 %768, %v531
    %v770 = vpop.permute.xlu0 %769
    %772 = vset.pattern.permute.xlu0 1
    %773 = vperm.xlu0 %772, %v532
    %v774 = vpop.permute.xlu0 %773
    %776 = vset.pattern.permute.xlu0 1
    %777 = vperm.xlu0 %776, %v533
    %v778 = vpop.permute.xlu0 %777
    %780 = vrot.lane.b32.xlu0 %v700, 127
    %v781 = vpop.permute.xlu0 %780
    %782 = vrot.lane.b32.xlu0 %v701, 127
    %v783 = vpop.permute.xlu0 %782
    %784 = vrot.lane.b32.xlu0 %v702, 127
    %v785 = vpop.permute.xlu0 %784
    %786 = vrot.lane.b32.xlu0 %v703, 127
    %v787 = vpop.permute.xlu0 %786
    %v792 = vsel %vm192, %v766, %v781
    %v793 = vsel %vm192, %v770, %v783
    %v794 = vsel %vm192, %v774, %v785
    %v795 = vsel %vm192, %v778, %v787
    %s796 = sld [smem:[#allocation2 + $0x85]]
    %v797 = vstv %s796
    %v798 = vmul.f32 %v792, %v797
    %v799 = vmul.f32 %v793, %v797
    %v800 = vmul.f32 %v794, %v797
    %v801 = vmul.f32 %v795, %v797
    %v802 = vadd.f32 %v760, %v798
    %v803 = vadd.f32 %v761, %v799
    %v804 = vadd.f32 %v762, %v800
    %v805 = vadd.f32 %v763, %v801
    %v806 = vrot.slane %v521, 1
    %v807 = vrot.slane %v523, 1
    %v808 = vrot.slane %v522, 1
    %v809 = vrot.slane %v524, 1
    %v810 = vsel %vm365, %v806, %v808
    %v811 = vsel %vm365, %v807, %v809
    %v812 = vsel %vm365, %v808, %v806
    %v813 = vsel %vm365, %v809, %v807
    %v814 = vsel %vm372, %v810, 0.0
    %v815 = vsel %vm373, %v812, 0.0
    %v816 = vsel %vm372, %v811, 0.0
    %v817 = vsel %vm373, %v813, 0.0
    %v818 = vrot.slane %v530, 1
    %v819 = vrot.slane %v532, 1
    %v820 = vrot.slane %v531, 1
    %v821 = vrot.slane %v533, 1
    %v822 = vsel %vm365, %v818, %v820
    %v823 = vsel %vm365, %v819, %v821
    %v824 = vsel %vm365, %v820, %v818
    %v825 = vsel %vm365, %v821, %v819
    %v826 = vsel %vm372, %v822, 0.0
    %v827 = vsel %vm373, %v824, 0.0
    %v828 = vsel %vm372, %v823, 0.0
    %v829 = vsel %vm373, %v825, 0.0
    %830 = vrot.lane.b32.xlu0 %v814, 16
    %v831 = vpop.permute.xlu0 %830
    %v832 = vsel %vm108, %v831, %v814
    %833 = vrot.lane.b32.xlu0 %v815, 16
    %v834 = vpop.permute.xlu0 %833
    %v835 = vsel %vm108, %v834, %v815
    %836 = vrot.lane.b32.xlu0 %v816, 16
    %v837 = vpop.permute.xlu0 %836
    %v838 = vsel %vm108, %v837, %v816
    %839 = vrot.lane.b32.xlu0 %v817, 16
    %v840 = vpop.permute.xlu0 %839
    %v841 = vsel %vm108, %v840, %v817
    %842 = vrot.lane.b32.xlu0 %v832, 16
    %v843 = vpop.permute.xlu0 %842
    %844 = vrot.lane.b32.xlu0 %v835, 16
    %v845 = vpop.permute.xlu0 %844
    %846 = vrot.lane.b32.xlu0 %v838, 16
    %v847 = vpop.permute.xlu0 %846
    %848 = vrot.lane.b32.xlu0 %v841, 16
    %v849 = vpop.permute.xlu0 %848
    %v850 = vsel %vm108, %v843, %v814
    %v851 = vsel %vm108, %v845, %v815
    %v852 = vsel %vm108, %v847, %v816
    %v853 = vsel %vm108, %v849, %v817
    %855 = vset.pattern.permute.xlu0 0
    %856 = vperm.xlu0 %855, %v826
    %v857 = vpop.permute.xlu0 %856
    %860 = vset.pattern.permute.xlu0 0
    %861 = vperm.xlu0 %860, %v827
    %v862 = vpop.permute.xlu0 %861
    %865 = vset.pattern.permute.xlu0 0
    %866 = vperm.xlu0 %865, %v828
    %v867 = vpop.permute.xlu0 %866
    %870 = vset.pattern.permute.xlu0 0
    %871 = vperm.xlu0 %870, %v829
    %v872 = vpop.permute.xlu0 %871
    %878 = vrot.lane.b32.xlu0 %v850, 113
    %v879 = vpop.permute.xlu0 %878
    %880 = vrot.lane.b32.xlu0 %v851, 113
    %v881 = vpop.permute.xlu0 %880
    %882 = vrot.lane.b32.xlu0 %v852, 113
    %v883 = vpop.permute.xlu0 %882
    %884 = vrot.lane.b32.xlu0 %v853, 113
    %v885 = vpop.permute.xlu0 %884
    %v890 = vsel %vm134, %v857, %v879
    %v891 = vsel %vm134, %v862, %v881
    %v892 = vsel %vm134, %v867, %v883
    %v893 = vsel %vm134, %v872, %v885
    %s894 = sld [smem:[#allocation2 + $0x86]]
    %v895 = vstv %s894
    %v896 = vmul.f32 %v890, %v895
    %v897 = vmul.f32 %v891, %v895
    %v898 = vmul.f32 %v892, %v895
    %v899 = vmul.f32 %v893, %v895
    %v900 = vadd.f32 %v802, %v896
    %v901 = vadd.f32 %v803, %v897
    %v902 = vadd.f32 %v804, %v898
    %v903 = vadd.f32 %v805, %v899
    %s904 = sld [smem:[#allocation2 + $0x87]]
    %v905 = vstv %s904
    %v906 = vmul.f32 %v814, %v905
    %v907 = vmul.f32 %v815, %v905
    %v908 = vmul.f32 %v816, %v905
    %v909 = vmul.f32 %v817, %v905
    %v910 = vadd.f32 %v900, %v906
    %v911 = vadd.f32 %v901, %v907
    %v912 = vadd.f32 %v902, %v908
    %v913 = vadd.f32 %v903, %v909
    %914 = vset.pattern.permute.xlu0 1
    %915 = vperm.xlu0 %914, %v826
    %v916 = vpop.permute.xlu0 %915
    %918 = vset.pattern.permute.xlu0 1
    %919 = vperm.xlu0 %918, %v827
    %v920 = vpop.permute.xlu0 %919
    %922 = vset.pattern.permute.xlu0 1
    %923 = vperm.xlu0 %922, %v828
    %v924 = vpop.permute.xlu0 %923
    %926 = vset.pattern.permute.xlu0 1
    %927 = vperm.xlu0 %926, %v829
    %v928 = vpop.permute.xlu0 %927
    %930 = vrot.lane.b32.xlu0 %v850, 127
    %v931 = vpop.permute.xlu0 %930
    %932 = vrot.lane.b32.xlu0 %v851, 127
    %v933 = vpop.permute.xlu0 %932
    %934 = vrot.lane.b32.xlu0 %v852, 127
    %v935 = vpop.permute.xlu0 %934
    %936 = vrot.lane.b32.xlu0 %v853, 127
    %v937 = vpop.permute.xlu0 %936
    %v942 = vsel %vm192, %v916, %v931
    %v943 = vsel %vm192, %v920, %v933
    %v944 = vsel %vm192, %v924, %v935
    %v945 = vsel %vm192, %v928, %v937
    %s946 = sld [smem:[#allocation2 + $0x88]]
    %v947 = vstv %s946
    %v948 = vmul.f32 %v942, %v947
    %v949 = vmul.f32 %v943, %v947
    %v950 = vmul.f32 %v944, %v947
    %v951 = vmul.f32 %v945, %v947
    %v952 = vadd.f32 %v910, %v948
    %v953 = vadd.f32 %v911, %v949
    %v954 = vadd.f32 %v912, %v950
    %v955 = vadd.f32 %v913, %v951
    %s956 = scalar_lea.vmem %s0, 32
    %v957 = vld [vmem:[%s956] sm:$0xff]
    %v958 = vld [vmem:[%s956 + $0x8] sm:$0xff]
    %v959 = vld [vmem:[%s956 + $0x40] sm:$0xff]
    %v960 = vld [vmem:[%s956 + $0x48] sm:$0xff]
    %v961 = vmax.f32 %v957, 0.0
    %v962 = vmax.f32 %v958, 0.0
    %v963 = vmax.f32 %v959, 0.0
    %v964 = vmax.f32 %v960, 0.0
    %s965 = scalar_lea.vmem %s1, 64
    %v966 = vld [vmem:[%s965] sm:$0xff]
    %v967 = vld [vmem:[%s965 + $0x8] sm:$0xff]
    %v968 = vld [vmem:[%s965 + $0x10] sm:$0xff]
    %v969 = vld [vmem:[%s965 + $0x18] sm:$0xff]
    %v970 = vmax.f32 %v966, 0.0
    %v971 = vmax.f32 %v967, 0.0
    %v972 = vmax.f32 %v968, 0.0
    %v973 = vmax.f32 %v969, 0.0
    %v974 = vrot.slane %v961, 7
    %v975 = vrot.slane %v963, 7
    %v976 = vrot.slane %v962, 7
    %v977 = vrot.slane %v964, 7
    %v978 = vsel %vm83, %v974, %v976
    %v979 = vsel %vm83, %v975, %v977
    %v980 = vsel %vm83, %v976, %v974
    %v981 = vsel %vm83, %v977, %v975
    %v982 = vsel %vm90, %v980, 0.0
    %v983 = vsel %vm91, %v978, 0.0
    %v984 = vsel %vm90, %v981, 0.0
    %v985 = vsel %vm91, %v979, 0.0
    %v986 = vrot.slane %v970, 7
    %v987 = vrot.slane %v972, 7
    %v988 = vrot.slane %v971, 7
    %v989 = vrot.slane %v973, 7
    %v990 = vsel %vm83, %v986, %v988
    %v991 = vsel %vm83, %v987, %v989
    %v992 = vsel %vm83, %v988, %v986
    %v993 = vsel %vm83, %v989, %v987
    %v994 = vsel %vm90, %v992, 0.0
    %v995 = vsel %vm91, %v990, 0.0
    %v996 = vsel %vm90, %v993, 0.0
    %v997 = vsel %vm91, %v991, 0.0
    %998 = vrot.lane.b32.xlu0 %v982, 16
    %v999 = vpop.permute.xlu0 %998
    %v1000 = vsel %vm108, %v999, %v982
    %1001 = vrot.lane.b32.xlu0 %v983, 16
    %v1002 = vpop.permute.xlu0 %1001
    %v1003 = vsel %vm108, %v1002, %v983
    %1004 = vrot.lane.b32.xlu0 %v984, 16
    %v1005 = vpop.permute.xlu0 %1004
    %v1006 = vsel %vm108, %v1005, %v984
    %1007 = vrot.lane.b32.xlu0 %v985, 16
    %v1008 = vpop.permute.xlu0 %1007
    %v1009 = vsel %vm108, %v1008, %v985
    %1010 = vrot.lane.b32.xlu0 %v1000, 16
    %v1011 = vpop.permute.xlu0 %1010
    %1012 = vrot.lane.b32.xlu0 %v1003, 16
    %v1013 = vpop.permute.xlu0 %1012
    %1014 = vrot.lane.b32.xlu0 %v1006, 16
    %v1015 = vpop.permute.xlu0 %1014
    %1016 = vrot.lane.b32.xlu0 %v1009, 16
    %v1017 = vpop.permute.xlu0 %1016
    %v1018 = vsel %vm108, %v1011, %v982
    %v1019 = vsel %vm108, %v1013, %v983
    %v1020 = vsel %vm108, %v1015, %v984
    %v1021 = vsel %vm108, %v1017, %v985
    %1023 = vset.pattern.permute.xlu0 0
    %1024 = vperm.xlu0 %1023, %v994
    %v1025 = vpop.permute.xlu0 %1024
    %1028 = vset.pattern.permute.xlu0 0
    %1029 = vperm.xlu0 %1028, %v995
    %v1030 = vpop.permute.xlu0 %1029
    %1033 = vset.pattern.permute.xlu0 0
    %1034 = vperm.xlu0 %1033, %v996
    %v1035 = vpop.permute.xlu0 %1034
    %1038 = vset.pattern.permute.xlu0 0
    %1039 = vperm.xlu0 %1038, %v997
    %v1040 = vpop.permute.xlu0 %1039
    %1046 = vrot.lane.b32.xlu0 %v1018, 113
    %v1047 = vpop.permute.xlu0 %1046
    %1048 = vrot.lane.b32.xlu0 %v1019, 113
    %v1049 = vpop.permute.xlu0 %1048
    %1050 = vrot.lane.b32.xlu0 %v1020, 113
    %v1051 = vpop.permute.xlu0 %1050
    %1052 = vrot.lane.b32.xlu0 %v1021, 113
    %v1053 = vpop.permute.xlu0 %1052
    %v1058 = vsel %vm134, %v1025, %v1047
    %v1059 = vsel %vm134, %v1030, %v1049
    %v1060 = vsel %vm134, %v1035, %v1051
    %v1061 = vsel %vm134, %v1040, %v1053
    %s1062 = sld [smem:[#allocation2 + $0x100]]
    %v1063 = vstv %s1062
    %v1064 = vmul.f32 %v1058, %v1063
    %v1065 = vmul.f32 %v1059, %v1063
    %v1066 = vmul.f32 %v1060, %v1063
    %v1067 = vmul.f32 %v1061, %v1063
    %s1068 = sld [smem:[#allocation2 + $0x101]]
    %v1069 = vstv %s1068
    %v1070 = vmul.f32 %v982, %v1069
    %v1071 = vmul.f32 %v983, %v1069
    %v1072 = vmul.f32 %v984, %v1069
    %v1073 = vmul.f32 %v985, %v1069
    %v1074 = vadd.f32 %v1064, %v1070
    %v1075 = vadd.f32 %v1065, %v1071
    %v1076 = vadd.f32 %v1066, %v1072
    %v1077 = vadd.f32 %v1067, %v1073
    %1078 = vset.pattern.permute.xlu0 1
    %1079 = vperm.xlu0 %1078, %v994
    %v1080 = vpop.permute.xlu0 %1079
    %1082 = vset.pattern.permute.xlu0 1
    %1083 = vperm.xlu0 %1082, %v995
    %v1084 = vpop.permute.xlu0 %1083
    %1086 = vset.pattern.permute.xlu0 1
    %1087 = vperm.xlu0 %1086, %v996
    %v1088 = vpop.permute.xlu0 %1087
    %1090 = vset.pattern.permute.xlu0 1
    %1091 = vperm.xlu0 %1090, %v997
    %v1092 = vpop.permute.xlu0 %1091
    %1094 = vrot.lane.b32.xlu0 %v1018, 127
    %v1095 = vpop.permute.xlu0 %1094
    %1096 = vrot.lane.b32.xlu0 %v1019, 127
    %v1097 = vpop.permute.xlu0 %1096
    %1098 = vrot.lane.b32.xlu0 %v1020, 127
    %v1099 = vpop.permute.xlu0 %1098
    %1100 = vrot.lane.b32.xlu0 %v1021, 127
    %v1101 = vpop.permute.xlu0 %1100
    %v1106 = vsel %vm192, %v1080, %v1095
    %v1107 = vsel %vm192, %v1084, %v1097
    %v1108 = vsel %vm192, %v1088, %v1099
    %v1109 = vsel %vm192, %v1092, %v1101
    %s1110 = sld [smem:[#allocation2 + $0x102]]
    %v1111 = vstv %s1110
    %v1112 = vmul.f32 %v1106, %v1111
    %v1113 = vmul.f32 %v1107, %v1111
    %v1114 = vmul.f32 %v1108, %v1111
    %v1115 = vmul.f32 %v1109, %v1111
    %v1116 = vadd.f32 %v1074, %v1112
    %v1117 = vadd.f32 %v1075, %v1113
    %v1118 = vadd.f32 %v1076, %v1114
    %v1119 = vadd.f32 %v1077, %v1115
    %1120 = vrot.lane.b32.xlu0 %v961, 16
    %v1121 = vpop.permute.xlu0 %1120
    %v1122 = vsel %vm108, %v1121, %v961
    %1123 = vrot.lane.b32.xlu0 %v962, 16
    %v1124 = vpop.permute.xlu0 %1123
    %v1125 = vsel %vm108, %v1124, %v962
    %1126 = vrot.lane.b32.xlu0 %v963, 16
    %v1127 = vpop.permute.xlu0 %1126
    %v1128 = vsel %vm108, %v1127, %v963
    %1129 = vrot.lane.b32.xlu0 %v964, 16
    %v1130 = vpop.permute.xlu0 %1129
    %v1131 = vsel %vm108, %v1130, %v964
    %1132 = vrot.lane.b32.xlu0 %v1122, 16
    %v1133 = vpop.permute.xlu0 %1132
    %1134 = vrot.lane.b32.xlu0 %v1125, 16
    %v1135 = vpop.permute.xlu0 %1134
    %1136 = vrot.lane.b32.xlu0 %v1128, 16
    %v1137 = vpop.permute.xlu0 %1136
    %1138 = vrot.lane.b32.xlu0 %v1131, 16
    %v1139 = vpop.permute.xlu0 %1138
    %v1140 = vsel %vm108, %v1133, %v961
    %v1141 = vsel %vm108, %v1135, %v962
    %v1142 = vsel %vm108, %v1137, %v963
    %v1143 = vsel %vm108, %v1139, %v964
    %1145 = vset.pattern.permute.xlu0 0
    %1146 = vperm.xlu0 %1145, %v970
    %v1147 = vpop.permute.xlu0 %1146
    %1150 = vset.pattern.permute.xlu0 0
    %1151 = vperm.xlu0 %1150, %v971
    %v1152 = vpop.permute.xlu0 %1151
    %1155 = vset.pattern.permute.xlu0 0
    %1156 = vperm.xlu0 %1155, %v972
    %v1157 = vpop.permute.xlu0 %1156
    %1160 = vset.pattern.permute.xlu0 0
    %1161 = vperm.xlu0 %1160, %v973
    %v1162 = vpop.permute.xlu0 %1161
    %1168 = vrot.lane.b32.xlu0 %v1140, 113
    %v1169 = vpop.permute.xlu0 %1168
    %1170 = vrot.lane.b32.xlu0 %v1141, 113
    %v1171 = vpop.permute.xlu0 %1170
    %1172 = vrot.lane.b32.xlu0 %v1142, 113
    %v1173 = vpop.permute.xlu0 %1172
    %1174 = vrot.lane.b32.xlu0 %v1143, 113
    %v1175 = vpop.permute.xlu0 %1174
    %v1180 = vsel %vm134, %v1147, %v1169
    %v1181 = vsel %vm134, %v1152, %v1171
    %v1182 = vsel %vm134, %v1157, %v1173
    %v1183 = vsel %vm134, %v1162, %v1175
    %s1184 = sld [smem:[#allocation2 + $0x103]]
    %v1185 = vstv %s1184
    %v1186 = vmul.f32 %v1180, %v1185
    %v1187 = vmul.f32 %v1181, %v1185
    %v1188 = vmul.f32 %v1182, %v1185
    %v1189 = vmul.f32 %v1183, %v1185
    %v1190 = vadd.f32 %v1116, %v1186
    %v1191 = vadd.f32 %v1117, %v1187
    %v1192 = vadd.f32 %v1118, %v1188
    %v1193 = vadd.f32 %v1119, %v1189
    %s1194 = sld [smem:[#allocation2 + $0x104]]
    %v1195 = vstv %s1194
    %v1196 = vmul.f32 %v961, %v1195
    %v1197 = vmul.f32 %v962, %v1195
    %v1198 = vmul.f32 %v963, %v1195
    %v1199 = vmul.f32 %v964, %v1195
    %v1200 = vadd.f32 %v1190, %v1196
    %v1201 = vadd.f32 %v1191, %v1197
    %v1202 = vadd.f32 %v1192, %v1198
    %v1203 = vadd.f32 %v1193, %v1199
    %1204 = vset.pattern.permute.xlu0 1
    %1205 = vperm.xlu0 %1204, %v970
    %v1206 = vpop.permute.xlu0 %1205
    %1208 = vset.pattern.permute.xlu0 1
    %1209 = vperm.xlu0 %1208, %v971
    %v1210 = vpop.permute.xlu0 %1209
    %1212 = vset.pattern.permute.xlu0 1
    %1213 = vperm.xlu0 %1212, %v972
    %v1214 = vpop.permute.xlu0 %1213
    %1216 = vset.pattern.permute.xlu0 1
    %1217 = vperm.xlu0 %1216, %v973
    %v1218 = vpop.permute.xlu0 %1217
    %1220 = vrot.lane.b32.xlu0 %v1140, 127
    %v1221 = vpop.permute.xlu0 %1220
    %1222 = vrot.lane.b32.xlu0 %v1141, 127
    %v1223 = vpop.permute.xlu0 %1222
    %1224 = vrot.lane.b32.xlu0 %v1142, 127
    %v1225 = vpop.permute.xlu0 %1224
    %1226 = vrot.lane.b32.xlu0 %v1143, 127
    %v1227 = vpop.permute.xlu0 %1226
    %v1232 = vsel %vm192, %v1206, %v1221
    %v1233 = vsel %vm192, %v1210, %v1223
    %v1234 = vsel %vm192, %v1214, %v1225
    %v1235 = vsel %vm192, %v1218, %v1227
    %s1236 = sld [smem:[#allocation2 + $0x105]]
    %v1237 = vstv %s1236
    %v1238 = vmul.f32 %v1232, %v1237
    %v1239 = vmul.f32 %v1233, %v1237
    %v1240 = vmul.f32 %v1234, %v1237
    %v1241 = vmul.f32 %v1235, %v1237
    %v1242 = vadd.f32 %v1200, %v1238
    %v1243 = vadd.f32 %v1201, %v1239
    %v1244 = vadd.f32 %v1202, %v1240
    %v1245 = vadd.f32 %v1203, %v1241
    %v1246 = vrot.slane %v961, 1
    %v1247 = vrot.slane %v963, 1
    %v1248 = vrot.slane %v962, 1
    %v1249 = vrot.slane %v964, 1
    %v1250 = vsel %vm365, %v1246, %v1248
    %v1251 = vsel %vm365, %v1247, %v1249
    %v1252 = vsel %vm365, %v1248, %v1246
    %v1253 = vsel %vm365, %v1249, %v1247
    %v1254 = vsel %vm372, %v1250, 0.0
    %v1255 = vsel %vm373, %v1252, 0.0
    %v1256 = vsel %vm372, %v1251, 0.0
    %v1257 = vsel %vm373, %v1253, 0.0
    %v1258 = vrot.slane %v970, 1
    %v1259 = vrot.slane %v972, 1
    %v1260 = vrot.slane %v971, 1
    %v1261 = vrot.slane %v973, 1
    %v1262 = vsel %vm365, %v1258, %v1260
    %v1263 = vsel %vm365, %v1259, %v1261
    %v1264 = vsel %vm365, %v1260, %v1258
    %v1265 = vsel %vm365, %v1261, %v1259
    %v1266 = vsel %vm372, %v1262, 0.0
    %v1267 = vsel %vm373, %v1264, 0.0
    %v1268 = vsel %vm372, %v1263, 0.0
    %v1269 = vsel %vm373, %v1265, 0.0
    %1270 = vrot.lane.b32.xlu0 %v1254, 16
    %v1271 = vpop.permute.xlu0 %1270
    %v1272 = vsel %vm108, %v1271, %v1254
    %1273 = vrot.lane.b32.xlu0 %v1255, 16
    %v1274 = vpop.permute.xlu0 %1273
    %v1275 = vsel %vm108, %v1274, %v1255
    %1276 = vrot.lane.b32.xlu0 %v1256, 16
    %v1277 = vpop.permute.xlu0 %1276
    %v1278 = vsel %vm108, %v1277, %v1256
    %1279 = vrot.lane.b32.xlu0 %v1257, 16
    %v1280 = vpop.permute.xlu0 %1279
    %v1281 = vsel %vm108, %v1280, %v1257
    %1282 = vrot.lane.b32.xlu0 %v1272, 16
    %v1283 = vpop.permute.xlu0 %1282
    %1284 = vrot.lane.b32.xlu0 %v1275, 16
    %v1285 = vpop.permute.xlu0 %1284
    %1286 = vrot.lane.b32.xlu0 %v1278, 16
    %v1287 = vpop.permute.xlu0 %1286
    %1288 = vrot.lane.b32.xlu0 %v1281, 16
    %v1289 = vpop.permute.xlu0 %1288
    %v1290 = vsel %vm108, %v1283, %v1254
    %v1291 = vsel %vm108, %v1285, %v1255
    %v1292 = vsel %vm108, %v1287, %v1256
    %v1293 = vsel %vm108, %v1289, %v1257
    %1295 = vset.pattern.permute.xlu0 0
    %1296 = vperm.xlu0 %1295, %v1266
    %v1297 = vpop.permute.xlu0 %1296
    %1300 = vset.pattern.permute.xlu0 0
    %1301 = vperm.xlu0 %1300, %v1267
    %v1302 = vpop.permute.xlu0 %1301
    %1305 = vset.pattern.permute.xlu0 0
    %1306 = vperm.xlu0 %1305, %v1268
    %v1307 = vpop.permute.xlu0 %1306
    %1310 = vset.pattern.permute.xlu0 0
    %1311 = vperm.xlu0 %1310, %v1269
    %v1312 = vpop.permute.xlu0 %1311
    %1318 = vrot.lane.b32.xlu0 %v1290, 113
    %v1319 = vpop.permute.xlu0 %1318
    %1320 = vrot.lane.b32.xlu0 %v1291, 113
    %v1321 = vpop.permute.xlu0 %1320
    %1322 = vrot.lane.b32.xlu0 %v1292, 113
    %v1323 = vpop.permute.xlu0 %1322
    %1324 = vrot.lane.b32.xlu0 %v1293, 113
    %v1325 = vpop.permute.xlu0 %1324
    %v1330 = vsel %vm134, %v1297, %v1319
    %v1331 = vsel %vm134, %v1302, %v1321
    %v1332 = vsel %vm134, %v1307, %v1323
    %v1333 = vsel %vm134, %v1312, %v1325
    %s1334 = sld [smem:[#allocation2 + $0x106]]
    %v1335 = vstv %s1334
    %v1336 = vmul.f32 %v1330, %v1335
    %v1337 = vmul.f32 %v1331, %v1335
    %v1338 = vmul.f32 %v1332, %v1335
    %v1339 = vmul.f32 %v1333, %v1335
    %v1340 = vadd.f32 %v1242, %v1336
    %v1341 = vadd.f32 %v1243, %v1337
    %v1342 = vadd.f32 %v1244, %v1338
    %v1343 = vadd.f32 %v1245, %v1339
    %s1344 = sld [smem:[#allocation2 + $0x107]]
    %v1345 = vstv %s1344
    %v1346 = vmul.f32 %v1254, %v1345
    %v1347 = vmul.f32 %v1255, %v1345
    %v1348 = vmul.f32 %v1256, %v1345
    %v1349 = vmul.f32 %v1257, %v1345
    %v1350 = vadd.f32 %v1340, %v1346
    %v1351 = vadd.f32 %v1341, %v1347
    %v1352 = vadd.f32 %v1342, %v1348
    %v1353 = vadd.f32 %v1343, %v1349
    %1354 = vset.pattern.permute.xlu0 1
    %1355 = vperm.xlu0 %1354, %v1266
    %v1356 = vpop.permute.xlu0 %1355
    %1358 = vset.pattern.permute.xlu0 1
    %1359 = vperm.xlu0 %1358, %v1267
    %v1360 = vpop.permute.xlu0 %1359
    %1362 = vset.pattern.permute.xlu0 1
    %1363 = vperm.xlu0 %1362, %v1268
    %v1364 = vpop.permute.xlu0 %1363
    %1366 = vset.pattern.permute.xlu0 1
    %1367 = vperm.xlu0 %1366, %v1269
    %v1368 = vpop.permute.xlu0 %1367
    %1370 = vrot.lane.b32.xlu0 %v1290, 127
    %v1371 = vpop.permute.xlu0 %1370
    %1372 = vrot.lane.b32.xlu0 %v1291, 127
    %v1373 = vpop.permute.xlu0 %1372
    %1374 = vrot.lane.b32.xlu0 %v1292, 127
    %v1375 = vpop.permute.xlu0 %1374
    %1376 = vrot.lane.b32.xlu0 %v1293, 127
    %v1377 = vpop.permute.xlu0 %1376
    %v1382 = vsel %vm192, %v1356, %v1371
    %v1383 = vsel %vm192, %v1360, %v1373
    %v1384 = vsel %vm192, %v1364, %v1375
    %v1385 = vsel %vm192, %v1368, %v1377
    %s1386 = sld [smem:[#allocation2 + $0x108]]
    %v1387 = vstv %s1386
    %v1388 = vmul.f32 %v1382, %v1387
    %v1389 = vmul.f32 %v1383, %v1387
    %v1390 = vmul.f32 %v1384, %v1387
    %v1391 = vmul.f32 %v1385, %v1387
    %v1392 = vadd.f32 %v1350, %v1388
    %v1393 = vadd.f32 %v1351, %v1389
    %v1394 = vadd.f32 %v1352, %v1390
    %v1395 = vadd.f32 %v1353, %v1391
    %s1396 = scalar_lea.vmem %s0, 48
    %v1397 = vld [vmem:[%s1396] sm:$0xff]
    %v1398 = vld [vmem:[%s1396 + $0x8] sm:$0xff]
    %v1399 = vld [vmem:[%s1396 + $0x40] sm:$0xff]
    %v1400 = vld [vmem:[%s1396 + $0x48] sm:$0xff]
    %v1401 = vmax.f32 %v1397, 0.0
    %v1402 = vmax.f32 %v1398, 0.0
    %v1403 = vmax.f32 %v1399, 0.0
    %v1404 = vmax.f32 %v1400, 0.0
    %s1405 = scalar_lea.vmem %s1, 96
    %v1406 = vld [vmem:[%s1405] sm:$0xff]
    %v1407 = vld [vmem:[%s1405 + $0x8] sm:$0xff]
    %v1408 = vld [vmem:[%s1405 + $0x10] sm:$0xff]
    %v1409 = vld [vmem:[%s1405 + $0x18] sm:$0xff]
    %v1410 = vmax.f32 %v1406, 0.0
    %v1411 = vmax.f32 %v1407, 0.0
    %v1412 = vmax.f32 %v1408, 0.0
    %v1413 = vmax.f32 %v1409, 0.0
    %v1414 = vrot.slane %v1401, 7
    %v1415 = vrot.slane %v1403, 7
    %v1416 = vrot.slane %v1402, 7
    %v1417 = vrot.slane %v1404, 7
    %v1418 = vsel %vm83, %v1414, %v1416
    %v1419 = vsel %vm83, %v1415, %v1417
    %v1420 = vsel %vm83, %v1416, %v1414
    %v1421 = vsel %vm83, %v1417, %v1415
    %v1422 = vsel %vm90, %v1420, 0.0
    %v1423 = vsel %vm91, %v1418, 0.0
    %v1424 = vsel %vm90, %v1421, 0.0
    %v1425 = vsel %vm91, %v1419, 0.0
    %v1426 = vrot.slane %v1410, 7
    %v1427 = vrot.slane %v1412, 7
    %v1428 = vrot.slane %v1411, 7
    %v1429 = vrot.slane %v1413, 7
    %v1430 = vsel %vm83, %v1426, %v1428
    %v1431 = vsel %vm83, %v1427, %v1429
    %v1432 = vsel %vm83, %v1428, %v1426
    %v1433 = vsel %vm83, %v1429, %v1427
    %v1434 = vsel %vm90, %v1432, 0.0
    %v1435 = vsel %vm91, %v1430, 0.0
    %v1436 = vsel %vm90, %v1433, 0.0
    %v1437 = vsel %vm91, %v1431, 0.0
    %1438 = vrot.lane.b32.xlu0 %v1422, 16
    %v1439 = vpop.permute.xlu0 %1438
    %v1440 = vsel %vm108, %v1439, %v1422
    %1441 = vrot.lane.b32.xlu0 %v1423, 16
    %v1442 = vpop.permute.xlu0 %1441
    %v1443 = vsel %vm108, %v1442, %v1423
    %1444 = vrot.lane.b32.xlu0 %v1424, 16
    %v1445 = vpop.permute.xlu0 %1444
    %v1446 = vsel %vm108, %v1445, %v1424
    %1447 = vrot.lane.b32.xlu0 %v1425, 16
    %v1448 = vpop.permute.xlu0 %1447
    %v1449 = vsel %vm108, %v1448, %v1425
    %1450 = vrot.lane.b32.xlu0 %v1440, 16
    %v1451 = vpop.permute.xlu0 %1450
    %1452 = vrot.lane.b32.xlu0 %v1443, 16
    %v1453 = vpop.permute.xlu0 %1452
    %1454 = vrot.lane.b32.xlu0 %v1446, 16
    %v1455 = vpop.permute.xlu0 %1454
    %1456 = vrot.lane.b32.xlu0 %v1449, 16
    %v1457 = vpop.permute.xlu0 %1456
    %v1458 = vsel %vm108, %v1451, %v1422
    %v1459 = vsel %vm108, %v1453, %v1423
    %v1460 = vsel %vm108, %v1455, %v1424
    %v1461 = vsel %vm108, %v1457, %v1425
    %1463 = vset.pattern.permute.xlu0 0
    %1464 = vperm.xlu0 %1463, %v1434
    %v1465 = vpop.permute.xlu0 %1464
    %1468 = vset.pattern.permute.xlu0 0
    %1469 = vperm.xlu0 %1468, %v1435
    %v1470 = vpop.permute.xlu0 %1469
    %1473 = vset.pattern.permute.xlu0 0
    %1474 = vperm.xlu0 %1473, %v1436
    %v1475 = vpop.permute.xlu0 %1474
    %1478 = vset.pattern.permute.xlu0 0
    %1479 = vperm.xlu0 %1478, %v1437
    %v1480 = vpop.permute.xlu0 %1479
    %1486 = vrot.lane.b32.xlu0 %v1458, 113
    %v1487 = vpop.permute.xlu0 %1486
    %1488 = vrot.lane.b32.xlu0 %v1459, 113
    %v1489 = vpop.permute.xlu0 %1488
    %1490 = vrot.lane.b32.xlu0 %v1460, 113
    %v1491 = vpop.permute.xlu0 %1490
    %1492 = vrot.lane.b32.xlu0 %v1461, 113
    %v1493 = vpop.permute.xlu0 %1492
    %v1498 = vsel %vm134, %v1465, %v1487
    %v1499 = vsel %vm134, %v1470, %v1489
    %v1500 = vsel %vm134, %v1475, %v1491
    %v1501 = vsel %vm134, %v1480, %v1493
    %s1502 = sld [smem:[#allocation2 + $0x180]]
    %v1503 = vstv %s1502
    %v1504 = vmul.f32 %v1498, %v1503
    %v1505 = vmul.f32 %v1499, %v1503
    %v1506 = vmul.f32 %v1500, %v1503
    %v1507 = vmul.f32 %v1501, %v1503
    %s1508 = sld [smem:[#allocation2 + $0x181]]
    %v1509 = vstv %s1508
    %v1510 = vmul.f32 %v1422, %v1509
    %v1511 = vmul.f32 %v1423, %v1509
    %v1512 = vmul.f32 %v1424, %v1509
    %v1513 = vmul.f32 %v1425, %v1509
    %v1514 = vadd.f32 %v1504, %v1510
    %v1515 = vadd.f32 %v1505, %v1511
    %v1516 = vadd.f32 %v1506, %v1512
    %v1517 = vadd.f32 %v1507, %v1513
    %1518 = vset.pattern.permute.xlu0 1
    %1519 = vperm.xlu0 %1518, %v1434
    %v1520 = vpop.permute.xlu0 %1519
    %1522 = vset.pattern.permute.xlu0 1
    %1523 = vperm.xlu0 %1522, %v1435
    %v1524 = vpop.permute.xlu0 %1523
    %1526 = vset.pattern.permute.xlu0 1
    %1527 = vperm.xlu0 %1526, %v1436
    %v1528 = vpop.permute.xlu0 %1527
    %1530 = vset.pattern.permute.xlu0 1
    %1531 = vperm.xlu0 %1530, %v1437
    %v1532 = vpop.permute.xlu0 %1531
    %1534 = vrot.lane.b32.xlu0 %v1458, 127
    %v1535 = vpop.permute.xlu0 %1534
    %1536 = vrot.lane.b32.xlu0 %v1459, 127
    %v1537 = vpop.permute.xlu0 %1536
    %1538 = vrot.lane.b32.xlu0 %v1460, 127
    %v1539 = vpop.permute.xlu0 %1538
    %1540 = vrot.lane.b32.xlu0 %v1461, 127
    %v1541 = vpop.permute.xlu0 %1540
    %v1546 = vsel %vm192, %v1520, %v1535
    %v1547 = vsel %vm192, %v1524, %v1537
    %v1548 = vsel %vm192, %v1528, %v1539
    %v1549 = vsel %vm192, %v1532, %v1541
    %s1550 = sld [smem:[#allocation2 + $0x182]]
    %v1551 = vstv %s1550
    %v1552 = vmul.f32 %v1546, %v1551
    %v1553 = vmul.f32 %v1547, %v1551
    %v1554 = vmul.f32 %v1548, %v1551
    %v1555 = vmul.f32 %v1549, %v1551
    %v1556 = vadd.f32 %v1514, %v1552
    %v1557 = vadd.f32 %v1515, %v1553
    %v1558 = vadd.f32 %v1516, %v1554
    %v1559 = vadd.f32 %v1517, %v1555
    %1560 = vrot.lane.b32.xlu0 %v1401, 16
    %v1561 = vpop.permute.xlu0 %1560
    %v1562 = vsel %vm108, %v1561, %v1401
    %1563 = vrot.lane.b32.xlu0 %v1402, 16
    %v1564 = vpop.permute.xlu0 %1563
    %v1565 = vsel %vm108, %v1564, %v1402
    %1566 = vrot.lane.b32.xlu0 %v1403, 16
    %v1567 = vpop.permute.xlu0 %1566
    %v1568 = vsel %vm108, %v1567, %v1403
    %1569 = vrot.lane.b32.xlu0 %v1404, 16
    %v1570 = vpop.permute.xlu0 %1569
    %v1571 = vsel %vm108, %v1570, %v1404
    %1572 = vrot.lane.b32.xlu0 %v1562, 16
    %v1573 = vpop.permute.xlu0 %1572
    %1574 = vrot.lane.b32.xlu0 %v1565, 16
    %v1575 = vpop.permute.xlu0 %1574
    %1576 = vrot.lane.b32.xlu0 %v1568, 16
    %v1577 = vpop.permute.xlu0 %1576
    %1578 = vrot.lane.b32.xlu0 %v1571, 16
    %v1579 = vpop.permute.xlu0 %1578
    %v1580 = vsel %vm108, %v1573, %v1401
    %v1581 = vsel %vm108, %v1575, %v1402
    %v1582 = vsel %vm108, %v1577, %v1403
    %v1583 = vsel %vm108, %v1579, %v1404
    %1585 = vset.pattern.permute.xlu0 0
    %1586 = vperm.xlu0 %1585, %v1410
    %v1587 = vpop.permute.xlu0 %1586
    %1590 = vset.pattern.permute.xlu0 0
    %1591 = vperm.xlu0 %1590, %v1411
    %v1592 = vpop.permute.xlu0 %1591
    %1595 = vset.pattern.permute.xlu0 0
    %1596 = vperm.xlu0 %1595, %v1412
    %v1597 = vpop.permute.xlu0 %1596
    %1600 = vset.pattern.permute.xlu0 0
    %1601 = vperm.xlu0 %1600, %v1413
    %v1602 = vpop.permute.xlu0 %1601
    %1608 = vrot.lane.b32.xlu0 %v1580, 113
    %v1609 = vpop.permute.xlu0 %1608
    %1610 = vrot.lane.b32.xlu0 %v1581, 113
    %v1611 = vpop.permute.xlu0 %1610
    %1612 = vrot.lane.b32.xlu0 %v1582, 113
    %v1613 = vpop.permute.xlu0 %1612
    %1614 = vrot.lane.b32.xlu0 %v1583, 113
    %v1615 = vpop.permute.xlu0 %1614
    %v1620 = vsel %vm134, %v1587, %v1609
    %v1621 = vsel %vm134, %v1592, %v1611
    %v1622 = vsel %vm134, %v1597, %v1613
    %v1623 = vsel %vm134, %v1602, %v1615
    %s1624 = sld [smem:[#allocation2 + $0x183]]
    %v1625 = vstv %s1624
    %v1626 = vmul.f32 %v1620, %v1625
    %v1627 = vmul.f32 %v1621, %v1625
    %v1628 = vmul.f32 %v1622, %v1625
    %v1629 = vmul.f32 %v1623, %v1625
    %v1630 = vadd.f32 %v1556, %v1626
    %v1631 = vadd.f32 %v1557, %v1627
    %v1632 = vadd.f32 %v1558, %v1628
    %v1633 = vadd.f32 %v1559, %v1629
    %s1634 = sld [smem:[#allocation2 + $0x184]]
    %v1635 = vstv %s1634
    %v1636 = vmul.f32 %v1401, %v1635
    %v1637 = vmul.f32 %v1402, %v1635
    %v1638 = vmul.f32 %v1403, %v1635
    %v1639 = vmul.f32 %v1404, %v1635
    %v1640 = vadd.f32 %v1630, %v1636
    %v1641 = vadd.f32 %v1631, %v1637
    %v1642 = vadd.f32 %v1632, %v1638
    %v1643 = vadd.f32 %v1633, %v1639
    %1644 = vset.pattern.permute.xlu0 1
    %1645 = vperm.xlu0 %1644, %v1410
    %v1646 = vpop.permute.xlu0 %1645
    %1648 = vset.pattern.permute.xlu0 1
    %1649 = vperm.xlu0 %1648, %v1411
    %v1650 = vpop.permute.xlu0 %1649
    %1652 = vset.pattern.permute.xlu0 1
    %1653 = vperm.xlu0 %1652, %v1412
    %v1654 = vpop.permute.xlu0 %1653
    %1656 = vset.pattern.permute.xlu0 1
    %1657 = vperm.xlu0 %1656, %v1413
    %v1658 = vpop.permute.xlu0 %1657
    %1660 = vrot.lane.b32.xlu0 %v1580, 127
    %v1661 = vpop.permute.xlu0 %1660
    %1662 = vrot.lane.b32.xlu0 %v1581, 127
    %v1663 = vpop.permute.xlu0 %1662
    %1664 = vrot.lane.b32.xlu0 %v1582, 127
    %v1665 = vpop.permute.xlu0 %1664
    %1666 = vrot.lane.b32.xlu0 %v1583, 127
    %v1667 = vpop.permute.xlu0 %1666
    %v1672 = vsel %vm192, %v1646, %v1661
    %v1673 = vsel %vm192, %v1650, %v1663
    %v1674 = vsel %vm192, %v1654, %v1665
    %v1675 = vsel %vm192, %v1658, %v1667
    %s1676 = sld [smem:[#allocation2 + $0x185]]
    %v1677 = vstv %s1676
    %v1678 = vmul.f32 %v1672, %v1677
    %v1679 = vmul.f32 %v1673, %v1677
    %v1680 = vmul.f32 %v1674, %v1677
    %v1681 = vmul.f32 %v1675, %v1677
    %v1682 = vadd.f32 %v1640, %v1678
    %v1683 = vadd.f32 %v1641, %v1679
    %v1684 = vadd.f32 %v1642, %v1680
    %v1685 = vadd.f32 %v1643, %v1681
    %v1686 = vrot.slane %v1401, 1
    %v1687 = vrot.slane %v1403, 1
    %v1688 = vrot.slane %v1402, 1
    %v1689 = vrot.slane %v1404, 1
    %v1690 = vsel %vm365, %v1686, %v1688
    %v1691 = vsel %vm365, %v1687, %v1689
    %v1692 = vsel %vm365, %v1688, %v1686
    %v1693 = vsel %vm365, %v1689, %v1687
    %v1694 = vsel %vm372, %v1690, 0.0
    %v1695 = vsel %vm373, %v1692, 0.0
    %v1696 = vsel %vm372, %v1691, 0.0
    %v1697 = vsel %vm373, %v1693, 0.0
    %v1698 = vrot.slane %v1410, 1
    %v1699 = vrot.slane %v1412, 1
    %v1700 = vrot.slane %v1411, 1
    %v1701 = vrot.slane %v1413, 1
    %v1702 = vsel %vm365, %v1698, %v1700
    %v1703 = vsel %vm365, %v1699, %v1701
    %v1704 = vsel %vm365, %v1700, %v1698
    %v1705 = vsel %vm365, %v1701, %v1699
    %v1706 = vsel %vm372, %v1702, 0.0
    %v1707 = vsel %vm373, %v1704, 0.0
    %v1708 = vsel %vm372, %v1703, 0.0
    %v1709 = vsel %vm373, %v1705, 0.0
    %1710 = vrot.lane.b32.xlu0 %v1694, 16
    %v1711 = vpop.permute.xlu0 %1710
    %v1712 = vsel %vm108, %v1711, %v1694
    %1713 = vrot.lane.b32.xlu0 %v1695, 16
    %v1714 = vpop.permute.xlu0 %1713
    %v1715 = vsel %vm108, %v1714, %v1695
    %1716 = vrot.lane.b32.xlu0 %v1696, 16
    %v1717 = vpop.permute.xlu0 %1716
    %v1718 = vsel %vm108, %v1717, %v1696
    %1719 = vrot.lane.b32.xlu0 %v1697, 16
    %v1720 = vpop.permute.xlu0 %1719
    %v1721 = vsel %vm108, %v1720, %v1697
    %1722 = vrot.lane.b32.xlu0 %v1712, 16
    %v1723 = vpop.permute.xlu0 %1722
    %1724 = vrot.lane.b32.xlu0 %v1715, 16
    %v1725 = vpop.permute.xlu0 %1724
    %1726 = vrot.lane.b32.xlu0 %v1718, 16
    %v1727 = vpop.permute.xlu0 %1726
    %1728 = vrot.lane.b32.xlu0 %v1721, 16
    %v1729 = vpop.permute.xlu0 %1728
    %v1730 = vsel %vm108, %v1723, %v1694
    %v1731 = vsel %vm108, %v1725, %v1695
    %v1732 = vsel %vm108, %v1727, %v1696
    %v1733 = vsel %vm108, %v1729, %v1697
    %1735 = vset.pattern.permute.xlu0 0
    %1736 = vperm.xlu0 %1735, %v1706
    %v1737 = vpop.permute.xlu0 %1736
    %1740 = vset.pattern.permute.xlu0 0
    %1741 = vperm.xlu0 %1740, %v1707
    %v1742 = vpop.permute.xlu0 %1741
    %1745 = vset.pattern.permute.xlu0 0
    %1746 = vperm.xlu0 %1745, %v1708
    %v1747 = vpop.permute.xlu0 %1746
    %1750 = vset.pattern.permute.xlu0 0
    %1751 = vperm.xlu0 %1750, %v1709
    %v1752 = vpop.permute.xlu0 %1751
    %1758 = vrot.lane.b32.xlu0 %v1730, 113
    %v1759 = vpop.permute.xlu0 %1758
    %1760 = vrot.lane.b32.xlu0 %v1731, 113
    %v1761 = vpop.permute.xlu0 %1760
    %1762 = vrot.lane.b32.xlu0 %v1732, 113
    %v1763 = vpop.permute.xlu0 %1762
    %1764 = vrot.lane.b32.xlu0 %v1733, 113
    %v1765 = vpop.permute.xlu0 %1764
    %v1770 = vsel %vm134, %v1737, %v1759
    %v1771 = vsel %vm134, %v1742, %v1761
    %v1772 = vsel %vm134, %v1747, %v1763
    %v1773 = vsel %vm134, %v1752, %v1765
    %s1774 = sld [smem:[#allocation2 + $0x186]]
    %v1775 = vstv %s1774
    %v1776 = vmul.f32 %v1770, %v1775
    %v1777 = vmul.f32 %v1771, %v1775
    %v1778 = vmul.f32 %v1772, %v1775
    %v1779 = vmul.f32 %v1773, %v1775
    %v1780 = vadd.f32 %v1682, %v1776
    %v1781 = vadd.f32 %v1683, %v1777
    %v1782 = vadd.f32 %v1684, %v1778
    %v1783 = vadd.f32 %v1685, %v1779
    %s1784 = sld [smem:[#allocation2 + $0x187]]
    %v1785 = vstv %s1784
    %v1786 = vmul.f32 %v1694, %v1785
    %v1787 = vmul.f32 %v1695, %v1785
    %v1788 = vmul.f32 %v1696, %v1785
    %v1789 = vmul.f32 %v1697, %v1785
    %v1790 = vadd.f32 %v1780, %v1786
    %v1791 = vadd.f32 %v1781, %v1787
    %v1792 = vadd.f32 %v1782, %v1788
    %v1793 = vadd.f32 %v1783, %v1789
    %1794 = vset.pattern.permute.xlu0 1
    %1795 = vperm.xlu0 %1794, %v1706
    %v1796 = vpop.permute.xlu0 %1795
    %1798 = vset.pattern.permute.xlu0 1
    %1799 = vperm.xlu0 %1798, %v1707
    %v1800 = vpop.permute.xlu0 %1799
    %1802 = vset.pattern.permute.xlu0 1
    %1803 = vperm.xlu0 %1802, %v1708
    %v1804 = vpop.permute.xlu0 %1803
    %1806 = vset.pattern.permute.xlu0 1
    %1807 = vperm.xlu0 %1806, %v1709
    %v1808 = vpop.permute.xlu0 %1807
    %1810 = vrot.lane.b32.xlu0 %v1730, 127
    %v1811 = vpop.permute.xlu0 %1810
    %1812 = vrot.lane.b32.xlu0 %v1731, 127
    %v1813 = vpop.permute.xlu0 %1812
    %1814 = vrot.lane.b32.xlu0 %v1732, 127
    %v1815 = vpop.permute.xlu0 %1814
    %1816 = vrot.lane.b32.xlu0 %v1733, 127
    %v1817 = vpop.permute.xlu0 %1816
    %v1822 = vsel %vm192, %v1796, %v1811
    %v1823 = vsel %vm192, %v1800, %v1813
    %v1824 = vsel %vm192, %v1804, %v1815
    %v1825 = vsel %vm192, %v1808, %v1817
    %s1826 = sld [smem:[#allocation2 + $0x188]]
    %v1827 = vstv %s1826
    %v1828 = vmul.f32 %v1822, %v1827
    %v1829 = vmul.f32 %v1823, %v1827
    %v1830 = vmul.f32 %v1824, %v1827
    %v1831 = vmul.f32 %v1825, %v1827
    %v1832 = vadd.f32 %v1790, %v1828
    %v1833 = vadd.f32 %v1791, %v1829
    %v1834 = vadd.f32 %v1792, %v1830
    %v1835 = vadd.f32 %v1793, %v1831
    %s1836 = sld [smem:[#allocation4]]
    %v1837 = vstv %s1836
    %v1838 = vmul.f32 %v512, %v1837
    %v1839 = vmul.f32 %v513, %v1837
    %v1840 = vmul.f32 %v514, %v1837
    %v1841 = vmul.f32 %v515, %v1837
    %s1842 = sld [smem:[#allocation4 + $0x1]]
    %v1843 = vstv %s1842
    %v1844 = vmul.f32 %v952, %v1843
    %v1845 = vmul.f32 %v953, %v1843
    %v1846 = vmul.f32 %v954, %v1843
    %v1847 = vmul.f32 %v955, %v1843
    %v1848 = vadd.f32 %v1838, %v1844
    %v1849 = vadd.f32 %v1839, %v1845
    %v1850 = vadd.f32 %v1840, %v1846
    %v1851 = vadd.f32 %v1841, %v1847
    %s1852 = sld [smem:[#allocation4 + $0x2]]
    %v1853 = vstv %s1852
    %v1854 = vmul.f32 %v1392, %v1853
    %v1855 = vmul.f32 %v1393, %v1853
    %v1856 = vmul.f32 %v1394, %v1853
    %v1857 = vmul.f32 %v1395, %v1853
    %v1858 = vadd.f32 %v1848, %v1854
    %v1859 = vadd.f32 %v1849, %v1855
    %v1860 = vadd.f32 %v1850, %v1856
    %v1861 = vadd.f32 %v1851, %v1857
    %s1862 = sld [smem:[#allocation4 + $0x3]]
    %v1863 = vstv %s1862
    %v1864 = vmul.f32 %v1832, %v1863
    %v1865 = vmul.f32 %v1833, %v1863
    %v1866 = vmul.f32 %v1834, %v1863
    %v1867 = vmul.f32 %v1835, %v1863
    %v1868 = vadd.f32 %v1858, %v1864
    %v1869 = vadd.f32 %v1859, %v1865
    %v1870 = vadd.f32 %v1860, %v1866
    %v1871 = vadd.f32 %v1861, %v1867
    %vm1872 = vcmask 130048
    %1873 = vst.msk [vmem:[%s4] sm:$0xff] %vm1872, %v1868
    %1874 = vst.msk [vmem:[%s4 + $0x8] sm:$0xff] %vm1872, %v1869
    %1875 = vst.msk [vmem:[%s4 + $0x80] sm:$0xff] %vm1872, %v1870
    %1876 = vst.msk [vmem:[%s4 + $0x88] sm:$0xff] %vm1872, %v1871
    %v1877 = vsel %vm1872, %v1868, 0.0
    %v1878 = vsel %vm1872, %v1869, 0.0
    %v1879 = vadd.f32 %v1877, %v1878
    %v1880 = vsel %vm1872, %v1870, 0.0
    %v1881 = vadd.f32 %v1879, %v1880
    %v1882 = vsel %vm1872, %v1871, 0.0
    %v1883 = vadd.f32 %v1881, %v1882
    %v1884 = vrot.slane %v1883, 4
    %v1885 = vadd.f32 %v1883, %v1884
    %v1886 = vrot.slane %v1885, 2
    %v1887 = vadd.f32 %v1885, %v1886
    %v1888 = vrot.slane %v1887, 1
    %v1889 = vadd.f32 %v1887, %v1888
    %vm1890 = vcmask 122880
    %1891 = vst.msk [vmem:[%s5] sm:$0x1] %vm1890, %v1889
    %v1892 = vmul.f32 %v1868, %v1868
    %v1893 = vmul.f32 %v1869, %v1869
    %v1894 = vmul.f32 %v1870, %v1870
    %v1895 = vmul.f32 %v1871, %v1871
    %v1896 = vsel %vm1872, %v1892, 0.0
    %v1897 = vsel %vm1872, %v1893, 0.0
    %v1898 = vadd.f32 %v1896, %v1897
    %v1899 = vsel %vm1872, %v1894, 0.0
    %v1900 = vadd.f32 %v1898, %v1899
    %v1901 = vsel %vm1872, %v1895, 0.0
    %v1902 = vadd.f32 %v1900, %v1901
    %v1903 = vrot.slane %v1902, 4
    %v1904 = vadd.f32 %v1902, %v1903
    %v1905 = vrot.slane %v1904, 2
    %v1906 = vadd.f32 %v1904, %v1905
    %v1907 = vrot.slane %v1906, 1
    %v1908 = vadd.f32 %v1906, %v1907
    %s1909 = scalar_lea.vmem %s5, 8
    %1910 = vst.msk [vmem:[%s1909] sm:$0x1] %vm1890, %v1908
    %s1911 = sld [smem:[#allocation4 + $0x80]]
    %v1912 = vstv %s1911
    %v1913 = vmul.f32 %v512, %v1912
    %v1914 = vmul.f32 %v513, %v1912
    %v1915 = vmul.f32 %v514, %v1912
    %v1916 = vmul.f32 %v515, %v1912
    %s1917 = sld [smem:[#allocation4 + $0x81]]
    %v1918 = vstv %s1917
    %v1919 = vmul.f32 %v952, %v1918
    %v1920 = vmul.f32 %v953, %v1918
    %v1921 = vmul.f32 %v954, %v1918
    %v1922 = vmul.f32 %v955, %v1918
    %v1923 = vadd.f32 %v1913, %v1919
    %v1924 = vadd.f32 %v1914, %v1920
    %v1925 = vadd.f32 %v1915, %v1921
    %v1926 = vadd.f32 %v1916, %v1922
    %s1927 = sld [smem:[#allocation4 + $0x82]]
    %v1928 = vstv %s1927
    %v1929 = vmul.f32 %v1392, %v1928
    %v1930 = vmul.f32 %v1393, %v1928
    %v1931 = vmul.f32 %v1394, %v1928
    %v1932 = vmul.f32 %v1395, %v1928
    %v1933 = vadd.f32 %v1923, %v1929
    %v1934 = vadd.f32 %v1924, %v1930
    %v1935 = vadd.f32 %v1925, %v1931
    %v1936 = vadd.f32 %v1926, %v1932
    %s1937 = sld [smem:[#allocation4 + $0x83]]
    %v1938 = vstv %s1937
    %v1939 = vmul.f32 %v1832, %v1938
    %v1940 = vmul.f32 %v1833, %v1938
    %v1941 = vmul.f32 %v1834, %v1938
    %v1942 = vmul.f32 %v1835, %v1938
    %v1943 = vadd.f32 %v1933, %v1939
    %v1944 = vadd.f32 %v1934, %v1940
    %v1945 = vadd.f32 %v1935, %v1941
    %v1946 = vadd.f32 %v1936, %v1942
    %s1947 = scalar_lea.vmem %s4, 16
    %1948 = vst.msk [vmem:[%s1947] sm:$0xff] %vm1872, %v1943
    %1949 = vst.msk [vmem:[%s1947 + $0x8] sm:$0xff] %vm1872, %v1944
    %1950 = vst.msk [vmem:[%s1947 + $0x80] sm:$0xff] %vm1872, %v1945
    %1951 = vst.msk [vmem:[%s1947 + $0x88] sm:$0xff] %vm1872, %v1946
    %v1952 = vsel %vm1872, %v1943, 0.0
    %v1953 = vsel %vm1872, %v1944, 0.0
    %v1954 = vadd.f32 %v1952, %v1953
    %v1955 = vsel %vm1872, %v1945, 0.0
    %v1956 = vadd.f32 %v1954, %v1955
    %v1957 = vsel %vm1872, %v1946, 0.0
    %v1958 = vadd.f32 %v1956, %v1957
    %v1959 = vrot.slane %v1958, 4
    %v1960 = vadd.f32 %v1958, %v1959
    %v1961 = vrot.slane %v1960, 2
    %v1962 = vadd.f32 %v1960, %v1961
    %v1963 = vrot.slane %v1962, 1
    %v1964 = vadd.f32 %v1962, %v1963
    %1965 = vst.msk [vmem:[%s5 + $0x1] sm:$0x1] %vm1890, %v1964
    %v1966 = vmul.f32 %v1943, %v1943
    %v1967 = vmul.f32 %v1944, %v1944
    %v1968 = vmul.f32 %v1945, %v1945
    %v1969 = vmul.f32 %v1946, %v1946
    %v1970 = vsel %vm1872, %v1966, 0.0
    %v1971 = vsel %vm1872, %v1967, 0.0
    %v1972 = vadd.f32 %v1970, %v1971
    %v1973 = vsel %vm1872, %v1968, 0.0
    %v1974 = vadd.f32 %v1972, %v1973
    %v1975 = vsel %vm1872, %v1969, 0.0
    %v1976 = vadd.f32 %v1974, %v1975
    %v1977 = vrot.slane %v1976, 4
    %v1978 = vadd.f32 %v1976, %v1977
    %v1979 = vrot.slane %v1978, 2
    %v1980 = vadd.f32 %v1978, %v1979
    %v1981 = vrot.slane %v1980, 1
    %v1982 = vadd.f32 %v1980, %v1981
    %1983 = vst.msk [vmem:[%s1909 + $0x1] sm:$0x1] %vm1890, %v1982
    %s1984 = sld [smem:[#allocation4 + $0x100]]
    %v1985 = vstv %s1984
    %v1986 = vmul.f32 %v512, %v1985
    %v1987 = vmul.f32 %v513, %v1985
    %v1988 = vmul.f32 %v514, %v1985
    %v1989 = vmul.f32 %v515, %v1985
    %s1990 = sld [smem:[#allocation4 + $0x101]]
    %v1991 = vstv %s1990
    %v1992 = vmul.f32 %v952, %v1991
    %v1993 = vmul.f32 %v953, %v1991
    %v1994 = vmul.f32 %v954, %v1991
    %v1995 = vmul.f32 %v955, %v1991
    %v1996 = vadd.f32 %v1986, %v1992
    %v1997 = vadd.f32 %v1987, %v1993
    %v1998 = vadd.f32 %v1988, %v1994
    %v1999 = vadd.f32 %v1989, %v1995
    %s2000 = sld [smem:[#allocation4 + $0x102]]
    %v2001 = vstv %s2000
    %v2002 = vmul.f32 %v1392, %v2001
    %v2003 = vmul.f32 %v1393, %v2001
    %v2004 = vmul.f32 %v1394, %v2001
    %v2005 = vmul.f32 %v1395, %v2001
    %v2006 = vadd.f32 %v1996, %v2002
    %v2007 = vadd.f32 %v1997, %v2003
    %v2008 = vadd.f32 %v1998, %v2004
    %v2009 = vadd.f32 %v1999, %v2005
    %s2010 = sld [smem:[#allocation4 + $0x103]]
    %v2011 = vstv %s2010
    %v2012 = vmul.f32 %v1832, %v2011
    %v2013 = vmul.f32 %v1833, %v2011
    %v2014 = vmul.f32 %v1834, %v2011
    %v2015 = vmul.f32 %v1835, %v2011
    %v2016 = vadd.f32 %v2006, %v2012
    %v2017 = vadd.f32 %v2007, %v2013
    %v2018 = vadd.f32 %v2008, %v2014
    %v2019 = vadd.f32 %v2009, %v2015
    %s2020 = scalar_lea.vmem %s4, 32
    %2021 = vst.msk [vmem:[%s2020] sm:$0xff] %vm1872, %v2016
    %2022 = vst.msk [vmem:[%s2020 + $0x8] sm:$0xff] %vm1872, %v2017
    %2023 = vst.msk [vmem:[%s2020 + $0x80] sm:$0xff] %vm1872, %v2018
    %2024 = vst.msk [vmem:[%s2020 + $0x88] sm:$0xff] %vm1872, %v2019
    %v2025 = vsel %vm1872, %v2016, 0.0
    %v2026 = vsel %vm1872, %v2017, 0.0
    %v2027 = vadd.f32 %v2025, %v2026
    %v2028 = vsel %vm1872, %v2018, 0.0
    %v2029 = vadd.f32 %v2027, %v2028
    %v2030 = vsel %vm1872, %v2019, 0.0
    %v2031 = vadd.f32 %v2029, %v2030
    %v2032 = vrot.slane %v2031, 4
    %v2033 = vadd.f32 %v2031, %v2032
    %v2034 = vrot.slane %v2033, 2
    %v2035 = vadd.f32 %v2033, %v2034
    %v2036 = vrot.slane %v2035, 1
    %v2037 = vadd.f32 %v2035, %v2036
    %2038 = vst.msk [vmem:[%s5 + $0x2] sm:$0x1] %vm1890, %v2037
    %v2039 = vmul.f32 %v2016, %v2016
    %v2040 = vmul.f32 %v2017, %v2017
    %v2041 = vmul.f32 %v2018, %v2018
    %v2042 = vmul.f32 %v2019, %v2019
    %v2043 = vsel %vm1872, %v2039, 0.0
    %v2044 = vsel %vm1872, %v2040, 0.0
    %v2045 = vadd.f32 %v2043, %v2044
    %v2046 = vsel %vm1872, %v2041, 0.0
    %v2047 = vadd.f32 %v2045, %v2046
    %v2048 = vsel %vm1872, %v2042, 0.0
    %v2049 = vadd.f32 %v2047, %v2048
    %v2050 = vrot.slane %v2049, 4
    %v2051 = vadd.f32 %v2049, %v2050
    %v2052 = vrot.slane %v2051, 2
    %v2053 = vadd.f32 %v2051, %v2052
    %v2054 = vrot.slane %v2053, 1
    %v2055 = vadd.f32 %v2053, %v2054
    %2056 = vst.msk [vmem:[%s1909 + $0x2] sm:$0x1] %vm1890, %v2055
    %s2057 = sld [smem:[#allocation4 + $0x180]]
    %v2058 = vstv %s2057
    %v2059 = vmul.f32 %v512, %v2058
    %v2060 = vmul.f32 %v513, %v2058
    %v2061 = vmul.f32 %v514, %v2058
    %v2062 = vmul.f32 %v515, %v2058
    %s2063 = sld [smem:[#allocation4 + $0x181]]
    %v2064 = vstv %s2063
    %v2065 = vmul.f32 %v952, %v2064
    %v2066 = vmul.f32 %v953, %v2064
    %v2067 = vmul.f32 %v954, %v2064
    %v2068 = vmul.f32 %v955, %v2064
    %v2069 = vadd.f32 %v2059, %v2065
    %v2070 = vadd.f32 %v2060, %v2066
    %v2071 = vadd.f32 %v2061, %v2067
    %v2072 = vadd.f32 %v2062, %v2068
    %s2073 = sld [smem:[#allocation4 + $0x182]]
    %v2074 = vstv %s2073
    %v2075 = vmul.f32 %v1392, %v2074
    %v2076 = vmul.f32 %v1393, %v2074
    %v2077 = vmul.f32 %v1394, %v2074
    %v2078 = vmul.f32 %v1395, %v2074
    %v2079 = vadd.f32 %v2069, %v2075
    %v2080 = vadd.f32 %v2070, %v2076
    %v2081 = vadd.f32 %v2071, %v2077
    %v2082 = vadd.f32 %v2072, %v2078
    %s2083 = sld [smem:[#allocation4 + $0x183]]
    %v2084 = vstv %s2083
    %v2085 = vmul.f32 %v1832, %v2084
    %v2086 = vmul.f32 %v1833, %v2084
    %v2087 = vmul.f32 %v1834, %v2084
    %v2088 = vmul.f32 %v1835, %v2084
    %v2089 = vadd.f32 %v2079, %v2085
    %v2090 = vadd.f32 %v2080, %v2086
    %v2091 = vadd.f32 %v2081, %v2087
    %v2092 = vadd.f32 %v2082, %v2088
    %s2093 = scalar_lea.vmem %s4, 48
    %2094 = vst.msk [vmem:[%s2093] sm:$0xff] %vm1872, %v2089
    %2095 = vst.msk [vmem:[%s2093 + $0x8] sm:$0xff] %vm1872, %v2090
    %2096 = vst.msk [vmem:[%s2093 + $0x80] sm:$0xff] %vm1872, %v2091
    %2097 = vst.msk [vmem:[%s2093 + $0x88] sm:$0xff] %vm1872, %v2092
    %v2098 = vsel %vm1872, %v2089, 0.0
    %v2099 = vsel %vm1872, %v2090, 0.0
    %v2100 = vadd.f32 %v2098, %v2099
    %v2101 = vsel %vm1872, %v2091, 0.0
    %v2102 = vadd.f32 %v2100, %v2101
    %v2103 = vsel %vm1872, %v2092, 0.0
    %v2104 = vadd.f32 %v2102, %v2103
    %v2105 = vrot.slane %v2104, 4
    %v2106 = vadd.f32 %v2104, %v2105
    %v2107 = vrot.slane %v2106, 2
    %v2108 = vadd.f32 %v2106, %v2107
    %v2109 = vrot.slane %v2108, 1
    %v2110 = vadd.f32 %v2108, %v2109
    %2111 = vst.msk [vmem:[%s5 + $0x3] sm:$0x1] %vm1890, %v2110
    %v2112 = vmul.f32 %v2089, %v2089
    %v2113 = vmul.f32 %v2090, %v2090
    %v2114 = vmul.f32 %v2091, %v2091
    %v2115 = vmul.f32 %v2092, %v2092
    %v2116 = vsel %vm1872, %v2112, 0.0
    %v2117 = vsel %vm1872, %v2113, 0.0
    %v2118 = vadd.f32 %v2116, %v2117
    %v2119 = vsel %vm1872, %v2114, 0.0
    %v2120 = vadd.f32 %v2118, %v2119
    %v2121 = vsel %vm1872, %v2115, 0.0
    %v2122 = vadd.f32 %v2120, %v2121
    %v2123 = vrot.slane %v2122, 4
    %v2124 = vadd.f32 %v2122, %v2123
    %v2125 = vrot.slane %v2124, 2
    %v2126 = vadd.f32 %v2124, %v2125
    %v2127 = vrot.slane %v2126, 1
    %v2128 = vadd.f32 %v2126, %v2127
    %2129 = vst.msk [vmem:[%s1909 + $0x3] sm:$0x1] %vm1890, %v2128
    %s2130 = sld [smem:[#allocation4 + $0x200]]
    %v2131 = vstv %s2130
    %v2132 = vmul.f32 %v512, %v2131
    %v2133 = vmul.f32 %v513, %v2131
    %v2134 = vmul.f32 %v514, %v2131
    %v2135 = vmul.f32 %v515, %v2131
    %s2136 = sld [smem:[#allocation4 + $0x201]]
    %v2137 = vstv %s2136
    %v2138 = vmul.f32 %v952, %v2137
    %v2139 = vmul.f32 %v953, %v2137
    %v2140 = vmul.f32 %v954, %v2137
    %v2141 = vmul.f32 %v955, %v2137
    %v2142 = vadd.f32 %v2132, %v2138
    %v2143 = vadd.f32 %v2133, %v2139
    %v2144 = vadd.f32 %v2134, %v2140
    %v2145 = vadd.f32 %v2135, %v2141
    %s2146 = sld [smem:[#allocation4 + $0x202]]
    %v2147 = vstv %s2146
    %v2148 = vmul.f32 %v1392, %v2147
    %v2149 = vmul.f32 %v1393, %v2147
    %v2150 = vmul.f32 %v1394, %v2147
    %v2151 = vmul.f32 %v1395, %v2147
    %v2152 = vadd.f32 %v2142, %v2148
    %v2153 = vadd.f32 %v2143, %v2149
    %v2154 = vadd.f32 %v2144, %v2150
    %v2155 = vadd.f32 %v2145, %v2151
    %s2156 = sld [smem:[#allocation4 + $0x203]]
    %v2157 = vstv %s2156
    %v2158 = vmul.f32 %v1832, %v2157
    %v2159 = vmul.f32 %v1833, %v2157
    %v2160 = vmul.f32 %v1834, %v2157
    %v2161 = vmul.f32 %v1835, %v2157
    %v2162 = vadd.f32 %v2152, %v2158
    %v2163 = vadd.f32 %v2153, %v2159
    %v2164 = vadd.f32 %v2154, %v2160
    %v2165 = vadd.f32 %v2155, %v2161
    %s2166 = scalar_lea.vmem %s4, 64
    %2167 = vst.msk [vmem:[%s2166] sm:$0xff] %vm1872, %v2162
    %2168 = vst.msk [vmem:[%s2166 + $0x8] sm:$0xff] %vm1872, %v2163
    %2169 = vst.msk [vmem:[%s2166 + $0x80] sm:$0xff] %vm1872, %v2164
    %2170 = vst.msk [vmem:[%s2166 + $0x88] sm:$0xff] %vm1872, %v2165
    %v2171 = vsel %vm1872, %v2162, 0.0
    %v2172 = vsel %vm1872, %v2163, 0.0
    %v2173 = vadd.f32 %v2171, %v2172
    %v2174 = vsel %vm1872, %v2164, 0.0
    %v2175 = vadd.f32 %v2173, %v2174
    %v2176 = vsel %vm1872, %v2165, 0.0
    %v2177 = vadd.f32 %v2175, %v2176
    %v2178 = vrot.slane %v2177, 4
    %v2179 = vadd.f32 %v2177, %v2178
    %v2180 = vrot.slane %v2179, 2
    %v2181 = vadd.f32 %v2179, %v2180
    %v2182 = vrot.slane %v2181, 1
    %v2183 = vadd.f32 %v2181, %v2182
    %2184 = vst.msk [vmem:[%s5 + $0x4] sm:$0x1] %vm1890, %v2183
    %v2185 = vmul.f32 %v2162, %v2162
    %v2186 = vmul.f32 %v2163, %v2163
    %v2187 = vmul.f32 %v2164, %v2164
    %v2188 = vmul.f32 %v2165, %v2165
    %v2189 = vsel %vm1872, %v2185, 0.0
    %v2190 = vsel %vm1872, %v2186, 0.0
    %v2191 = vadd.f32 %v2189, %v2190
    %v2192 = vsel %vm1872, %v2187, 0.0
    %v2193 = vadd.f32 %v2191, %v2192
    %v2194 = vsel %vm1872, %v2188, 0.0
    %v2195 = vadd.f32 %v2193, %v2194
    %v2196 = vrot.slane %v2195, 4
    %v2197 = vadd.f32 %v2195, %v2196
    %v2198 = vrot.slane %v2197, 2
    %v2199 = vadd.f32 %v2197, %v2198
    %v2200 = vrot.slane %v2199, 1
    %v2201 = vadd.f32 %v2199, %v2200
    %2202 = vst.msk [vmem:[%s1909 + $0x4] sm:$0x1] %vm1890, %v2201
    %s2203 = sld [smem:[#allocation4 + $0x280]]
    %v2204 = vstv %s2203
    %v2205 = vmul.f32 %v512, %v2204
    %v2206 = vmul.f32 %v513, %v2204
    %v2207 = vmul.f32 %v514, %v2204
    %v2208 = vmul.f32 %v515, %v2204
    %s2209 = sld [smem:[#allocation4 + $0x281]]
    %v2210 = vstv %s2209
    %v2211 = vmul.f32 %v952, %v2210
    %v2212 = vmul.f32 %v953, %v2210
    %v2213 = vmul.f32 %v954, %v2210
    %v2214 = vmul.f32 %v955, %v2210
    %v2215 = vadd.f32 %v2205, %v2211
    %v2216 = vadd.f32 %v2206, %v2212
    %v2217 = vadd.f32 %v2207, %v2213
    %v2218 = vadd.f32 %v2208, %v2214
    %s2219 = sld [smem:[#allocation4 + $0x282]]
    %v2220 = vstv %s2219
    %v2221 = vmul.f32 %v1392, %v2220
    %v2222 = vmul.f32 %v1393, %v2220
    %v2223 = vmul.f32 %v1394, %v2220
    %v2224 = vmul.f32 %v1395, %v2220
    %v2225 = vadd.f32 %v2215, %v2221
    %v2226 = vadd.f32 %v2216, %v2222
    %v2227 = vadd.f32 %v2217, %v2223
    %v2228 = vadd.f32 %v2218, %v2224
    %s2229 = sld [smem:[#allocation4 + $0x283]]
    %v2230 = vstv %s2229
    %v2231 = vmul.f32 %v1832, %v2230
    %v2232 = vmul.f32 %v1833, %v2230
    %v2233 = vmul.f32 %v1834, %v2230
    %v2234 = vmul.f32 %v1835, %v2230
    %v2235 = vadd.f32 %v2225, %v2231
    %v2236 = vadd.f32 %v2226, %v2232
    %v2237 = vadd.f32 %v2227, %v2233
    %v2238 = vadd.f32 %v2228, %v2234
    %s2239 = scalar_lea.vmem %s4, 80
    %2240 = vst.msk [vmem:[%s2239] sm:$0xff] %vm1872, %v2235
    %2241 = vst.msk [vmem:[%s2239 + $0x8] sm:$0xff] %vm1872, %v2236
    %2242 = vst.msk [vmem:[%s2239 + $0x80] sm:$0xff] %vm1872, %v2237
    %2243 = vst.msk [vmem:[%s2239 + $0x88] sm:$0xff] %vm1872, %v2238
    %v2244 = vsel %vm1872, %v2235, 0.0
    %v2245 = vsel %vm1872, %v2236, 0.0
    %v2246 = vadd.f32 %v2244, %v2245
    %v2247 = vsel %vm1872, %v2237, 0.0
    %v2248 = vadd.f32 %v2246, %v2247
    %v2249 = vsel %vm1872, %v2238, 0.0
    %v2250 = vadd.f32 %v2248, %v2249
    %v2251 = vrot.slane %v2250, 4
    %v2252 = vadd.f32 %v2250, %v2251
    %v2253 = vrot.slane %v2252, 2
    %v2254 = vadd.f32 %v2252, %v2253
    %v2255 = vrot.slane %v2254, 1
    %v2256 = vadd.f32 %v2254, %v2255
    %2257 = vst.msk [vmem:[%s5 + $0x5] sm:$0x1] %vm1890, %v2256
    %v2258 = vmul.f32 %v2235, %v2235
    %v2259 = vmul.f32 %v2236, %v2236
    %v2260 = vmul.f32 %v2237, %v2237
    %v2261 = vmul.f32 %v2238, %v2238
    %v2262 = vsel %vm1872, %v2258, 0.0
    %v2263 = vsel %vm1872, %v2259, 0.0
    %v2264 = vadd.f32 %v2262, %v2263
    %v2265 = vsel %vm1872, %v2260, 0.0
    %v2266 = vadd.f32 %v2264, %v2265
    %v2267 = vsel %vm1872, %v2261, 0.0
    %v2268 = vadd.f32 %v2266, %v2267
    %v2269 = vrot.slane %v2268, 4
    %v2270 = vadd.f32 %v2268, %v2269
    %v2271 = vrot.slane %v2270, 2
    %v2272 = vadd.f32 %v2270, %v2271
    %v2273 = vrot.slane %v2272, 1
    %v2274 = vadd.f32 %v2272, %v2273
    %2275 = vst.msk [vmem:[%s1909 + $0x5] sm:$0x1] %vm1890, %v2274
    %s2276 = sld [smem:[#allocation4 + $0x300]]
    %v2277 = vstv %s2276
    %v2278 = vmul.f32 %v512, %v2277
    %v2279 = vmul.f32 %v513, %v2277
    %v2280 = vmul.f32 %v514, %v2277
    %v2281 = vmul.f32 %v515, %v2277
    %s2282 = sld [smem:[#allocation4 + $0x301]]
    %v2283 = vstv %s2282
    %v2284 = vmul.f32 %v952, %v2283
    %v2285 = vmul.f32 %v953, %v2283
    %v2286 = vmul.f32 %v954, %v2283
    %v2287 = vmul.f32 %v955, %v2283
    %v2288 = vadd.f32 %v2278, %v2284
    %v2289 = vadd.f32 %v2279, %v2285
    %v2290 = vadd.f32 %v2280, %v2286
    %v2291 = vadd.f32 %v2281, %v2287
    %s2292 = sld [smem:[#allocation4 + $0x302]]
    %v2293 = vstv %s2292
    %v2294 = vmul.f32 %v1392, %v2293
    %v2295 = vmul.f32 %v1393, %v2293
    %v2296 = vmul.f32 %v1394, %v2293
    %v2297 = vmul.f32 %v1395, %v2293
    %v2298 = vadd.f32 %v2288, %v2294
    %v2299 = vadd.f32 %v2289, %v2295
    %v2300 = vadd.f32 %v2290, %v2296
    %v2301 = vadd.f32 %v2291, %v2297
    %s2302 = sld [smem:[#allocation4 + $0x303]]
    %v2303 = vstv %s2302
    %v2304 = vmul.f32 %v1832, %v2303
    %v2305 = vmul.f32 %v1833, %v2303
    %v2306 = vmul.f32 %v1834, %v2303
    %v2307 = vmul.f32 %v1835, %v2303
    %v2308 = vadd.f32 %v2298, %v2304
    %v2309 = vadd.f32 %v2299, %v2305
    %v2310 = vadd.f32 %v2300, %v2306
    %v2311 = vadd.f32 %v2301, %v2307
    %s2312 = scalar_lea.vmem %s4, 96
    %2313 = vst.msk [vmem:[%s2312] sm:$0xff] %vm1872, %v2308
    %2314 = vst.msk [vmem:[%s2312 + $0x8] sm:$0xff] %vm1872, %v2309
    %2315 = vst.msk [vmem:[%s2312 + $0x80] sm:$0xff] %vm1872, %v2310
    %2316 = vst.msk [vmem:[%s2312 + $0x88] sm:$0xff] %vm1872, %v2311
    %v2317 = vsel %vm1872, %v2308, 0.0
    %v2318 = vsel %vm1872, %v2309, 0.0
    %v2319 = vadd.f32 %v2317, %v2318
    %v2320 = vsel %vm1872, %v2310, 0.0
    %v2321 = vadd.f32 %v2319, %v2320
    %v2322 = vsel %vm1872, %v2311, 0.0
    %v2323 = vadd.f32 %v2321, %v2322
    %v2324 = vrot.slane %v2323, 4
    %v2325 = vadd.f32 %v2323, %v2324
    %v2326 = vrot.slane %v2325, 2
    %v2327 = vadd.f32 %v2325, %v2326
    %v2328 = vrot.slane %v2327, 1
    %v2329 = vadd.f32 %v2327, %v2328
    %2330 = vst.msk [vmem:[%s5 + $0x6] sm:$0x1] %vm1890, %v2329
    %v2331 = vmul.f32 %v2308, %v2308
    %v2332 = vmul.f32 %v2309, %v2309
    %v2333 = vmul.f32 %v2310, %v2310
    %v2334 = vmul.f32 %v2311, %v2311
    %v2335 = vsel %vm1872, %v2331, 0.0
    %v2336 = vsel %vm1872, %v2332, 0.0
    %v2337 = vadd.f32 %v2335, %v2336
    %v2338 = vsel %vm1872, %v2333, 0.0
    %v2339 = vadd.f32 %v2337, %v2338
    %v2340 = vsel %vm1872, %v2334, 0.0
    %v2341 = vadd.f32 %v2339, %v2340
    %v2342 = vrot.slane %v2341, 4
    %v2343 = vadd.f32 %v2341, %v2342
    %v2344 = vrot.slane %v2343, 2
    %v2345 = vadd.f32 %v2343, %v2344
    %v2346 = vrot.slane %v2345, 1
    %v2347 = vadd.f32 %v2345, %v2346
    %2348 = vst.msk [vmem:[%s1909 + $0x6] sm:$0x1] %vm1890, %v2347
    %s2349 = sld [smem:[#allocation4 + $0x380]]
    %v2350 = vstv %s2349
    %v2351 = vmul.f32 %v512, %v2350
    %v2352 = vmul.f32 %v513, %v2350
    %v2353 = vmul.f32 %v514, %v2350
    %v2354 = vmul.f32 %v515, %v2350
    %s2355 = sld [smem:[#allocation4 + $0x381]]
    %v2356 = vstv %s2355
    %v2357 = vmul.f32 %v952, %v2356
    %v2358 = vmul.f32 %v953, %v2356
    %v2359 = vmul.f32 %v954, %v2356
    %v2360 = vmul.f32 %v955, %v2356
    %v2361 = vadd.f32 %v2351, %v2357
    %v2362 = vadd.f32 %v2352, %v2358
    %v2363 = vadd.f32 %v2353, %v2359
    %v2364 = vadd.f32 %v2354, %v2360
    %s2365 = sld [smem:[#allocation4 + $0x382]]
    %v2366 = vstv %s2365
    %v2367 = vmul.f32 %v1392, %v2366
    %v2368 = vmul.f32 %v1393, %v2366
    %v2369 = vmul.f32 %v1394, %v2366
    %v2370 = vmul.f32 %v1395, %v2366
    %v2371 = vadd.f32 %v2361, %v2367
    %v2372 = vadd.f32 %v2362, %v2368
    %v2373 = vadd.f32 %v2363, %v2369
    %v2374 = vadd.f32 %v2364, %v2370
    %s2375 = sld [smem:[#allocation4 + $0x383]]
    %v2376 = vstv %s2375
    %v2377 = vmul.f32 %v1832, %v2376
    %v2378 = vmul.f32 %v1833, %v2376
    %v2379 = vmul.f32 %v1834, %v2376
    %v2380 = vmul.f32 %v1835, %v2376
    %v2381 = vadd.f32 %v2371, %v2377
    %v2382 = vadd.f32 %v2372, %v2378
    %v2383 = vadd.f32 %v2373, %v2379
    %v2384 = vadd.f32 %v2374, %v2380
    %s2385 = scalar_lea.vmem %s4, 112
    %2386 = vst.msk [vmem:[%s2385] sm:$0xff] %vm1872, %v2381
    %2387 = vst.msk [vmem:[%s2385 + $0x8] sm:$0xff] %vm1872, %v2382
    %2388 = vst.msk [vmem:[%s2385 + $0x80] sm:$0xff] %vm1872, %v2383
    %2389 = vst.msk [vmem:[%s2385 + $0x88] sm:$0xff] %vm1872, %v2384
    %v2390 = vsel %vm1872, %v2381, 0.0
    %v2391 = vsel %vm1872, %v2382, 0.0
    %v2392 = vadd.f32 %v2390, %v2391
    %v2393 = vsel %vm1872, %v2383, 0.0
    %v2394 = vadd.f32 %v2392, %v2393
    %v2395 = vsel %vm1872, %v2384, 0.0
    %v2396 = vadd.f32 %v2394, %v2395
    %v2397 = vrot.slane %v2396, 4
    %v2398 = vadd.f32 %v2396, %v2397
    %v2399 = vrot.slane %v2398, 2
    %v2400 = vadd.f32 %v2398, %v2399
    %v2401 = vrot.slane %v2400, 1
    %v2402 = vadd.f32 %v2400, %v2401
    %2403 = vst.msk [vmem:[%s5 + $0x7] sm:$0x1] %vm1890, %v2402
    %v2404 = vmul.f32 %v2381, %v2381
    %v2405 = vmul.f32 %v2382, %v2382
    %v2406 = vmul.f32 %v2383, %v2383
    %v2407 = vmul.f32 %v2384, %v2384
    %v2408 = vsel %vm1872, %v2404, 0.0
    %v2409 = vsel %vm1872, %v2405, 0.0
    %v2410 = vadd.f32 %v2408, %v2409
    %v2411 = vsel %vm1872, %v2406, 0.0
    %v2412 = vadd.f32 %v2410, %v2411
    %v2413 = vsel %vm1872, %v2407, 0.0
    %v2414 = vadd.f32 %v2412, %v2413
    %v2415 = vrot.slane %v2414, 4
    %v2416 = vadd.f32 %v2414, %v2415
    %v2417 = vrot.slane %v2416, 2
    %v2418 = vadd.f32 %v2416, %v2417
    %v2419 = vrot.slane %v2418, 1
    %v2420 = vadd.f32 %v2418, %v2419
    %2421 = vst.msk [vmem:[%s1909 + $0x7] sm:$0x1] %vm1890, %v2420
    // Predicated region
    $region26: #{conv_step_forward.2} parent=1 // pred_check
      _
    $region27: #{conv_step_forward.2} parent=1 // pred_check_branch
      %2423 = sbr.rel (0) target = $region29
    $region28: #{conv_step_forward.2} parent=1 // pred_region
      _
    $region29: #{conv_step_forward.2} parent=1 // pred_fallthru
      _
    // Predicated region
    $region30: #{conv_step_forward.2} parent=1 // pred_check
      _
    $region31: #{conv_step_forward.2} parent=1 // pred_check_branch
      %2425 = sbr.rel (0) target = $region33
    $region32: #{conv_step_forward.2} parent=1 // pred_region
      _
    $region33: #{conv_step_forward.2} parent=1 // pred_fallthru
      _
    // Predicated region
    $region34: #{conv_step_forward.2} parent=1 // pred_check
      _
    $region35: #{conv_step_forward.2} parent=1 // pred_check_branch
      %2427 = sbr.rel (0) target = $region37
    $region36: #{conv_step_forward.2} parent=1 // pred_region
      _
    $region37: #{conv_step_forward.2} parent=1 // pred_fallthru
      _
    // Predicated region
    $region38: #{conv_step_forward.2} parent=1 // pred_check
      _
    $region39: #{conv_step_forward.2} parent=1 // pred_check_branch
      %2429 = sbr.rel (0) target = $region41
    $region40: #{conv_step_forward.2} parent=1 // pred_region
      _
    $region41: #{conv_step_forward.2} parent=1 // pred_fallthru
      _
    %2430 = vsyncpa [#allocation3], 1
    %2431 = vsyncpa [#allocation5], 1

</llo_original>
